<compile_context>
chip_gen: v5e
topology: v5e:2x2
jax: 0.10.0
libtpu: 0.0.40
codegen_flags: <defaults>
</compile_context>

<pallas_src>
import functools
import itertools

import jax
import jax.numpy as jnp
import numpy as np
from jax.experimental import pallas as pl
from jax.experimental.pallas import tpu as pltpu

_NEG_SLOPE = 0.01     # nn.LeakyReLU() default
_BN_EPS = 1e-5        # nn.BatchNorm3d default
_MAX_COL_TILE = 2048  # lanes per kernel tile (keeps f32 blocks at ~1-2 MiB each)


def _per_dim_taps(parity):
    """(input-shift delta, kernel index) pairs contributing to this output parity.

    For ConvTranspose (k=3, s=2, p=1, op=1) along one dimension:
      even outputs: out[2j]   = x[j]   * w[1]
      odd  outputs: out[2j+1] = x[j]   * w[2] + x[j+1] * w[0]   (x[D] treated as 0)
    """
    return ((0, 1),) if parity == 0 else ((0, 2), (1, 0))


# ----------------------------------------------------------------------------
# Kernel
# ----------------------------------------------------------------------------
def _deconv_bn_lrelu_kernel(xs_ref, w_ref, ab_ref, out_ref, *, negative_slope):
    # xs_ref : (1, 8*Cin, TS)   shifted-input stack for this (batch, column tile)
    # w_ref  : (8*Cout, 8*Cin)  block tap matrix (constant across the grid)
    # ab_ref : (2, 8*Cout, 1)   fused per-row scale / shift (deconv bias + eval-mode BN)
    # out_ref: (1, 8*Cout, TS)  parity-stacked output tile (lane-dense)
    acc = jnp.dot(w_ref[...], xs_ref[0], preferred_element_type=jnp.float32)
    y = acc * ab_ref[0] + ab_ref[1]                   # bias + BatchNorm folded (FMA)
    y = jnp.where(y >= 0, y, negative_slope * y)      # LeakyReLU
    out_ref[0] = y.astype(out_ref.dtype)


# ----------------------------------------------------------------------------
# Wrapper glue
# ----------------------------------------------------------------------------
def _pick_col_tile(S, target=_MAX_COL_TILE):
    """Largest 128-aligned divisor of S that is <= target (full width if none)."""
    if S <= target:
        return S
    ts = (target // 128) * 128
    while ts >= 128:
        if S % ts == 0:
            return ts
        ts -= 128
    return S  # no lane-aligned divisor: fall back to a single full-width block


def _build_shifted_stack(x):
    """Stack the 8 one-voxel-shifted (zero-padded) copies of x along channels."""
    B, Cin, D, H, W = x.shape
    xp = jnp.pad(x, ((0, 0), (0, 0), (0, 1), (0, 1), (0, 1)))
    slabs = [
        xp[:, :, dd:dd + D, dh:dh + H, dw:dw + W]
        for dd, dh, dw in itertools.product((0, 1), repeat=3)
    ]
    xs = jnp.concatenate(slabs, axis=1)                # (B, 8*Cin, D, H, W)
    return xs.reshape(B, 8 * Cin, D * H * W)           # (B, 8*Cin, S)


def _build_tap_matrix(weight, dtype):
    """Pack the 27 ConvTranspose3d taps into a (8*Cout, 8*Cin) block matrix.

    Row block p (output parity), column block d (input shift delta) holds the
    (Cout, Cin) tap that connects them; invalid combinations stay zero.
    weight layout is PyTorch ConvTranspose3d: (Cin, Cout, 3, 3, 3).
    """
    Cin, Cout = weight.shape[0], weight.shape[1]
    wt = jnp.transpose(weight, (2, 3, 4, 1, 0))        # (3, 3, 3, Cout, Cin)
    wb = jnp.zeros((8 * Cout, 8 * Cin), jnp.float32)
    for p_idx, (pd, ph, pw) in enumerate(itertools.product((0, 1), repeat=3)):
        for (dd, kd) in _per_dim_taps(pd):
            for (dh, kh) in _per_dim_taps(ph):
                for (dw, kw) in _per_dim_taps(pw):
                    d_idx = dd * 4 + dh * 2 + dw
                    wb = wb.at[
                        p_idx * Cout:(p_idx + 1) * Cout,
                        d_idx * Cin:(d_idx + 1) * Cin,
                    ].set(wt[kd, kh, kw])
    return wb.astype(dtype)


def conv3d_decode_block(x, weight, bias, gamma, beta, running_mean, running_var,
                        *, eps=_BN_EPS, negative_slope=_NEG_SLOPE):
    """Fused ConvTranspose3d(k=3, s=2, p=1, op=1) + BatchNorm3d(eval) + LeakyReLU."""
    B, Cin, D, H, W = x.shape
    assert weight.shape[0] == Cin and weight.shape[2:] == (3, 3, 3)
    Cout = weight.shape[1]
    S = D * H * W
    TS = _pick_col_tile(S)

    xs = _build_shifted_stack(x)                       # (B, 8*Cin, S)
    w_big = _build_tap_matrix(weight, x.dtype)         # (8*Cout, 8*Cin)

    # Fold deconv bias + eval-mode BatchNorm into per-channel scale/shift,
    # replicated per parity row block so the kernel epilogue is a single FMA.
    scale = gamma / jnp.sqrt(running_var + eps)                        # (Cout,)
    shift = (bias - running_mean) * scale + beta                       # (Cout,)
    ab = jnp.stack([jnp.tile(scale, 8), jnp.tile(shift, 8)], axis=0)
    ab = ab.astype(jnp.float32).reshape(2, 8 * Cout, 1)                # (2, 8*Cout, 1)

    grid = (B, S // TS)
    out_stacked = pl.pallas_call(
        functools.partial(_deconv_bn_lrelu_kernel, negative_slope=negative_slope),
        out_shape=jax.ShapeDtypeStruct((B, 8 * Cout, S), x.dtype),
        grid_spec=pltpu.PrefetchScalarGridSpec(
            num_scalar_prefetch=0,
            grid=grid,
            in_specs=[
                pl.BlockSpec((1, 8 * Cin, TS), lambda b, j: (b, 0, j)),
                pl.BlockSpec((8 * Cout, 8 * Cin), lambda b, j: (0, 0)),
                pl.BlockSpec((2, 8 * Cout, 1), lambda b, j: (0, 0, 0)),
            ],
            out_specs=pl.BlockSpec((1, 8 * Cout, TS), lambda b, j: (b, 0, j)),
        ),
        compiler_params=pltpu.CompilerParams(
            dimension_semantics=("parallel", "parallel")),
    )(xs, w_big, ab)

    # Interleave the 8 parity sub-lattices back into (B, Cout, 2D, 2H, 2W).
    y = out_stacked.reshape(B, 2, 2, 2, Cout, D, H, W)
    y = jnp.transpose(y, (0, 4, 5, 1, 6, 2, 7, 3))      # (B, Cout, D,2, H,2, W,2)
    return y.reshape(B, Cout, 2 * D, 2 * H, 2 * W)


# ----------------------------------------------------------------------------
# Plain-JAX reference (independent check via lhs-dilated convolution)
# ----------------------------------------------------------------------------
def _ref_conv3d_decode_block(x, weight, bias, gamma, beta, running_mean,
                             running_var, *, eps=_BN_EPS, negative_slope=_NEG_SLOPE):
    # ConvTranspose3d(k=3, s=2, p=1, op=1) == input-dilated conv with the flipped kernel,
    # padding (k-1-p, k-1-p+op) = (1, 2) per spatial dim.
    w_conv = jnp.transpose(jnp.flip(weight, axis=(2, 3, 4)), (1, 0, 2, 3, 4))
    y = jax.lax.conv_general_dilated(
        x, w_conv,
        window_strides=(1, 1, 1),
        padding=((1, 2), (1, 2), (1, 2)),
        lhs_dilation=(2, 2, 2),
        dimension_numbers=("NCDHW", "OIDHW", "NCDHW"),
        precision=jax.lax.Precision.HIGHEST,
    )
    y = y + bias[None, :, None, None, None]
    inv = (1.0 / jnp.sqrt(running_var + eps))[None, :, None, None, None]
    y = (y - running_mean[None, :, None, None, None]) * inv
    y = y * gamma[None, :, None, None, None] + beta[None, :, None, None, None]
    return jnp.where(y >= 0, y, negative_slope * y)


if __name__ == "__main__":
    key = jax.random.PRNGKey(0)
    k = jax.random.split(key, 7)

    # NCDHW: batch=2, in-channels=32, depth(seq)=8, spatial 16x16, out_channels=16.
    B, Cin, Cout, D, H, W = 2, 32, 16, 8, 16, 16
    x = jax.random.normal(k[0], (B, Cin, D, H, W), jnp.float32)
    weight = 0.05 * jax.random.normal(k[1], (Cin, Cout, 3, 3, 3), jnp.float32)
    bias = 0.1 * jax.random.normal(k[2], (Cout,), jnp.float32)
    gamma = 1.0 + 0.1 * jax.random.normal(k[3], (Cout,), jnp.float32)
    beta = 0.1 * jax.random.normal(k[4], (Cout,), jnp.float32)
    running_mean = 0.1 * jax.random.normal(k[5], (Cout,), jnp.float32)
    running_var = 1.0 + 0.1 * jax.random.uniform(k[6], (Cout,), jnp.float32)

    y = conv3d_decode_block(x, weight, bias, gamma, beta, running_mean, running_var)
    y = jax.block_until_ready(y)
    assert y.shape == (B, Cout, 2 * D, 2 * H, 2 * W), y.shape

    y_ref = _ref_conv3d_decode_block(
        x, weight, bias, gamma, beta, running_mean, running_var)
    np.testing.assert_allclose(np.asarray(y), np.asarray(y_ref), rtol=2e-4, atol=2e-4)

    print("KERNEL_OK")
</pallas_src>

<mosaic_0001>
module attributes {stable_mosaic.version = 11 : i64} {
  func.func @_deconv_bn_lrelu_kernel(%arg0: i32, %arg1: i32, %arg2: memref<1x256x2048xf32, #tpu.memory_space<vmem>>, %arg3: memref<128x256xf32, #tpu.memory_space<vmem>>, %arg4: memref<2x128x1xf32, #tpu.memory_space<vmem>>, %arg5: memref<1x128x2048xf32, #tpu.memory_space<vmem>>) attributes {dimension_semantics = [#tpu.dimension_semantics<parallel>, #tpu.dimension_semantics<parallel>], iteration_bounds = array<i64: 2, 1>, scalar_prefetch = 0 : i64, scratch_operands = 0 : i64, tpu.core_type = #tpu.core_type<tc>, window_params = [{transform_indices = @transform_0, window_bounds = array<i64: 1, 256, 2048>}, {pipeline_mode = #tpu.pipeline_mode<synchronous>, transform_indices = @transform_1, window_bounds = array<i64: 128, 256>}, {pipeline_mode = #tpu.pipeline_mode<synchronous>, transform_indices = @transform_2, window_bounds = array<i64: 2, 128, 1>}, {transform_indices = @transform_3, window_bounds = array<i64: 1, 128, 2048>}]} {
    %c0 = arith.constant 0 : index
    %c0_0 = arith.constant 0 : index
    %0 = vector.load %arg3[%c0, %c0_0] : memref<128x256xf32, #tpu.memory_space<vmem>>, vector<128x256xf32>
    %c0_1 = arith.constant 0 : index
    %c0_2 = arith.constant 0 : index
    %c0_3 = arith.constant 0 : index
    %1 = vector.load %arg2[%c0_1, %c0_2, %c0_3] : memref<1x256x2048xf32, #tpu.memory_space<vmem>>, vector<1x256x2048xf32>
    %2 = vector.shape_cast %1 : vector<1x256x2048xf32> to vector<256x2048xf32>
    %cst = arith.constant dense<0.000000e+00> : vector<128x2048xf32>
    %3 = tpu.matmul %0, %2, %cst {dimension_numbers = #tpu.dot_dimension_numbers<[1], [0], [0], [1], [0, 0, 1, 1], [], []>} : vector<128x256xf32>, vector<256x2048xf32>, vector<128x2048xf32> -> vector<128x2048xf32>
    %c0_4 = arith.constant 0 : index
    %c0_5 = arith.constant 0 : index
    %c0_6 = arith.constant 0 : index
    %4 = vector.load %arg4[%c0_4, %c0_5, %c0_6] : memref<2x128x1xf32, #tpu.memory_space<vmem>>, vector<1x128x1xf32>
    %5 = vector.shape_cast %4 : vector<1x128x1xf32> to vector<128x1xf32>
    %6 = vector.broadcast %5 : vector<128x1xf32> to vector<128x2048xf32>
    %7 = arith.mulf %3, %6 : vector<128x2048xf32>
    %c1 = arith.constant 1 : index
    %c0_7 = arith.constant 0 : index
    %c0_8 = arith.constant 0 : index
    %8 = vector.load %arg4[%c1, %c0_7, %c0_8] : memref<2x128x1xf32, #tpu.memory_space<vmem>>, vector<1x128x1xf32>
    %9 = vector.shape_cast %8 : vector<1x128x1xf32> to vector<128x1xf32>
    %10 = vector.broadcast %9 : vector<128x1xf32> to vector<128x2048xf32>
    %11 = arith.addf %7, %10 : vector<128x2048xf32>
    %cst_9 = arith.constant 0.000000e+00 : f32
    %12 = vector.broadcast %cst_9 : f32 to vector<128x2048xf32>
    %13 = arith.cmpf oge, %11, %12 : vector<128x2048xf32>
    %cst_10 = arith.constant 0.00999999977 : f32
    %14 = vector.broadcast %cst_10 : f32 to vector<128x2048xf32>
    %15 = arith.mulf %14, %11 : vector<128x2048xf32>
    %16 = arith.select %13, %11, %15 : vector<128x2048xi1>, vector<128x2048xf32>
    %c0_11 = arith.constant 0 : index
    %c0_12 = arith.constant 0 : index
    %c0_13 = arith.constant 0 : index
    %17 = vector.load %arg5[%c0_11, %c0_12, %c0_13] : memref<1x128x2048xf32, #tpu.memory_space<vmem>>, vector<1x128x2048xf32>
    %18 = vector.shape_cast %17 : vector<1x128x2048xf32> to vector<128x2048xf32>
    %19 = vector.shape_cast %16 : vector<128x2048xf32> to vector<1x128x2048xf32>
    tpu.vector_store %arg5[%c0_11, %c0_12, %c0_13], %19 {strides = array<i32>} : memref<1x128x2048xf32, #tpu.memory_space<vmem>>, vector<1x128x2048xf32>,
    return
  }
  func.func @transform_0(%arg0: i32, %arg1: i32) -> (i32, i32, i32) {
    %c0_i32 = arith.constant 0 : i32
    %c0_i32_0 = arith.constant 0 : i32
    return %arg0, %c0_i32, %arg1 : i32, i32, i32
  }
  func.func @transform_1(%arg0: i32, %arg1: i32) -> (i32, i32) {
    %c0_i32 = arith.constant 0 : i32
    %c0_i32_0 = arith.constant 0 : i32
    %c0_i32_1 = arith.constant 0 : i32
    return %c0_i32, %c0_i32_0 : i32, i32
  }
  func.func @transform_2(%arg0: i32, %arg1: i32) -> (i32, i32, i32) {
    %c0_i32 = arith.constant 0 : i32
    %c0_i32_0 = arith.constant 0 : i32
    %c0_i32_1 = arith.constant 0 : i32
    %c0_i32_2 = arith.constant 0 : i32
    return %c0_i32, %c0_i32_0, %c0_i32_1 : i32, i32, i32
  }
  func.func @transform_3(%arg0: i32, %arg1: i32) -> (i32, i32, i32) {
    %c0_i32 = arith.constant 0 : i32
    %c0_i32_0 = arith.constant 0 : i32
    return %arg0, %c0_i32, %arg1 : i32, i32, i32
  }
}

</mosaic_0001>

<llo_original>
// kernel: tpu_custom_call.1
$region0: #{tpu_custom_call.1}
  #allocation0 [shape = 'u32[]', space=smem, size = 0x4, offset = 0x4, fixed_abs, tag = 'smem constant byte address 0x4 - core index']
  #allocation1 [shape = 'u32[72,128]{1,0:T(1,128)}', space=vmem, size = 0x9000, scoped, tag = 'internal scratch']
  %s0 = inlined_call_operand.hbm [shape: f32[2,256,2048], index: 0, kind: input, shape index: {}]
  %s1 = inlined_call_operand.hbm [shape: f32[128,256], index: 1, kind: input, shape index: {}]
  %s2 = inlined_call_operand.vmem [shape: f32[2,128,1], index: 2, kind: input, shape index: {}]
  %s3 = inlined_call_operand.hbm [shape: f32[2,128,2048], index: 3, kind: output, shape index: {}]
  %s4 = sld [smem:[#allocation0]]
  $region53: #{tpu_custom_call.1} parent=0
    _
  %s6 = ssub.s32 1, %s4
  %s7 = scalar_select 0, %s6, %s4
  $region1: #{tpu_custom_call.1} parent=0
    #allocation2 [shape = 'u8[4194304]{0}', space=vmem, size = 0x400000, scoped, tag = 'input window, operand 0']
    #allocation3 [shape = 's32[2]{0}', space=sflag, size = 0x8, scoped, tag = 'scoped memory for tpu_custom_call.1']
    #allocation4 [shape = 's32[2]{0}', space=sflag, size = 0x8, scoped, tag = 'scoped memory for tpu_custom_call.1']
    #allocation5 [shape = 'u8[131072]{0}', space=vmem, size = 0x20000, scoped, tag = 'input window, operand 1, single buffered']
    #allocation6 [shape = 's32[1]{0}', space=sflag, size = 0x4, scoped, tag = 'scoped memory for tpu_custom_call.1']
    #allocation7 [shape = 'u8[2097152]{0}', space=vmem, size = 0x200000, scoped, tag = 'output window, operand 0']
    %8 = vsyncpa [#allocation3], 0
    %s9 = scalar_lea.sflag [#allocation3], 1
    %10 = vsyncpa %s9, 0
    %11 = vsyncpa [#allocation6], 0
    %12 = vsyncpa [#allocation4], 0
    %s13 = scalar_lea.sflag [#allocation4], 1
    %14 = vsyncpa %s13, 0
    loop: start=0, step=1, limit=4
    $region2: #{tpu_custom_call.1} parent=1 // loop_pre_header
      _
    $region3: #{tpu_custom_call.1} parent=1 // loop_header
      %s16 = sphi 0, %s20
      %p17 = scmp.ge.s32.totalorder %s16, 4
      %s23 = sphi 0, %s35
      %s24 = sphi 0, %s31
      %s25 = sphi 0, %s23
      %s26 = sphi 0, %s24
      %s27 = sphi 0, %s25
      %s28 = sphi 0, %s26
      %s40 = sphi 0, %s42
      %s43 = sphi 0, %s40
      %s44 = sphi 0, %s43
      %s60 = sphi 0, %s44
      %s64 = sphi 0, %s64
      %s66 = sphi 0, %s64
      %s67 = sphi 0, %s66
      %s81 = sphi 0, %s67
      %s85 = sphi 0, %s85
      %s87 = sphi 0, %s85
      %s88 = sphi 0, %s87
      %s102 = sphi 0, %s88
      %s110 = sphi 0, %s112
      %s113 = sphi 0, %s110
      %s114 = sphi 0, %s113
      %s130 = sphi 0, %s114
    $region4: #{tpu_custom_call.1} parent=1 // loop_header_branch
      %19 = sbr.rel (%p17) target = $region8
    $region5: #{tpu_custom_call.1} parent=1 // loop_body
      %s21 = ssub.s32 %s16, 1
      %s22 = ssub.s32 %s16, 2
      %s29 = sadd.s32 1, %s24
      %p30 = scmp.ge.s32.totalorder %s29, 1
      %s31 = scalar_select %p30, 0, %s29
      %s32 = sadd.s32 1, %s23
      %s33 = scalar_select %p30, %s32, %s23
      %p34 = scmp.ge.s32.totalorder %s33, 2
      %s35 = scalar_select %p34, 0, %s33
      %s36 = ssub.s32 %s23, %s35
      %s37 = ssub.s32 %s24, %s31
      %s38 = sor.u32 %s36, %s37
      %p39 = scmp.eq.s32.totalorder %s38, 0
      %s41 = sadd.s32 %s40, 1
      %s42 = scalar_select %p39, %s40, %s41
      %p45 = pneg %p39
      %p46 = scmp.eq.s32.totalorder %s16, 1
      %p47 = por %p45, %p46
      %p48 = scmp.ne.s32.totalorder %s40, %s43
      %p49 = scmp.eq.s32.totalorder %s16, 0
      %p50 = por %p48, %p49
      %p51 = scmp.ne.s32.totalorder %s40, %s43
      %p52 = scmp.eq.s32.totalorder %s21, 1
      %p53 = por %p51, %p52
      %p54 = scmp.ne.s32.totalorder %s43, %s44
      %p55 = scmp.eq.s32.totalorder %s21, 0
      %p56 = por %p54, %p55
      %p57 = scmp.ne.s32.totalorder %s43, %s44
      %p58 = scmp.eq.s32.totalorder %s22, 1
      %p59 = por %p57, %p58
      %p61 = scmp.ne.s32.totalorder %s44, %s60
      %p62 = scmp.eq.s32.totalorder %s22, 0
      %p63 = por %p61, %p62
      %s65 = sadd.s32 %s64, 1
      %p68 = scmp.eq.s32.totalorder %s16, 1
      %p69 = scmp.ne.s32.totalorder %s64, %s66
      %p70 = scmp.eq.s32.totalorder %s16, 0
      %p71 = por %p69, %p70
      %p72 = scmp.ne.s32.totalorder %s64, %s66
      %p73 = scmp.eq.s32.totalorder %s21, 1
      %p74 = por %p72, %p73
      %p75 = scmp.ne.s32.totalorder %s66, %s67
      %p76 = scmp.eq.s32.totalorder %s21, 0
      %p77 = por %p75, %p76
      %p78 = scmp.ne.s32.totalorder %s66, %s67
      %p79 = scmp.eq.s32.totalorder %s22, 1
      %p80 = por %p78, %p79
      %p82 = scmp.ne.s32.totalorder %s67, %s81
      %p83 = scmp.eq.s32.totalorder %s22, 0
      %p84 = por %p82, %p83
      %s86 = sadd.s32 %s85, 1
      %p89 = scmp.eq.s32.totalorder %s16, 1
      %p90 = scmp.ne.s32.totalorder %s85, %s87
      %p91 = scmp.eq.s32.totalorder %s16, 0
      %p92 = por %p90, %p91
      %p93 = scmp.ne.s32.totalorder %s85, %s87
      %p94 = scmp.eq.s32.totalorder %s21, 1
      %p95 = por %p93, %p94
      %p96 = scmp.ne.s32.totalorder %s87, %s88
      %p97 = scmp.eq.s32.totalorder %s21, 0
      %p98 = por %p96, %p97
      %p99 = scmp.ne.s32.totalorder %s87, %s88
      %p100 = scmp.eq.s32.totalorder %s22, 1
      %p101 = por %p99, %p100
      %p103 = scmp.ne.s32.totalorder %s88, %s102
      %p104 = scmp.eq.s32.totalorder %s22, 0
      %p105 = por %p103, %p104
      %s106 = ssub.s32 %s23, %s35
      %s107 = ssub.s32 %s24, %s31
      %s108 = sor.u32 %s106, %s107
      %p109 = scmp.eq.s32.totalorder %s108, 0
      %s111 = sadd.s32 %s110, 1
      %s112 = scalar_select %p109, %s110, %s111
      %p115 = pneg %p109
      %p116 = scmp.eq.s32.totalorder %s16, 1
      %p117 = por %p115, %p116
      %p118 = scmp.ne.s32.totalorder %s110, %s113
      %p119 = scmp.eq.s32.totalorder %s16, 0
      %p120 = por %p118, %p119
      %p121 = scmp.ne.s32.totalorder %s110, %s113
      %p122 = scmp.eq.s32.totalorder %s21, 1
      %p123 = por %p121, %p122
      %p124 = scmp.ne.s32.totalorder %s113, %s114
      %p125 = scmp.eq.s32.totalorder %s21, 0
      %p126 = por %p124, %p125
      %p127 = scmp.ne.s32.totalorder %s113, %s114
      %p128 = scmp.eq.s32.totalorder %s22, 1
      %p129 = por %p127, %p128
      %p131 = scmp.ne.s32.totalorder %s114, %s130
      %p132 = scmp.eq.s32.totalorder %s22, 0
      %p133 = por %p131, %p132
      %p134 = scmp.le.s32.totalorder 1, %s16
      %p135 = scmp.lt.s32.totalorder %s16, 3
      %p136 = pnand %p134, %p135
      %p137 = pneg %p136
      // Predicated region
      $region9: #{tpu_custom_call.1} parent=5 // pred_check
        _
      $region10: #{tpu_custom_call.1} parent=5 // pred_check_branch
        %139 = sbr.rel (%p136) target = $region12
      $region11: #{tpu_custom_call.1} parent=5 // pred_region
        %s140 = ssub.s32 %s16, 1
        // Predicated region
        $region13: #{tpu_custom_call.1} parent=11 // pred_check
          %p141 = pneg %p77
        $region14: #{tpu_custom_call.1} parent=11 // pred_check_branch
          %143 = sbr.rel (%p141) target = $region16
        $region15: #{tpu_custom_call.1} parent=11 // pred_region
          %145 = vsyncadd [#allocation6], 0
          %s146 = sshll.u32 %s1, 4
          %s147 = int_to_ptr.hbm [resolvable:$true] %s146
          %s148 = sshll.u32 [#allocation5], 4
          %s149 = int_to_ptr.vmem [resolvable:$true] %s148
          %154 = dma.hbm_to_vmem [thread:$0]  %s147, 4096, %s149, [#allocation6], 256, 256, 16
        $region16: #{tpu_custom_call.1} parent=11 // pred_fallthru
          _
        // Predicated region
        $region17: #{tpu_custom_call.1} parent=11 // pred_check
          %p155 = pneg %p98
        $region18: #{tpu_custom_call.1} parent=11 // pred_check_branch
          %157 = sbr.rel (%p155) target = $region20
        $region19: #{tpu_custom_call.1} parent=11 // pred_region
          _
        $region20: #{tpu_custom_call.1} parent=11 // pred_fallthru
          _
      $region12: #{tpu_custom_call.1} parent=5 // pred_fallthru
        _
      %p158 = scmp.lt.s32.totalorder %s16, 2
      // Predicated region
      $region21: #{tpu_custom_call.1} parent=5 // pred_check
        %p159 = pneg %p158
      $region22: #{tpu_custom_call.1} parent=5 // pred_check_branch
        %161 = sbr.rel (%p159) target = $region24
      $region23: #{tpu_custom_call.1} parent=5 // pred_region
        // Predicated region
        $region25: #{tpu_custom_call.1} parent=23 // pred_check
          %p162 = pneg %p50
        $region26: #{tpu_custom_call.1} parent=23 // pred_check_branch
          %164 = sbr.rel (%p162) target = $region28
        $region27: #{tpu_custom_call.1} parent=23 // pred_region
          %s165 = sand.u32 %s40, 1
          %s166 = scalar_lea.sflag [#allocation3], %s165
          %s167 = sand.u32 %s40, 1
          %s168 = smul.addr %s167, 4096
          %s169 = scalar_lea.vmem [#allocation2], %s168
          %s170 = smul.u32 16, %s24
          %172 = vsyncadd %s166, 0
          %s173 = smul.addr %s23, 512
          %s174 = sadd.s32 %s170, %s173
          %s175 = smul.addr %s174, 8
          %s176 = scalar_lea.hbm %s0, %s175
          %s177 = sshll.u32 %s176, 4
          %s178 = int_to_ptr.hbm [resolvable:$true] %s177
          %s179 = sshll.u32 %s169, 4
          %s180 = int_to_ptr.vmem [resolvable:$true] %s179
          %185 = dma.hbm_to_vmem [thread:$0]  %s178, 65536, %s180, %s166, 2048, 2048, 128
        $region28: #{tpu_custom_call.1} parent=23 // pred_fallthru
          _
      $region24: #{tpu_custom_call.1} parent=5 // pred_fallthru
        _
      %p186 = scmp.le.s32.totalorder 1, %s16
      %p187 = scmp.lt.s32.totalorder %s16, 3
      %p188 = pnand %p186, %p187
      %p189 = pneg %p188
      // Predicated region
      $region29: #{tpu_custom_call.1} parent=5 // pred_check
        _
      $region30: #{tpu_custom_call.1} parent=5 // pred_check_branch
        %191 = sbr.rel (%p188) target = $region32
      $region31: #{tpu_custom_call.1} parent=5 // pred_region
        %s192 = ssub.s32 %s16, 1
        %s193 = sand.u32 %s43, 1
        %s194 = scalar_lea.sflag [#allocation3], %s193
        %s195 = sand.u32 %s43, 1
        %s196 = smul.addr %s195, 4096
        %s197 = scalar_lea.vmem [#allocation2], %s196
        // Predicated region
        $region33: #{tpu_custom_call.1} parent=31 // pred_check
          %p198 = pneg %p56
        $region34: #{tpu_custom_call.1} parent=31 // pred_check_branch
          %200 = sbr.rel (%p198) target = $region36
        $region35: #{tpu_custom_call.1} parent=31 // pred_region
          %202 = dma.done %s194, 65536
        $region36: #{tpu_custom_call.1} parent=31 // pred_fallthru
          _
        // Predicated region
        $region37: #{tpu_custom_call.1} parent=31 // pred_check
          %p203 = pneg %p77
        $region38: #{tpu_custom_call.1} parent=31 // pred_check_branch
          %205 = sbr.rel (%p203) target = $region40
        $region39: #{tpu_custom_call.1} parent=31 // pred_region
          %207 = dma.done [#allocation6], 4096
        $region40: #{tpu_custom_call.1} parent=31 // pred_fallthru
          _
        %s208 = sand.u32 %s43, 1
        %s209 = scalar_lea.sflag [#allocation3], %s208
        %s210 = sand.u32 %s43, 1
        %s211 = smul.addr %s210, 4096
        %s212 = scalar_lea.vmem [#allocation2], %s211
        %p213 = pneg %p56
        %p214 = pneg %p53
        %p215 = pneg %p77
        %p216 = pneg %p74
        %p217 = pneg %p98
        %p218 = pneg %p95
        %p219 = pneg %p126
        %p220 = pneg %p123
        %s221 = sand.u32 %s113, 1
        %s222 = scalar_lea.sflag [#allocation4], %s221
        %s223 = sand.u32 %s113, 1
        %s224 = smul.addr %s223, 2048
        %s225 = scalar_lea.vmem [#allocation7], %s224
        %s226 = smul.u32 16, %s26
        %s227 = smul.u32 16, %s26
        %v228 = vld [vmem:[#allocation5] sm:$0xff]
        %v229 = vld [vmem:[#allocation5 + $0x8] sm:$0xff]
        %v230 = vld [vmem:[#allocation5 + $0x10] sm:$0xff]
        %v231 = vld [vmem:[#allocation5 + $0x18] sm:$0xff]
        %v232 = vld [vmem:[#allocation5 + $0x20] sm:$0xff]
        %v233 = vld [vmem:[#allocation5 + $0x28] sm:$0xff]
        %v234 = vld [vmem:[#allocation5 + $0x30] sm:$0xff]
        %v235 = vld [vmem:[#allocation5 + $0x38] sm:$0xff]
        %v236 = vld [vmem:[#allocation5 + $0x40] sm:$0xff]
        %v237 = vld [vmem:[#allocation5 + $0x48] sm:$0xff]
        %v238 = vld [vmem:[#allocation5 + $0x50] sm:$0xff]
        %v239 = vld [vmem:[#allocation5 + $0x58] sm:$0xff]
        %v240 = vld [vmem:[#allocation5 + $0x60] sm:$0xff]
        %v241 = vld [vmem:[#allocation5 + $0x68] sm:$0xff]
        %v242 = vld [vmem:[#allocation5 + $0x70] sm:$0xff]
        %v243 = vld [vmem:[#allocation5 + $0x78] sm:$0xff]
        %v244 = vld [vmem:[#allocation5 + $0x80] sm:$0xff]
        %v245 = vld [vmem:[#allocation5 + $0x88] sm:$0xff]
        %v246 = vld [vmem:[#allocation5 + $0x90] sm:$0xff]
        %v247 = vld [vmem:[#allocation5 + $0x98] sm:$0xff]
        %v248 = vld [vmem:[#allocation5 + $0xa0] sm:$0xff]
        %v249 = vld [vmem:[#allocation5 + $0xa8] sm:$0xff]
        %v250 = vld [vmem:[#allocation5 + $0xb0] sm:$0xff]
        %v251 = vld [vmem:[#allocation5 + $0xb8] sm:$0xff]
        %v252 = vld [vmem:[#allocation5 + $0xc0] sm:$0xff]
        %v253 = vld [vmem:[#allocation5 + $0xc8] sm:$0xff]
        %v254 = vld [vmem:[#allocation5 + $0xd0] sm:$0xff]
        %v255 = vld [vmem:[#allocation5 + $0xd8] sm:$0xff]
        %v256 = vld [vmem:[#allocation5 + $0xe0] sm:$0xff]
        %v257 = vld [vmem:[#allocation5 + $0xe8] sm:$0xff]
        %v258 = vld [vmem:[#allocation5 + $0xf0] sm:$0xff]
        %v259 = vld [vmem:[#allocation5 + $0xf8] sm:$0xff]
        %v260 = vld [vmem:[%s197] sm:$0xff]
        %v261 = vld [vmem:[%s197 + $0x8] sm:$0xff]
        %v262 = vld [vmem:[%s197 + $0x10] sm:$0xff]
        %v263 = vld [vmem:[%s197 + $0x18] sm:$0xff]
        %v264 = vld [vmem:[%s197 + $0x20] sm:$0xff]
        %v265 = vld [vmem:[%s197 + $0x28] sm:$0xff]
        %v266 = vld [vmem:[%s197 + $0x30] sm:$0xff]
        %v267 = vld [vmem:[%s197 + $0x38] sm:$0xff]
        %v268 = vld [vmem:[%s197 + $0x40] sm:$0xff]
        %v269 = vld [vmem:[%s197 + $0x48] sm:$0xff]
        %v270 = vld [vmem:[%s197 + $0x50] sm:$0xff]
        %v271 = vld [vmem:[%s197 + $0x58] sm:$0xff]
        %v272 = vld [vmem:[%s197 + $0x60] sm:$0xff]
        %v273 = vld [vmem:[%s197 + $0x68] sm:$0xff]
        %v274 = vld [vmem:[%s197 + $0x70] sm:$0xff]
        %v275 = vld [vmem:[%s197 + $0x78] sm:$0xff]
        %v276 = vld [vmem:[%s197 + $0x80] sm:$0xff]
        %v277 = vld [vmem:[%s197 + $0x88] sm:$0xff]
        %v278 = vld [vmem:[%s197 + $0x90] sm:$0xff]
        %v279 = vld [vmem:[%s197 + $0x98] sm:$0xff]
        %v280 = vld [vmem:[%s197 + $0xa0] sm:$0xff]
        %v281 = vld [vmem:[%s197 + $0xa8] sm:$0xff]
        %v282 = vld [vmem:[%s197 + $0xb0] sm:$0xff]
        %v283 = vld [vmem:[%s197 + $0xb8] sm:$0xff]
        %v284 = vld [vmem:[%s197 + $0xc0] sm:$0xff]
        %v285 = vld [vmem:[%s197 + $0xc8] sm:$0xff]
        %v286 = vld [vmem:[%s197 + $0xd0] sm:$0xff]
        %v287 = vld [vmem:[%s197 + $0xd8] sm:$0xff]
        %v288 = vld [vmem:[%s197 + $0xe0] sm:$0xff]
        %v289 = vld [vmem:[%s197 + $0xe8] sm:$0xff]
        %v290 = vld [vmem:[%s197 + $0xf0] sm:$0xff]
        %v291 = vld [vmem:[%s197 + $0xf8] sm:$0xff]
        %v292 = vld [vmem:[%s197 + $0x100] sm:$0xff]
        %v293 = vld [vmem:[%s197 + $0x108] sm:$0xff]
        %v294 = vld [vmem:[%s197 + $0x110] sm:$0xff]
        %v295 = vld [vmem:[%s197 + $0x118] sm:$0xff]
        %v296 = vld [vmem:[%s197 + $0x120] sm:$0xff]
        %v297 = vld [vmem:[%s197 + $0x128] sm:$0xff]
        %v298 = vld [vmem:[%s197 + $0x130] sm:$0xff]
        %v299 = vld [vmem:[%s197 + $0x138] sm:$0xff]
        %v300 = vld [vmem:[%s197 + $0x140] sm:$0xff]
        %v301 = vld [vmem:[%s197 + $0x148] sm:$0xff]
        %v302 = vld [vmem:[%s197 + $0x150] sm:$0xff]
        %v303 = vld [vmem:[%s197 + $0x158] sm:$0xff]
        %v304 = vld [vmem:[%s197 + $0x160] sm:$0xff]
        %v305 = vld [vmem:[%s197 + $0x168] sm:$0xff]
        %v306 = vld [vmem:[%s197 + $0x170] sm:$0xff]
        %v307 = vld [vmem:[%s197 + $0x178] sm:$0xff]
        %v308 = vld [vmem:[%s197 + $0x180] sm:$0xff]
        %v309 = vld [vmem:[%s197 + $0x188] sm:$0xff]
        %v310 = vld [vmem:[%s197 + $0x190] sm:$0xff]
        %v311 = vld [vmem:[%s197 + $0x198] sm:$0xff]
        %v312 = vld [vmem:[%s197 + $0x1a0] sm:$0xff]
        %v313 = vld [vmem:[%s197 + $0x1a8] sm:$0xff]
        %v314 = vld [vmem:[%s197 + $0x1b0] sm:$0xff]
        %v315 = vld [vmem:[%s197 + $0x1b8] sm:$0xff]
        %v316 = vld [vmem:[%s197 + $0x1c0] sm:$0xff]
        %v317 = vld [vmem:[%s197 + $0x1c8] sm:$0xff]
        %v318 = vld [vmem:[%s197 + $0x1d0] sm:$0xff]
        %v319 = vld [vmem:[%s197 + $0x1d8] sm:$0xff]
        %v320 = vld [vmem:[%s197 + $0x1e0] sm:$0xff]
        %v321 = vld [vmem:[%s197 + $0x1e8] sm:$0xff]
        %v322 = vld [vmem:[%s197 + $0x1f0] sm:$0xff]
        %v323 = vld [vmem:[%s197 + $0x1f8] sm:$0xff]
        %v324 = vld [vmem:[%s197 + $0x200] sm:$0xff]
        %v325 = vld [vmem:[%s197 + $0x208] sm:$0xff]
        %v326 = vld [vmem:[%s197 + $0x210] sm:$0xff]
        %v327 = vld [vmem:[%s197 + $0x218] sm:$0xff]
        %v328 = vld [vmem:[%s197 + $0x220] sm:$0xff]
        %v329 = vld [vmem:[%s197 + $0x228] sm:$0xff]
        %v330 = vld [vmem:[%s197 + $0x230] sm:$0xff]
        %v331 = vld [vmem:[%s197 + $0x238] sm:$0xff]
        %v332 = vld [vmem:[%s197 + $0x240] sm:$0xff]
        %v333 = vld [vmem:[%s197 + $0x248] sm:$0xff]
        %v334 = vld [vmem:[%s197 + $0x250] sm:$0xff]
        %v335 = vld [vmem:[%s197 + $0x258] sm:$0xff]
        %v336 = vld [vmem:[%s197 + $0x260] sm:$0xff]
        %v337 = vld [vmem:[%s197 + $0x268] sm:$0xff]
        %v338 = vld [vmem:[%s197 + $0x270] sm:$0xff]
        %v339 = vld [vmem:[%s197 + $0x278] sm:$0xff]
        %v340 = vld [vmem:[%s197 + $0x280] sm:$0xff]
        %v341 = vld [vmem:[%s197 + $0x288] sm:$0xff]
        %v342 = vld [vmem:[%s197 + $0x290] sm:$0xff]
        %v343 = vld [vmem:[%s197 + $0x298] sm:$0xff]
        %v344 = vld [vmem:[%s197 + $0x2a0] sm:$0xff]
        %v345 = vld [vmem:[%s197 + $0x2a8] sm:$0xff]
        %v346 = vld [vmem:[%s197 + $0x2b0] sm:$0xff]
        %v347 = vld [vmem:[%s197 + $0x2b8] sm:$0xff]
        %v348 = vld [vmem:[%s197 + $0x2c0] sm:$0xff]
        %v349 = vld [vmem:[%s197 + $0x2c8] sm:$0xff]
        %v350 = vld [vmem:[%s197 + $0x2d0] sm:$0xff]
        %v351 = vld [vmem:[%s197 + $0x2d8] sm:$0xff]
        %v352 = vld [vmem:[%s197 + $0x2e0] sm:$0xff]
        %v353 = vld [vmem:[%s197 + $0x2e8] sm:$0xff]
        %v354 = vld [vmem:[%s197 + $0x2f0] sm:$0xff]
        %v355 = vld [vmem:[%s197 + $0x2f8] sm:$0xff]
        %v356 = vld [vmem:[%s197 + $0x300] sm:$0xff]
        %v357 = vld [vmem:[%s197 + $0x308] sm:$0xff]
        %v358 = vld [vmem:[%s197 + $0x310] sm:$0xff]
        %v359 = vld [vmem:[%s197 + $0x318] sm:$0xff]
        %v360 = vld [vmem:[%s197 + $0x320] sm:$0xff]
        %v361 = vld [vmem:[%s197 + $0x328] sm:$0xff]
        %v362 = vld [vmem:[%s197 + $0x330] sm:$0xff]
        %v363 = vld [vmem:[%s197 + $0x338] sm:$0xff]
        %v364 = vld [vmem:[%s197 + $0x340] sm:$0xff]
        %v365 = vld [vmem:[%s197 + $0x348] sm:$0xff]
        %v366 = vld [vmem:[%s197 + $0x350] sm:$0xff]
        %v367 = vld [vmem:[%s197 + $0x358] sm:$0xff]
        %v368 = vld [vmem:[%s197 + $0x360] sm:$0xff]
        %v369 = vld [vmem:[%s197 + $0x368] sm:$0xff]
        %v370 = vld [vmem:[%s197 + $0x370] sm:$0xff]
        %v371 = vld [vmem:[%s197 + $0x378] sm:$0xff]
        %v372 = vld [vmem:[%s197 + $0x380] sm:$0xff]
        %v373 = vld [vmem:[%s197 + $0x388] sm:$0xff]
        %v374 = vld [vmem:[%s197 + $0x390] sm:$0xff]
        %v375 = vld [vmem:[%s197 + $0x398] sm:$0xff]
        %v376 = vld [vmem:[%s197 + $0x3a0] sm:$0xff]
        %v377 = vld [vmem:[%s197 + $0x3a8] sm:$0xff]
        %v378 = vld [vmem:[%s197 + $0x3b0] sm:$0xff]
        %v379 = vld [vmem:[%s197 + $0x3b8] sm:$0xff]
        %v380 = vld [vmem:[%s197 + $0x3c0] sm:$0xff]
        %v381 = vld [vmem:[%s197 + $0x3c8] sm:$0xff]
        %v382 = vld [vmem:[%s197 + $0x3d0] sm:$0xff]
        %v383 = vld [vmem:[%s197 + $0x3d8] sm:$0xff]
        %v384 = vld [vmem:[%s197 + $0x3e0] sm:$0xff]
        %v385 = vld [vmem:[%s197 + $0x3e8] sm:$0xff]
        %v386 = vld [vmem:[%s197 + $0x3f0] sm:$0xff]
        %v387 = vld [vmem:[%s197 + $0x3f8] sm:$0xff]
        %v388 = vld [vmem:[%s197 + $0x400] sm:$0xff]
        %v389 = vld [vmem:[%s197 + $0x408] sm:$0xff]
        %v390 = vld [vmem:[%s197 + $0x410] sm:$0xff]
        %v391 = vld [vmem:[%s197 + $0x418] sm:$0xff]
        %v392 = vld [vmem:[%s197 + $0x420] sm:$0xff]
        %v393 = vld [vmem:[%s197 + $0x428] sm:$0xff]
        %v394 = vld [vmem:[%s197 + $0x430] sm:$0xff]
        %v395 = vld [vmem:[%s197 + $0x438] sm:$0xff]
        %v396 = vld [vmem:[%s197 + $0x440] sm:$0xff]
        %v397 = vld [vmem:[%s197 + $0x448] sm:$0xff]
        %v398 = vld [vmem:[%s197 + $0x450] sm:$0xff]
        %v399 = vld [vmem:[%s197 + $0x458] sm:$0xff]
        %v400 = vld [vmem:[%s197 + $0x460] sm:$0xff]
        %v401 = vld [vmem:[%s197 + $0x468] sm:$0xff]
        %v402 = vld [vmem:[%s197 + $0x470] sm:$0xff]
        %v403 = vld [vmem:[%s197 + $0x478] sm:$0xff]
        %v404 = vld [vmem:[%s197 + $0x480] sm:$0xff]
        %v405 = vld [vmem:[%s197 + $0x488] sm:$0xff]
        %v406 = vld [vmem:[%s197 + $0x490] sm:$0xff]
        %v407 = vld [vmem:[%s197 + $0x498] sm:$0xff]
        %v408 = vld [vmem:[%s197 + $0x4a0] sm:$0xff]
        %v409 = vld [vmem:[%s197 + $0x4a8] sm:$0xff]
        %v410 = vld [vmem:[%s197 + $0x4b0] sm:$0xff]
        %v411 = vld [vmem:[%s197 + $0x4b8] sm:$0xff]
        %v412 = vld [vmem:[%s197 + $0x4c0] sm:$0xff]
        %v413 = vld [vmem:[%s197 + $0x4c8] sm:$0xff]
        %v414 = vld [vmem:[%s197 + $0x4d0] sm:$0xff]
        %v415 = vld [vmem:[%s197 + $0x4d8] sm:$0xff]
        %v416 = vld [vmem:[%s197 + $0x4e0] sm:$0xff]
        %v417 = vld [vmem:[%s197 + $0x4e8] sm:$0xff]
        %v418 = vld [vmem:[%s197 + $0x4f0] sm:$0xff]
        %v419 = vld [vmem:[%s197 + $0x4f8] sm:$0xff]
        %v420 = vld [vmem:[%s197 + $0x500] sm:$0xff]
        %v421 = vld [vmem:[%s197 + $0x508] sm:$0xff]
        %v422 = vld [vmem:[%s197 + $0x510] sm:$0xff]
        %v423 = vld [vmem:[%s197 + $0x518] sm:$0xff]
        %v424 = vld [vmem:[%s197 + $0x520] sm:$0xff]
        %v425 = vld [vmem:[%s197 + $0x528] sm:$0xff]
        %v426 = vld [vmem:[%s197 + $0x530] sm:$0xff]
        %v427 = vld [vmem:[%s197 + $0x538] sm:$0xff]
        %v428 = vld [vmem:[%s197 + $0x540] sm:$0xff]
        %v429 = vld [vmem:[%s197 + $0x548] sm:$0xff]
        %v430 = vld [vmem:[%s197 + $0x550] sm:$0xff]
        %v431 = vld [vmem:[%s197 + $0x558] sm:$0xff]
        %v432 = vld [vmem:[%s197 + $0x560] sm:$0xff]
        %v433 = vld [vmem:[%s197 + $0x568] sm:$0xff]
        %v434 = vld [vmem:[%s197 + $0x570] sm:$0xff]
        %v435 = vld [vmem:[%s197 + $0x578] sm:$0xff]
        %v436 = vld [vmem:[%s197 + $0x580] sm:$0xff]
        %v437 = vld [vmem:[%s197 + $0x588] sm:$0xff]
        %v438 = vld [vmem:[%s197 + $0x590] sm:$0xff]
        %v439 = vld [vmem:[%s197 + $0x598] sm:$0xff]
        %v440 = vld [vmem:[%s197 + $0x5a0] sm:$0xff]
        %v441 = vld [vmem:[%s197 + $0x5a8] sm:$0xff]
        %v442 = vld [vmem:[%s197 + $0x5b0] sm:$0xff]
        %v443 = vld [vmem:[%s197 + $0x5b8] sm:$0xff]
        %v444 = vld [vmem:[%s197 + $0x5c0] sm:$0xff]
        %v445 = vld [vmem:[%s197 + $0x5c8] sm:$0xff]
        %v446 = vld [vmem:[%s197 + $0x5d0] sm:$0xff]
        %v447 = vld [vmem:[%s197 + $0x5d8] sm:$0xff]
        %v448 = vld [vmem:[%s197 + $0x5e0] sm:$0xff]
        %v449 = vld [vmem:[%s197 + $0x5e8] sm:$0xff]
        %v450 = vld [vmem:[%s197 + $0x5f0] sm:$0xff]
        %v451 = vld [vmem:[%s197 + $0x5f8] sm:$0xff]
        %v452 = vld [vmem:[%s197 + $0x600] sm:$0xff]
        %v453 = vld [vmem:[%s197 + $0x608] sm:$0xff]
        %v454 = vld [vmem:[%s197 + $0x610] sm:$0xff]
        %v455 = vld [vmem:[%s197 + $0x618] sm:$0xff]
        %v456 = vld [vmem:[%s197 + $0x620] sm:$0xff]
        %v457 = vld [vmem:[%s197 + $0x628] sm:$0xff]
        %v458 = vld [vmem:[%s197 + $0x630] sm:$0xff]
        %v459 = vld [vmem:[%s197 + $0x638] sm:$0xff]
        %v460 = vld [vmem:[%s197 + $0x640] sm:$0xff]
        %v461 = vld [vmem:[%s197 + $0x648] sm:$0xff]
        %v462 = vld [vmem:[%s197 + $0x650] sm:$0xff]
        %v463 = vld [vmem:[%s197 + $0x658] sm:$0xff]
        %v464 = vld [vmem:[%s197 + $0x660] sm:$0xff]
        %v465 = vld [vmem:[%s197 + $0x668] sm:$0xff]
        %v466 = vld [vmem:[%s197 + $0x670] sm:$0xff]
        %v467 = vld [vmem:[%s197 + $0x678] sm:$0xff]
        %v468 = vld [vmem:[%s197 + $0x680] sm:$0xff]
        %v469 = vld [vmem:[%s197 + $0x688] sm:$0xff]
        %v470 = vld [vmem:[%s197 + $0x690] sm:$0xff]
        %v471 = vld [vmem:[%s197 + $0x698] sm:$0xff]
        %v472 = vld [vmem:[%s197 + $0x6a0] sm:$0xff]
        %v473 = vld [vmem:[%s197 + $0x6a8] sm:$0xff]
        %v474 = vld [vmem:[%s197 + $0x6b0] sm:$0xff]
        %v475 = vld [vmem:[%s197 + $0x6b8] sm:$0xff]
        %v476 = vld [vmem:[%s197 + $0x6c0] sm:$0xff]
        %v477 = vld [vmem:[%s197 + $0x6c8] sm:$0xff]
        %v478 = vld [vmem:[%s197 + $0x6d0] sm:$0xff]
        %v479 = vld [vmem:[%s197 + $0x6d8] sm:$0xff]
        %v480 = vld [vmem:[%s197 + $0x6e0] sm:$0xff]
        %v481 = vld [vmem:[%s197 + $0x6e8] sm:$0xff]
        %v482 = vld [vmem:[%s197 + $0x6f0] sm:$0xff]
        %v483 = vld [vmem:[%s197 + $0x6f8] sm:$0xff]
        %v484 = vld [vmem:[%s197 + $0x700] sm:$0xff]
        %v485 = vld [vmem:[%s197 + $0x708] sm:$0xff]
        %v486 = vld [vmem:[%s197 + $0x710] sm:$0xff]
        %v487 = vld [vmem:[%s197 + $0x718] sm:$0xff]
        %v488 = vld [vmem:[%s197 + $0x720] sm:$0xff]
        %v489 = vld [vmem:[%s197 + $0x728] sm:$0xff]
        %v490 = vld [vmem:[%s197 + $0x730] sm:$0xff]
        %v491 = vld [vmem:[%s197 + $0x738] sm:$0xff]
        %v492 = vld [vmem:[%s197 + $0x740] sm:$0xff]
        %v493 = vld [vmem:[%s197 + $0x748] sm:$0xff]
        %v494 = vld [vmem:[%s197 + $0x750] sm:$0xff]
        %v495 = vld [vmem:[%s197 + $0x758] sm:$0xff]
        %v496 = vld [vmem:[%s197 + $0x760] sm:$0xff]
        %v497 = vld [vmem:[%s197 + $0x768] sm:$0xff]
        %v498 = vld [vmem:[%s197 + $0x770] sm:$0xff]
        %v499 = vld [vmem:[%s197 + $0x778] sm:$0xff]
        %v500 = vld [vmem:[%s197 + $0x780] sm:$0xff]
        %v501 = vld [vmem:[%s197 + $0x788] sm:$0xff]
        %v502 = vld [vmem:[%s197 + $0x790] sm:$0xff]
        %v503 = vld [vmem:[%s197 + $0x798] sm:$0xff]
        %v504 = vld [vmem:[%s197 + $0x7a0] sm:$0xff]
        %v505 = vld [vmem:[%s197 + $0x7a8] sm:$0xff]
        %v506 = vld [vmem:[%s197 + $0x7b0] sm:$0xff]
        %v507 = vld [vmem:[%s197 + $0x7b8] sm:$0xff]
        %v508 = vld [vmem:[%s197 + $0x7c0] sm:$0xff]
        %v509 = vld [vmem:[%s197 + $0x7c8] sm:$0xff]
        %v510 = vld [vmem:[%s197 + $0x7d0] sm:$0xff]
        %v511 = vld [vmem:[%s197 + $0x7d8] sm:$0xff]
        %v512 = vld [vmem:[%s197 + $0x7e0] sm:$0xff]
        %v513 = vld [vmem:[%s197 + $0x7e8] sm:$0xff]
        %v514 = vld [vmem:[%s197 + $0x7f0] sm:$0xff]
        %v515 = vld [vmem:[%s197 + $0x7f8] sm:$0xff]
        %v516 = vld [vmem:[%s197 + $0x800] sm:$0xff]
        %v517 = vld [vmem:[%s197 + $0x808] sm:$0xff]
        %v518 = vld [vmem:[%s197 + $0x810] sm:$0xff]
        %v519 = vld [vmem:[%s197 + $0x818] sm:$0xff]
        %v520 = vld [vmem:[%s197 + $0x820] sm:$0xff]
        %v521 = vld [vmem:[%s197 + $0x828] sm:$0xff]
        %v522 = vld [vmem:[%s197 + $0x830] sm:$0xff]
        %v523 = vld [vmem:[%s197 + $0x838] sm:$0xff]
        %v524 = vld [vmem:[%s197 + $0x840] sm:$0xff]
        %v525 = vld [vmem:[%s197 + $0x848] sm:$0xff]
        %v526 = vld [vmem:[%s197 + $0x850] sm:$0xff]
        %v527 = vld [vmem:[%s197 + $0x858] sm:$0xff]
        %v528 = vld [vmem:[%s197 + $0x860] sm:$0xff]
        %v529 = vld [vmem:[%s197 + $0x868] sm:$0xff]
        %v530 = vld [vmem:[%s197 + $0x870] sm:$0xff]
        %v531 = vld [vmem:[%s197 + $0x878] sm:$0xff]
        %v532 = vld [vmem:[%s197 + $0x880] sm:$0xff]
        %v533 = vld [vmem:[%s197 + $0x888] sm:$0xff]
        %v534 = vld [vmem:[%s197 + $0x890] sm:$0xff]
        %v535 = vld [vmem:[%s197 + $0x898] sm:$0xff]
        %v536 = vld [vmem:[%s197 + $0x8a0] sm:$0xff]
        %v537 = vld [vmem:[%s197 + $0x8a8] sm:$0xff]
        %v538 = vld [vmem:[%s197 + $0x8b0] sm:$0xff]
        %v539 = vld [vmem:[%s197 + $0x8b8] sm:$0xff]
        %v540 = vld [vmem:[%s197 + $0x8c0] sm:$0xff]
        %v541 = vld [vmem:[%s197 + $0x8c8] sm:$0xff]
        %v542 = vld [vmem:[%s197 + $0x8d0] sm:$0xff]
        %v543 = vld [vmem:[%s197 + $0x8d8] sm:$0xff]
        %v544 = vld [vmem:[%s197 + $0x8e0] sm:$0xff]
        %v545 = vld [vmem:[%s197 + $0x8e8] sm:$0xff]
        %v546 = vld [vmem:[%s197 + $0x8f0] sm:$0xff]
        %v547 = vld [vmem:[%s197 + $0x8f8] sm:$0xff]
        %v548 = vld [vmem:[%s197 + $0x900] sm:$0xff]
        %v549 = vld [vmem:[%s197 + $0x908] sm:$0xff]
        %v550 = vld [vmem:[%s197 + $0x910] sm:$0xff]
        %v551 = vld [vmem:[%s197 + $0x918] sm:$0xff]
        %v552 = vld [vmem:[%s197 + $0x920] sm:$0xff]
        %v553 = vld [vmem:[%s197 + $0x928] sm:$0xff]
        %v554 = vld [vmem:[%s197 + $0x930] sm:$0xff]
        %v555 = vld [vmem:[%s197 + $0x938] sm:$0xff]
        %v556 = vld [vmem:[%s197 + $0x940] sm:$0xff]
        %v557 = vld [vmem:[%s197 + $0x948] sm:$0xff]
        %v558 = vld [vmem:[%s197 + $0x950] sm:$0xff]
        %v559 = vld [vmem:[%s197 + $0x958] sm:$0xff]
        %v560 = vld [vmem:[%s197 + $0x960] sm:$0xff]
        %v561 = vld [vmem:[%s197 + $0x968] sm:$0xff]
        %v562 = vld [vmem:[%s197 + $0x970] sm:$0xff]
        %v563 = vld [vmem:[%s197 + $0x978] sm:$0xff]
        %v564 = vld [vmem:[%s197 + $0x980] sm:$0xff]
        %v565 = vld [vmem:[%s197 + $0x988] sm:$0xff]
        %v566 = vld [vmem:[%s197 + $0x990] sm:$0xff]
        %v567 = vld [vmem:[%s197 + $0x998] sm:$0xff]
        %v568 = vld [vmem:[%s197 + $0x9a0] sm:$0xff]
        %v569 = vld [vmem:[%s197 + $0x9a8] sm:$0xff]
        %v570 = vld [vmem:[%s197 + $0x9b0] sm:$0xff]
        %v571 = vld [vmem:[%s197 + $0x9b8] sm:$0xff]
        %v572 = vld [vmem:[%s197 + $0x9c0] sm:$0xff]
        %v573 = vld [vmem:[%s197 + $0x9c8] sm:$0xff]
        %v574 = vld [vmem:[%s197 + $0x9d0] sm:$0xff]
        %v575 = vld [vmem:[%s197 + $0x9d8] sm:$0xff]
        %v576 = vld [vmem:[%s197 + $0x9e0] sm:$0xff]
        %v577 = vld [vmem:[%s197 + $0x9e8] sm:$0xff]
        %v578 = vld [vmem:[%s197 + $0x9f0] sm:$0xff]
        %v579 = vld [vmem:[%s197 + $0x9f8] sm:$0xff]
        %v580 = vld [vmem:[%s197 + $0xa00] sm:$0xff]
        %v581 = vld [vmem:[%s197 + $0xa08] sm:$0xff]
        %v582 = vld [vmem:[%s197 + $0xa10] sm:$0xff]
        %v583 = vld [vmem:[%s197 + $0xa18] sm:$0xff]
        %v584 = vld [vmem:[%s197 + $0xa20] sm:$0xff]
        %v585 = vld [vmem:[%s197 + $0xa28] sm:$0xff]
        %v586 = vld [vmem:[%s197 + $0xa30] sm:$0xff]
        %v587 = vld [vmem:[%s197 + $0xa38] sm:$0xff]
        %v588 = vld [vmem:[%s197 + $0xa40] sm:$0xff]
        %v589 = vld [vmem:[%s197 + $0xa48] sm:$0xff]
        %v590 = vld [vmem:[%s197 + $0xa50] sm:$0xff]
        %v591 = vld [vmem:[%s197 + $0xa58] sm:$0xff]
        %v592 = vld [vmem:[%s197 + $0xa60] sm:$0xff]
        %v593 = vld [vmem:[%s197 + $0xa68] sm:$0xff]
        %v594 = vld [vmem:[%s197 + $0xa70] sm:$0xff]
        %v595 = vld [vmem:[%s197 + $0xa78] sm:$0xff]
        %v596 = vld [vmem:[%s197 + $0xa80] sm:$0xff]
        %v597 = vld [vmem:[%s197 + $0xa88] sm:$0xff]
        %v598 = vld [vmem:[%s197 + $0xa90] sm:$0xff]
        %v599 = vld [vmem:[%s197 + $0xa98] sm:$0xff]
        %v600 = vld [vmem:[%s197 + $0xaa0] sm:$0xff]
        %v601 = vld [vmem:[%s197 + $0xaa8] sm:$0xff]
        %v602 = vld [vmem:[%s197 + $0xab0] sm:$0xff]
        %v603 = vld [vmem:[%s197 + $0xab8] sm:$0xff]
        %v604 = vld [vmem:[%s197 + $0xac0] sm:$0xff]
        %v605 = vld [vmem:[%s197 + $0xac8] sm:$0xff]
        %v606 = vld [vmem:[%s197 + $0xad0] sm:$0xff]
        %v607 = vld [vmem:[%s197 + $0xad8] sm:$0xff]
        %v608 = vld [vmem:[%s197 + $0xae0] sm:$0xff]
        %v609 = vld [vmem:[%s197 + $0xae8] sm:$0xff]
        %v610 = vld [vmem:[%s197 + $0xaf0] sm:$0xff]
        %v611 = vld [vmem:[%s197 + $0xaf8] sm:$0xff]
        %v612 = vld [vmem:[%s197 + $0xb00] sm:$0xff]
        %v613 = vld [vmem:[%s197 + $0xb08] sm:$0xff]
        %v614 = vld [vmem:[%s197 + $0xb10] sm:$0xff]
        %v615 = vld [vmem:[%s197 + $0xb18] sm:$0xff]
        %v616 = vld [vmem:[%s197 + $0xb20] sm:$0xff]
        %v617 = vld [vmem:[%s197 + $0xb28] sm:$0xff]
        %v618 = vld [vmem:[%s197 + $0xb30] sm:$0xff]
        %v619 = vld [vmem:[%s197 + $0xb38] sm:$0xff]
        %v620 = vld [vmem:[%s197 + $0xb40] sm:$0xff]
        %v621 = vld [vmem:[%s197 + $0xb48] sm:$0xff]
        %v622 = vld [vmem:[%s197 + $0xb50] sm:$0xff]
        %v623 = vld [vmem:[%s197 + $0xb58] sm:$0xff]
        %v624 = vld [vmem:[%s197 + $0xb60] sm:$0xff]
        %v625 = vld [vmem:[%s197 + $0xb68] sm:$0xff]
        %v626 = vld [vmem:[%s197 + $0xb70] sm:$0xff]
        %v627 = vld [vmem:[%s197 + $0xb78] sm:$0xff]
        %v628 = vld [vmem:[%s197 + $0xb80] sm:$0xff]
        %v629 = vld [vmem:[%s197 + $0xb88] sm:$0xff]
        %v630 = vld [vmem:[%s197 + $0xb90] sm:$0xff]
        %v631 = vld [vmem:[%s197 + $0xb98] sm:$0xff]
        %v632 = vld [vmem:[%s197 + $0xba0] sm:$0xff]
        %v633 = vld [vmem:[%s197 + $0xba8] sm:$0xff]
        %v634 = vld [vmem:[%s197 + $0xbb0] sm:$0xff]
        %v635 = vld [vmem:[%s197 + $0xbb8] sm:$0xff]
        %v636 = vld [vmem:[%s197 + $0xbc0] sm:$0xff]
        %v637 = vld [vmem:[%s197 + $0xbc8] sm:$0xff]
        %v638 = vld [vmem:[%s197 + $0xbd0] sm:$0xff]
        %v639 = vld [vmem:[%s197 + $0xbd8] sm:$0xff]
        %v640 = vld [vmem:[%s197 + $0xbe0] sm:$0xff]
        %v641 = vld [vmem:[%s197 + $0xbe8] sm:$0xff]
        %v642 = vld [vmem:[%s197 + $0xbf0] sm:$0xff]
        %v643 = vld [vmem:[%s197 + $0xbf8] sm:$0xff]
        %v644 = vld [vmem:[%s197 + $0xc00] sm:$0xff]
        %v645 = vld [vmem:[%s197 + $0xc08] sm:$0xff]
        %v646 = vld [vmem:[%s197 + $0xc10] sm:$0xff]
        %v647 = vld [vmem:[%s197 + $0xc18] sm:$0xff]
        %v648 = vld [vmem:[%s197 + $0xc20] sm:$0xff]
        %v649 = vld [vmem:[%s197 + $0xc28] sm:$0xff]
        %v650 = vld [vmem:[%s197 + $0xc30] sm:$0xff]
        %v651 = vld [vmem:[%s197 + $0xc38] sm:$0xff]
        %v652 = vld [vmem:[%s197 + $0xc40] sm:$0xff]
        %v653 = vld [vmem:[%s197 + $0xc48] sm:$0xff]
        %v654 = vld [vmem:[%s197 + $0xc50] sm:$0xff]
        %v655 = vld [vmem:[%s197 + $0xc58] sm:$0xff]
        %v656 = vld [vmem:[%s197 + $0xc60] sm:$0xff]
        %v657 = vld [vmem:[%s197 + $0xc68] sm:$0xff]
        %v658 = vld [vmem:[%s197 + $0xc70] sm:$0xff]
        %v659 = vld [vmem:[%s197 + $0xc78] sm:$0xff]
        %v660 = vld [vmem:[%s197 + $0xc80] sm:$0xff]
        %v661 = vld [vmem:[%s197 + $0xc88] sm:$0xff]
        %v662 = vld [vmem:[%s197 + $0xc90] sm:$0xff]
        %v663 = vld [vmem:[%s197 + $0xc98] sm:$0xff]
        %v664 = vld [vmem:[%s197 + $0xca0] sm:$0xff]
        %v665 = vld [vmem:[%s197 + $0xca8] sm:$0xff]
        %v666 = vld [vmem:[%s197 + $0xcb0] sm:$0xff]
        %v667 = vld [vmem:[%s197 + $0xcb8] sm:$0xff]
        %v668 = vld [vmem:[%s197 + $0xcc0] sm:$0xff]
        %v669 = vld [vmem:[%s197 + $0xcc8] sm:$0xff]
        %v670 = vld [vmem:[%s197 + $0xcd0] sm:$0xff]
        %v671 = vld [vmem:[%s197 + $0xcd8] sm:$0xff]
        %v672 = vld [vmem:[%s197 + $0xce0] sm:$0xff]
        %v673 = vld [vmem:[%s197 + $0xce8] sm:$0xff]
        %v674 = vld [vmem:[%s197 + $0xcf0] sm:$0xff]
        %v675 = vld [vmem:[%s197 + $0xcf8] sm:$0xff]
        %v676 = vld [vmem:[%s197 + $0xd00] sm:$0xff]
        %v677 = vld [vmem:[%s197 + $0xd08] sm:$0xff]
        %v678 = vld [vmem:[%s197 + $0xd10] sm:$0xff]
        %v679 = vld [vmem:[%s197 + $0xd18] sm:$0xff]
        %v680 = vld [vmem:[%s197 + $0xd20] sm:$0xff]
        %v681 = vld [vmem:[%s197 + $0xd28] sm:$0xff]
        %v682 = vld [vmem:[%s197 + $0xd30] sm:$0xff]
        %v683 = vld [vmem:[%s197 + $0xd38] sm:$0xff]
        %v684 = vld [vmem:[%s197 + $0xd40] sm:$0xff]
        %v685 = vld [vmem:[%s197 + $0xd48] sm:$0xff]
        %v686 = vld [vmem:[%s197 + $0xd50] sm:$0xff]
        %v687 = vld [vmem:[%s197 + $0xd58] sm:$0xff]
        %v688 = vld [vmem:[%s197 + $0xd60] sm:$0xff]
        %v689 = vld [vmem:[%s197 + $0xd68] sm:$0xff]
        %v690 = vld [vmem:[%s197 + $0xd70] sm:$0xff]
        %v691 = vld [vmem:[%s197 + $0xd78] sm:$0xff]
        %v692 = vld [vmem:[%s197 + $0xd80] sm:$0xff]
        %v693 = vld [vmem:[%s197 + $0xd88] sm:$0xff]
        %v694 = vld [vmem:[%s197 + $0xd90] sm:$0xff]
        %v695 = vld [vmem:[%s197 + $0xd98] sm:$0xff]
        %v696 = vld [vmem:[%s197 + $0xda0] sm:$0xff]
        %v697 = vld [vmem:[%s197 + $0xda8] sm:$0xff]
        %v698 = vld [vmem:[%s197 + $0xdb0] sm:$0xff]
        %v699 = vld [vmem:[%s197 + $0xdb8] sm:$0xff]
        %v700 = vld [vmem:[%s197 + $0xdc0] sm:$0xff]
        %v701 = vld [vmem:[%s197 + $0xdc8] sm:$0xff]
        %v702 = vld [vmem:[%s197 + $0xdd0] sm:$0xff]
        %v703 = vld [vmem:[%s197 + $0xdd8] sm:$0xff]
        %v704 = vld [vmem:[%s197 + $0xde0] sm:$0xff]
        %v705 = vld [vmem:[%s197 + $0xde8] sm:$0xff]
        %v706 = vld [vmem:[%s197 + $0xdf0] sm:$0xff]
        %v707 = vld [vmem:[%s197 + $0xdf8] sm:$0xff]
        %v708 = vld [vmem:[%s197 + $0xe00] sm:$0xff]
        %v709 = vld [vmem:[%s197 + $0xe08] sm:$0xff]
        %v710 = vld [vmem:[%s197 + $0xe10] sm:$0xff]
        %v711 = vld [vmem:[%s197 + $0xe18] sm:$0xff]
        %v712 = vld [vmem:[%s197 + $0xe20] sm:$0xff]
        %v713 = vld [vmem:[%s197 + $0xe28] sm:$0xff]
        %v714 = vld [vmem:[%s197 + $0xe30] sm:$0xff]
        %v715 = vld [vmem:[%s197 + $0xe38] sm:$0xff]
        %v716 = vld [vmem:[%s197 + $0xe40] sm:$0xff]
        %v717 = vld [vmem:[%s197 + $0xe48] sm:$0xff]
        %v718 = vld [vmem:[%s197 + $0xe50] sm:$0xff]
        %v719 = vld [vmem:[%s197 + $0xe58] sm:$0xff]
        %v720 = vld [vmem:[%s197 + $0xe60] sm:$0xff]
        %v721 = vld [vmem:[%s197 + $0xe68] sm:$0xff]
        %v722 = vld [vmem:[%s197 + $0xe70] sm:$0xff]
        %v723 = vld [vmem:[%s197 + $0xe78] sm:$0xff]
        %v724 = vld [vmem:[%s197 + $0xe80] sm:$0xff]
        %v725 = vld [vmem:[%s197 + $0xe88] sm:$0xff]
        %v726 = vld [vmem:[%s197 + $0xe90] sm:$0xff]
        %v727 = vld [vmem:[%s197 + $0xe98] sm:$0xff]
        %v728 = vld [vmem:[%s197 + $0xea0] sm:$0xff]
        %v729 = vld [vmem:[%s197 + $0xea8] sm:$0xff]
        %v730 = vld [vmem:[%s197 + $0xeb0] sm:$0xff]
        %v731 = vld [vmem:[%s197 + $0xeb8] sm:$0xff]
        %v732 = vld [vmem:[%s197 + $0xec0] sm:$0xff]
        %v733 = vld [vmem:[%s197 + $0xec8] sm:$0xff]
        %v734 = vld [vmem:[%s197 + $0xed0] sm:$0xff]
        %v735 = vld [vmem:[%s197 + $0xed8] sm:$0xff]
        %v736 = vld [vmem:[%s197 + $0xee0] sm:$0xff]
        %v737 = vld [vmem:[%s197 + $0xee8] sm:$0xff]
        %v738 = vld [vmem:[%s197 + $0xef0] sm:$0xff]
        %v739 = vld [vmem:[%s197 + $0xef8] sm:$0xff]
        %v740 = vld [vmem:[%s197 + $0xf00] sm:$0xff]
        %v741 = vld [vmem:[%s197 + $0xf08] sm:$0xff]
        %v742 = vld [vmem:[%s197 + $0xf10] sm:$0xff]
        %v743 = vld [vmem:[%s197 + $0xf18] sm:$0xff]
        %v744 = vld [vmem:[%s197 + $0xf20] sm:$0xff]
        %v745 = vld [vmem:[%s197 + $0xf28] sm:$0xff]
        %v746 = vld [vmem:[%s197 + $0xf30] sm:$0xff]
        %v747 = vld [vmem:[%s197 + $0xf38] sm:$0xff]
        %v748 = vld [vmem:[%s197 + $0xf40] sm:$0xff]
        %v749 = vld [vmem:[%s197 + $0xf48] sm:$0xff]
        %v750 = vld [vmem:[%s197 + $0xf50] sm:$0xff]
        %v751 = vld [vmem:[%s197 + $0xf58] sm:$0xff]
        %v752 = vld [vmem:[%s197 + $0xf60] sm:$0xff]
        %v753 = vld [vmem:[%s197 + $0xf68] sm:$0xff]
        %v754 = vld [vmem:[%s197 + $0xf70] sm:$0xff]
        %v755 = vld [vmem:[%s197 + $0xf78] sm:$0xff]
        %v756 = vld [vmem:[%s197 + $0xf80] sm:$0xff]
        %v757 = vld [vmem:[%s197 + $0xf88] sm:$0xff]
        %v758 = vld [vmem:[%s197 + $0xf90] sm:$0xff]
        %v759 = vld [vmem:[%s197 + $0xf98] sm:$0xff]
        %v760 = vld [vmem:[%s197 + $0xfa0] sm:$0xff]
        %v761 = vld [vmem:[%s197 + $0xfa8] sm:$0xff]
        %v762 = vld [vmem:[%s197 + $0xfb0] sm:$0xff]
        %v763 = vld [vmem:[%s197 + $0xfb8] sm:$0xff]
        %v764 = vld [vmem:[%s197 + $0xfc0] sm:$0xff]
        %v765 = vld [vmem:[%s197 + $0xfc8] sm:$0xff]
        %v766 = vld [vmem:[%s197 + $0xfd0] sm:$0xff]
        %v767 = vld [vmem:[%s197 + $0xfd8] sm:$0xff]
        %v768 = vld [vmem:[%s197 + $0xfe0] sm:$0xff]
        %v769 = vld [vmem:[%s197 + $0xfe8] sm:$0xff]
        %v770 = vld [vmem:[%s197 + $0xff0] sm:$0xff]
        %v771 = vld [vmem:[%s197 + $0xff8] sm:$0xff]
        %772 = vmatpush.msra.mxu0 %v500
        %773 = vmatpush.msra.mxu0 %v484
        %774 = vmatpush.msra.mxu0 %v468
        %775 = vmatpush.msra.mxu0 %v452
        %776 = vmatpush.msra.mxu0 %v436
        %777 = vmatpush.msra.mxu0 %v420
        %778 = vmatpush.msra.mxu0 %v404
        %779 = vmatpush.msra.mxu0 %v388
        %780 = vmatpush.msra.mxu0 %v372
        %781 = vmatpush.msra.mxu0 %v356
        %782 = vmatpush.msra.mxu0 %v340
        %783 = vmatpush.msra.mxu0 %v324
        %784 = vmatpush.msra.mxu0 %v308
        %785 = vmatpush.msra.mxu0 %v292
        %786 = vmatpush.msra.mxu0 %v276
        %787 = vmatpush.msra.mxu0 %v260
        %788 = vmatmul.f32.gmra.mxu0 %v228
        %v789 = vpop.f32.mrf.mxu0
        %v790 = vadd.f32 0.0, %v789
        %791 = vmatmul.f32.gmra.mxu0 %v230
        %v792 = vpop.f32.mrf.mxu0
        %v793 = vadd.f32 0.0, %v792
        %794 = vmatmul.f32.gmra.mxu0 %v232
        %v795 = vpop.f32.mrf.mxu0
        %v796 = vadd.f32 0.0, %v795
        %797 = vmatmul.f32.gmra.mxu0 %v234
        %v798 = vpop.f32.mrf.mxu0
        %v799 = vadd.f32 0.0, %v798
        %800 = vmatmul.f32.gmra.mxu0 %v236
        %v801 = vpop.f32.mrf.mxu0
        %v802 = vadd.f32 0.0, %v801
        %803 = vmatmul.f32.gmra.mxu0 %v238
        %v804 = vpop.f32.mrf.mxu0
        %v805 = vadd.f32 0.0, %v804
        %806 = vmatmul.f32.gmra.mxu0 %v240
        %v807 = vpop.f32.mrf.mxu0
        %v808 = vadd.f32 0.0, %v807
        %809 = vmatmul.f32.gmra.mxu0 %v242
        %v810 = vpop.f32.mrf.mxu0
        %v811 = vadd.f32 0.0, %v810
        %812 = vmatmul.f32.gmra.mxu0 %v244
        %v813 = vpop.f32.mrf.mxu0
        %v814 = vadd.f32 0.0, %v813
        %815 = vmatmul.f32.gmra.mxu0 %v246
        %v816 = vpop.f32.mrf.mxu0
        %v817 = vadd.f32 0.0, %v816
        %818 = vmatmul.f32.gmra.mxu0 %v248
        %v819 = vpop.f32.mrf.mxu0
        %v820 = vadd.f32 0.0, %v819
        %821 = vmatmul.f32.gmra.mxu0 %v250
        %v822 = vpop.f32.mrf.mxu0
        %v823 = vadd.f32 0.0, %v822
        %824 = vmatmul.f32.gmra.mxu0 %v252
        %v825 = vpop.f32.mrf.mxu0
        %v826 = vadd.f32 0.0, %v825
        %827 = vmatmul.f32.gmra.mxu0 %v254
        %v828 = vpop.f32.mrf.mxu0
        %v829 = vadd.f32 0.0, %v828
        %830 = vmatmul.f32.gmra.mxu0 %v256
        %v831 = vpop.f32.mrf.mxu0
        %v832 = vadd.f32 0.0, %v831
        %833 = vmatmul.f32.gmra.mxu0 %v258
        %v834 = vpop.f32.mrf.mxu0
        %v835 = vadd.f32 0.0, %v834
        %836 = vdwg.mxu0
        %837 = vmatpush.msra.mxu0 %v756
        %838 = vmatpush.msra.mxu0 %v740
        %839 = vmatpush.msra.mxu0 %v724
        %840 = vmatpush.msra.mxu0 %v708
        %841 = vmatpush.msra.mxu0 %v692
        %842 = vmatpush.msra.mxu0 %v676
        %843 = vmatpush.msra.mxu0 %v660
        %844 = vmatpush.msra.mxu0 %v644
        %845 = vmatpush.msra.mxu0 %v628
        %846 = vmatpush.msra.mxu0 %v612
        %847 = vmatpush.msra.mxu0 %v596
        %848 = vmatpush.msra.mxu0 %v580
        %849 = vmatpush.msra.mxu0 %v564
        %850 = vmatpush.msra.mxu0 %v548
        %851 = vmatpush.msra.mxu0 %v532
        %852 = vmatpush.msra.mxu0 %v516
        %853 = vmatmul.f32.gmra.mxu0 %v229
        %v854 = vpop.f32.mrf.mxu0
        %v855 = vadd.f32 %v790, %v854
        %856 = vmatmul.f32.gmra.mxu0 %v231
        %v857 = vpop.f32.mrf.mxu0
        %v858 = vadd.f32 %v793, %v857
        %859 = vmatmul.f32.gmra.mxu0 %v233
        %v860 = vpop.f32.mrf.mxu0
        %v861 = vadd.f32 %v796, %v860
        %862 = vmatmul.f32.gmra.mxu0 %v235
        %v863 = vpop.f32.mrf.mxu0
        %v864 = vadd.f32 %v799, %v863
        %865 = vmatmul.f32.gmra.mxu0 %v237
        %v866 = vpop.f32.mrf.mxu0
        %v867 = vadd.f32 %v802, %v866
        %868 = vmatmul.f32.gmra.mxu0 %v239
        %v869 = vpop.f32.mrf.mxu0
        %v870 = vadd.f32 %v805, %v869
        %871 = vmatmul.f32.gmra.mxu0 %v241
        %v872 = vpop.f32.mrf.mxu0
        %v873 = vadd.f32 %v808, %v872
        %874 = vmatmul.f32.gmra.mxu0 %v243
        %v875 = vpop.f32.mrf.mxu0
        %v876 = vadd.f32 %v811, %v875
        %877 = vmatmul.f32.gmra.mxu0 %v245
        %v878 = vpop.f32.mrf.mxu0
        %v879 = vadd.f32 %v814, %v878
        %880 = vmatmul.f32.gmra.mxu0 %v247
        %v881 = vpop.f32.mrf.mxu0
        %v882 = vadd.f32 %v817, %v881
        %883 = vmatmul.f32.gmra.mxu0 %v249
        %v884 = vpop.f32.mrf.mxu0
        %v885 = vadd.f32 %v820, %v884
        %886 = vmatmul.f32.gmra.mxu0 %v251
        %v887 = vpop.f32.mrf.mxu0
        %v888 = vadd.f32 %v823, %v887
        %889 = vmatmul.f32.gmra.mxu0 %v253
        %v890 = vpop.f32.mrf.mxu0
        %v891 = vadd.f32 %v826, %v890
        %892 = vmatmul.f32.gmra.mxu0 %v255
        %v893 = vpop.f32.mrf.mxu0
        %v894 = vadd.f32 %v829, %v893
        %895 = vmatmul.f32.gmra.mxu0 %v257
        %v896 = vpop.f32.mrf.mxu0
        %v897 = vadd.f32 %v832, %v896
        %898 = vmatmul.f32.gmra.mxu0 %v259
        %v899 = vpop.f32.mrf.mxu0
        %v900 = vadd.f32 %v835, %v899
        %901 = vdwg.mxu0
        %902 = vmatpush.msra.mxu0 %v501
        %903 = vmatpush.msra.mxu0 %v485
        %904 = vmatpush.msra.mxu0 %v469
        %905 = vmatpush.msra.mxu0 %v453
        %906 = vmatpush.msra.mxu0 %v437
        %907 = vmatpush.msra.mxu0 %v421
        %908 = vmatpush.msra.mxu0 %v405
        %909 = vmatpush.msra.mxu0 %v389
        %910 = vmatpush.msra.mxu0 %v373
        %911 = vmatpush.msra.mxu0 %v357
        %912 = vmatpush.msra.mxu0 %v341
        %913 = vmatpush.msra.mxu0 %v325
        %914 = vmatpush.msra.mxu0 %v309
        %915 = vmatpush.msra.mxu0 %v293
        %916 = vmatpush.msra.mxu0 %v277
        %917 = vmatpush.msra.mxu0 %v261
        %918 = vmatmul.f32.gmra.mxu0 %v228
        %v919 = vpop.f32.mrf.mxu0
        %v920 = vadd.f32 0.0, %v919
        %921 = vmatmul.f32.gmra.mxu0 %v230
        %v922 = vpop.f32.mrf.mxu0
        %v923 = vadd.f32 0.0, %v922
        %924 = vmatmul.f32.gmra.mxu0 %v232
        %v925 = vpop.f32.mrf.mxu0
        %v926 = vadd.f32 0.0, %v925
        %927 = vmatmul.f32.gmra.mxu0 %v234
        %v928 = vpop.f32.mrf.mxu0
        %v929 = vadd.f32 0.0, %v928
        %930 = vmatmul.f32.gmra.mxu0 %v236
        %v931 = vpop.f32.mrf.mxu0
        %v932 = vadd.f32 0.0, %v931
        %933 = vmatmul.f32.gmra.mxu0 %v238
        %v934 = vpop.f32.mrf.mxu0
        %v935 = vadd.f32 0.0, %v934
        %936 = vmatmul.f32.gmra.mxu0 %v240
        %v937 = vpop.f32.mrf.mxu0
        %v938 = vadd.f32 0.0, %v937
        %939 = vmatmul.f32.gmra.mxu0 %v242
        %v940 = vpop.f32.mrf.mxu0
        %v941 = vadd.f32 0.0, %v940
        %942 = vmatmul.f32.gmra.mxu0 %v244
        %v943 = vpop.f32.mrf.mxu0
        %v944 = vadd.f32 0.0, %v943
        %945 = vmatmul.f32.gmra.mxu0 %v246
        %v946 = vpop.f32.mrf.mxu0
        %v947 = vadd.f32 0.0, %v946
        %948 = vmatmul.f32.gmra.mxu0 %v248
        %v949 = vpop.f32.mrf.mxu0
        %v950 = vadd.f32 0.0, %v949
        %951 = vmatmul.f32.gmra.mxu0 %v250
        %v952 = vpop.f32.mrf.mxu0
        %v953 = vadd.f32 0.0, %v952
        %954 = vmatmul.f32.gmra.mxu0 %v252
        %v955 = vpop.f32.mrf.mxu0
        %v956 = vadd.f32 0.0, %v955
        %957 = vmatmul.f32.gmra.mxu0 %v254
        %v958 = vpop.f32.mrf.mxu0
        %v959 = vadd.f32 0.0, %v958
        %960 = vmatmul.f32.gmra.mxu0 %v256
        %v961 = vpop.f32.mrf.mxu0
        %v962 = vadd.f32 0.0, %v961
        %963 = vmatmul.f32.gmra.mxu0 %v258
        %v964 = vpop.f32.mrf.mxu0
        %v965 = vadd.f32 0.0, %v964
        %966 = vdwg.mxu0
        %967 = vmatpush.msra.mxu0 %v757
        %968 = vmatpush.msra.mxu0 %v741
        %969 = vmatpush.msra.mxu0 %v725
        %970 = vmatpush.msra.mxu0 %v709
        %971 = vmatpush.msra.mxu0 %v693
        %972 = vmatpush.msra.mxu0 %v677
        %973 = vmatpush.msra.mxu0 %v661
        %974 = vmatpush.msra.mxu0 %v645
        %975 = vmatpush.msra.mxu0 %v629
        %976 = vmatpush.msra.mxu0 %v613
        %977 = vmatpush.msra.mxu0 %v597
        %978 = vmatpush.msra.mxu0 %v581
        %979 = vmatpush.msra.mxu0 %v565
        %980 = vmatpush.msra.mxu0 %v549
        %981 = vmatpush.msra.mxu0 %v533
        %982 = vmatpush.msra.mxu0 %v517
        %983 = vmatmul.f32.gmra.mxu0 %v229
        %v984 = vpop.f32.mrf.mxu0
        %v985 = vadd.f32 %v920, %v984
        %986 = vmatmul.f32.gmra.mxu0 %v231
        %v987 = vpop.f32.mrf.mxu0
        %v988 = vadd.f32 %v923, %v987
        %989 = vmatmul.f32.gmra.mxu0 %v233
        %v990 = vpop.f32.mrf.mxu0
        %v991 = vadd.f32 %v926, %v990
        %992 = vmatmul.f32.gmra.mxu0 %v235
        %v993 = vpop.f32.mrf.mxu0
        %v994 = vadd.f32 %v929, %v993
        %995 = vmatmul.f32.gmra.mxu0 %v237
        %v996 = vpop.f32.mrf.mxu0
        %v997 = vadd.f32 %v932, %v996
        %998 = vmatmul.f32.gmra.mxu0 %v239
        %v999 = vpop.f32.mrf.mxu0
        %v1000 = vadd.f32 %v935, %v999
        %1001 = vmatmul.f32.gmra.mxu0 %v241
        %v1002 = vpop.f32.mrf.mxu0
        %v1003 = vadd.f32 %v938, %v1002
        %1004 = vmatmul.f32.gmra.mxu0 %v243
        %v1005 = vpop.f32.mrf.mxu0
        %v1006 = vadd.f32 %v941, %v1005
        %1007 = vmatmul.f32.gmra.mxu0 %v245
        %v1008 = vpop.f32.mrf.mxu0
        %v1009 = vadd.f32 %v944, %v1008
        %1010 = vmatmul.f32.gmra.mxu0 %v247
        %v1011 = vpop.f32.mrf.mxu0
        %v1012 = vadd.f32 %v947, %v1011
        %1013 = vmatmul.f32.gmra.mxu0 %v249
        %v1014 = vpop.f32.mrf.mxu0
        %v1015 = vadd.f32 %v950, %v1014
        %1016 = vmatmul.f32.gmra.mxu0 %v251
        %v1017 = vpop.f32.mrf.mxu0
        %v1018 = vadd.f32 %v953, %v1017
        %1019 = vmatmul.f32.gmra.mxu0 %v253
        %v1020 = vpop.f32.mrf.mxu0
        %v1021 = vadd.f32 %v956, %v1020
        %1022 = vmatmul.f32.gmra.mxu0 %v255
        %v1023 = vpop.f32.mrf.mxu0
        %v1024 = vadd.f32 %v959, %v1023
        %1025 = vmatmul.f32.gmra.mxu0 %v257
        %v1026 = vpop.f32.mrf.mxu0
        %v1027 = vadd.f32 %v962, %v1026
        %1028 = vmatmul.f32.gmra.mxu0 %v259
        %v1029 = vpop.f32.mrf.mxu0
        %v1030 = vadd.f32 %v965, %v1029
        %1031 = vdwg.mxu0
        %1032 = vmatpush.msra.mxu0 %v502
        %1033 = vmatpush.msra.mxu0 %v486
        %1034 = vmatpush.msra.mxu0 %v470
        %1035 = vmatpush.msra.mxu0 %v454
        %1036 = vmatpush.msra.mxu0 %v438
        %1037 = vmatpush.msra.mxu0 %v422
        %1038 = vmatpush.msra.mxu0 %v406
        %1039 = vmatpush.msra.mxu0 %v390
        %1040 = vmatpush.msra.mxu0 %v374
        %1041 = vmatpush.msra.mxu0 %v358
        %1042 = vmatpush.msra.mxu0 %v342
        %1043 = vmatpush.msra.mxu0 %v326
        %1044 = vmatpush.msra.mxu0 %v310
        %1045 = vmatpush.msra.mxu0 %v294
        %1046 = vmatpush.msra.mxu0 %v278
        %1047 = vmatpush.msra.mxu0 %v262
        %1048 = vmatmul.f32.gmra.mxu0 %v228
        %v1049 = vpop.f32.mrf.mxu0
        %v1050 = vadd.f32 0.0, %v1049
        %1051 = vmatmul.f32.gmra.mxu0 %v230
        %v1052 = vpop.f32.mrf.mxu0
        %v1053 = vadd.f32 0.0, %v1052
        %1054 = vmatmul.f32.gmra.mxu0 %v232
        %v1055 = vpop.f32.mrf.mxu0
        %v1056 = vadd.f32 0.0, %v1055
        %1057 = vmatmul.f32.gmra.mxu0 %v234
        %v1058 = vpop.f32.mrf.mxu0
        %v1059 = vadd.f32 0.0, %v1058
        %1060 = vmatmul.f32.gmra.mxu0 %v236
        %v1061 = vpop.f32.mrf.mxu0
        %v1062 = vadd.f32 0.0, %v1061
        %1063 = vmatmul.f32.gmra.mxu0 %v238
        %v1064 = vpop.f32.mrf.mxu0
        %v1065 = vadd.f32 0.0, %v1064
        %1066 = vmatmul.f32.gmra.mxu0 %v240
        %v1067 = vpop.f32.mrf.mxu0
        %v1068 = vadd.f32 0.0, %v1067
        %1069 = vmatmul.f32.gmra.mxu0 %v242
        %v1070 = vpop.f32.mrf.mxu0
        %v1071 = vadd.f32 0.0, %v1070
        %1072 = vmatmul.f32.gmra.mxu0 %v244
        %v1073 = vpop.f32.mrf.mxu0
        %v1074 = vadd.f32 0.0, %v1073
        %1075 = vmatmul.f32.gmra.mxu0 %v246
        %v1076 = vpop.f32.mrf.mxu0
        %v1077 = vadd.f32 0.0, %v1076
        %1078 = vmatmul.f32.gmra.mxu0 %v248
        %v1079 = vpop.f32.mrf.mxu0
        %v1080 = vadd.f32 0.0, %v1079
        %1081 = vmatmul.f32.gmra.mxu0 %v250
        %v1082 = vpop.f32.mrf.mxu0
        %v1083 = vadd.f32 0.0, %v1082
        %1084 = vmatmul.f32.gmra.mxu0 %v252
        %v1085 = vpop.f32.mrf.mxu0
        %v1086 = vadd.f32 0.0, %v1085
        %1087 = vmatmul.f32.gmra.mxu0 %v254
        %v1088 = vpop.f32.mrf.mxu0
        %v1089 = vadd.f32 0.0, %v1088
        %1090 = vmatmul.f32.gmra.mxu0 %v256
        %v1091 = vpop.f32.mrf.mxu0
        %v1092 = vadd.f32 0.0, %v1091
        %1093 = vmatmul.f32.gmra.mxu0 %v258
        %v1094 = vpop.f32.mrf.mxu0
        %v1095 = vadd.f32 0.0, %v1094
        %1096 = vdwg.mxu0
        %1097 = vmatpush.msra.mxu0 %v758
        %1098 = vmatpush.msra.mxu0 %v742
        %1099 = vmatpush.msra.mxu0 %v726
        %1100 = vmatpush.msra.mxu0 %v710
        %1101 = vmatpush.msra.mxu0 %v694
        %1102 = vmatpush.msra.mxu0 %v678
        %1103 = vmatpush.msra.mxu0 %v662
        %1104 = vmatpush.msra.mxu0 %v646
        %1105 = vmatpush.msra.mxu0 %v630
        %1106 = vmatpush.msra.mxu0 %v614
        %1107 = vmatpush.msra.mxu0 %v598
        %1108 = vmatpush.msra.mxu0 %v582
        %1109 = vmatpush.msra.mxu0 %v566
        %1110 = vmatpush.msra.mxu0 %v550
        %1111 = vmatpush.msra.mxu0 %v534
        %1112 = vmatpush.msra.mxu0 %v518
        %1113 = vmatmul.f32.gmra.mxu0 %v229
        %v1114 = vpop.f32.mrf.mxu0
        %v1115 = vadd.f32 %v1050, %v1114
        %1116 = vmatmul.f32.gmra.mxu0 %v231
        %v1117 = vpop.f32.mrf.mxu0
        %v1118 = vadd.f32 %v1053, %v1117
        %1119 = vmatmul.f32.gmra.mxu0 %v233
        %v1120 = vpop.f32.mrf.mxu0
        %v1121 = vadd.f32 %v1056, %v1120
        %1122 = vmatmul.f32.gmra.mxu0 %v235
        %v1123 = vpop.f32.mrf.mxu0
        %v1124 = vadd.f32 %v1059, %v1123
        %1125 = vmatmul.f32.gmra.mxu0 %v237
        %v1126 = vpop.f32.mrf.mxu0
        %v1127 = vadd.f32 %v1062, %v1126
        %1128 = vmatmul.f32.gmra.mxu0 %v239
        %v1129 = vpop.f32.mrf.mxu0
        %v1130 = vadd.f32 %v1065, %v1129
        %1131 = vmatmul.f32.gmra.mxu0 %v241
        %v1132 = vpop.f32.mrf.mxu0
        %v1133 = vadd.f32 %v1068, %v1132
        %1134 = vmatmul.f32.gmra.mxu0 %v243
        %v1135 = vpop.f32.mrf.mxu0
        %v1136 = vadd.f32 %v1071, %v1135
        %1137 = vmatmul.f32.gmra.mxu0 %v245
        %v1138 = vpop.f32.mrf.mxu0
        %v1139 = vadd.f32 %v1074, %v1138
        %1140 = vmatmul.f32.gmra.mxu0 %v247
        %v1141 = vpop.f32.mrf.mxu0
        %v1142 = vadd.f32 %v1077, %v1141
        %1143 = vmatmul.f32.gmra.mxu0 %v249
        %v1144 = vpop.f32.mrf.mxu0
        %v1145 = vadd.f32 %v1080, %v1144
        %1146 = vmatmul.f32.gmra.mxu0 %v251
        %v1147 = vpop.f32.mrf.mxu0
        %v1148 = vadd.f32 %v1083, %v1147
        %1149 = vmatmul.f32.gmra.mxu0 %v253
        %v1150 = vpop.f32.mrf.mxu0
        %v1151 = vadd.f32 %v1086, %v1150
        %1152 = vmatmul.f32.gmra.mxu0 %v255
        %v1153 = vpop.f32.mrf.mxu0
        %v1154 = vadd.f32 %v1089, %v1153
        %1155 = vmatmul.f32.gmra.mxu0 %v257
        %v1156 = vpop.f32.mrf.mxu0
        %v1157 = vadd.f32 %v1092, %v1156
        %1158 = vmatmul.f32.gmra.mxu0 %v259
        %v1159 = vpop.f32.mrf.mxu0
        %v1160 = vadd.f32 %v1095, %v1159
        %1161 = vdwg.mxu0
        %1162 = vmatpush.msra.mxu0 %v503
        %1163 = vmatpush.msra.mxu0 %v487
        %1164 = vmatpush.msra.mxu0 %v471
        %1165 = vmatpush.msra.mxu0 %v455
        %1166 = vmatpush.msra.mxu0 %v439
        %1167 = vmatpush.msra.mxu0 %v423
        %1168 = vmatpush.msra.mxu0 %v407
        %1169 = vmatpush.msra.mxu0 %v391
        %1170 = vmatpush.msra.mxu0 %v375
        %1171 = vmatpush.msra.mxu0 %v359
        %1172 = vmatpush.msra.mxu0 %v343
        %1173 = vmatpush.msra.mxu0 %v327
        %1174 = vmatpush.msra.mxu0 %v311
        %1175 = vmatpush.msra.mxu0 %v295
        %1176 = vmatpush.msra.mxu0 %v279
        %1177 = vmatpush.msra.mxu0 %v263
        %1178 = vmatmul.f32.gmra.mxu0 %v228
        %v1179 = vpop.f32.mrf.mxu0
        %v1180 = vadd.f32 0.0, %v1179
        %1181 = vmatmul.f32.gmra.mxu0 %v230
        %v1182 = vpop.f32.mrf.mxu0
        %v1183 = vadd.f32 0.0, %v1182
        %1184 = vmatmul.f32.gmra.mxu0 %v232
        %v1185 = vpop.f32.mrf.mxu0
        %v1186 = vadd.f32 0.0, %v1185
        %1187 = vmatmul.f32.gmra.mxu0 %v234
        %v1188 = vpop.f32.mrf.mxu0
        %v1189 = vadd.f32 0.0, %v1188
        %1190 = vmatmul.f32.gmra.mxu0 %v236
        %v1191 = vpop.f32.mrf.mxu0
        %v1192 = vadd.f32 0.0, %v1191
        %1193 = vmatmul.f32.gmra.mxu0 %v238
        %v1194 = vpop.f32.mrf.mxu0
        %v1195 = vadd.f32 0.0, %v1194
        %1196 = vmatmul.f32.gmra.mxu0 %v240
        %v1197 = vpop.f32.mrf.mxu0
        %v1198 = vadd.f32 0.0, %v1197
        %1199 = vmatmul.f32.gmra.mxu0 %v242
        %v1200 = vpop.f32.mrf.mxu0
        %v1201 = vadd.f32 0.0, %v1200
        %1202 = vmatmul.f32.gmra.mxu0 %v244
        %v1203 = vpop.f32.mrf.mxu0
        %v1204 = vadd.f32 0.0, %v1203
        %1205 = vmatmul.f32.gmra.mxu0 %v246
        %v1206 = vpop.f32.mrf.mxu0
        %v1207 = vadd.f32 0.0, %v1206
        %1208 = vmatmul.f32.gmra.mxu0 %v248
        %v1209 = vpop.f32.mrf.mxu0
        %v1210 = vadd.f32 0.0, %v1209
        %1211 = vmatmul.f32.gmra.mxu0 %v250
        %v1212 = vpop.f32.mrf.mxu0
        %v1213 = vadd.f32 0.0, %v1212
        %1214 = vmatmul.f32.gmra.mxu0 %v252
        %v1215 = vpop.f32.mrf.mxu0
        %v1216 = vadd.f32 0.0, %v1215
        %1217 = vmatmul.f32.gmra.mxu0 %v254
        %v1218 = vpop.f32.mrf.mxu0
        %v1219 = vadd.f32 0.0, %v1218
        %1220 = vmatmul.f32.gmra.mxu0 %v256
        %v1221 = vpop.f32.mrf.mxu0
        %v1222 = vadd.f32 0.0, %v1221
        %1223 = vmatmul.f32.gmra.mxu0 %v258
        %v1224 = vpop.f32.mrf.mxu0
        %v1225 = vadd.f32 0.0, %v1224
        %1226 = vdwg.mxu0
        %1227 = vmatpush.msra.mxu0 %v759
        %1228 = vmatpush.msra.mxu0 %v743
        %1229 = vmatpush.msra.mxu0 %v727
        %1230 = vmatpush.msra.mxu0 %v711
        %1231 = vmatpush.msra.mxu0 %v695
        %1232 = vmatpush.msra.mxu0 %v679
        %1233 = vmatpush.msra.mxu0 %v663
        %1234 = vmatpush.msra.mxu0 %v647
        %1235 = vmatpush.msra.mxu0 %v631
        %1236 = vmatpush.msra.mxu0 %v615
        %1237 = vmatpush.msra.mxu0 %v599
        %1238 = vmatpush.msra.mxu0 %v583
        %1239 = vmatpush.msra.mxu0 %v567
        %1240 = vmatpush.msra.mxu0 %v551
        %1241 = vmatpush.msra.mxu0 %v535
        %1242 = vmatpush.msra.mxu0 %v519
        %1243 = vmatmul.f32.gmra.mxu0 %v229
        %v1244 = vpop.f32.mrf.mxu0
        %v1245 = vadd.f32 %v1180, %v1244
        %1246 = vmatmul.f32.gmra.mxu0 %v231
        %v1247 = vpop.f32.mrf.mxu0
        %v1248 = vadd.f32 %v1183, %v1247
        %1249 = vmatmul.f32.gmra.mxu0 %v233
        %v1250 = vpop.f32.mrf.mxu0
        %v1251 = vadd.f32 %v1186, %v1250
        %1252 = vmatmul.f32.gmra.mxu0 %v235
        %v1253 = vpop.f32.mrf.mxu0
        %v1254 = vadd.f32 %v1189, %v1253
        %1255 = vmatmul.f32.gmra.mxu0 %v237
        %v1256 = vpop.f32.mrf.mxu0
        %v1257 = vadd.f32 %v1192, %v1256
        %1258 = vmatmul.f32.gmra.mxu0 %v239
        %v1259 = vpop.f32.mrf.mxu0
        %v1260 = vadd.f32 %v1195, %v1259
        %1261 = vmatmul.f32.gmra.mxu0 %v241
        %v1262 = vpop.f32.mrf.mxu0
        %v1263 = vadd.f32 %v1198, %v1262
        %1264 = vmatmul.f32.gmra.mxu0 %v243
        %v1265 = vpop.f32.mrf.mxu0
        %v1266 = vadd.f32 %v1201, %v1265
        %1267 = vmatmul.f32.gmra.mxu0 %v245
        %v1268 = vpop.f32.mrf.mxu0
        %v1269 = vadd.f32 %v1204, %v1268
        %1270 = vmatmul.f32.gmra.mxu0 %v247
        %v1271 = vpop.f32.mrf.mxu0
        %v1272 = vadd.f32 %v1207, %v1271
        %1273 = vmatmul.f32.gmra.mxu0 %v249
        %v1274 = vpop.f32.mrf.mxu0
        %v1275 = vadd.f32 %v1210, %v1274
        %1276 = vmatmul.f32.gmra.mxu0 %v251
        %v1277 = vpop.f32.mrf.mxu0
        %v1278 = vadd.f32 %v1213, %v1277
        %1279 = vmatmul.f32.gmra.mxu0 %v253
        %v1280 = vpop.f32.mrf.mxu0
        %v1281 = vadd.f32 %v1216, %v1280
        %1282 = vmatmul.f32.gmra.mxu0 %v255
        %v1283 = vpop.f32.mrf.mxu0
        %v1284 = vadd.f32 %v1219, %v1283
        %1285 = vmatmul.f32.gmra.mxu0 %v257
        %v1286 = vpop.f32.mrf.mxu0
        %v1287 = vadd.f32 %v1222, %v1286
        %1288 = vmatmul.f32.gmra.mxu0 %v259
        %v1289 = vpop.f32.mrf.mxu0
        %v1290 = vadd.f32 %v1225, %v1289
        %1291 = vdwg.mxu0
        %1292 = vmatpush.msra.mxu0 %v504
        %1293 = vmatpush.msra.mxu0 %v488
        %1294 = vmatpush.msra.mxu0 %v472
        %1295 = vmatpush.msra.mxu0 %v456
        %1296 = vmatpush.msra.mxu0 %v440
        %1297 = vmatpush.msra.mxu0 %v424
        %1298 = vmatpush.msra.mxu0 %v408
        %1299 = vmatpush.msra.mxu0 %v392
        %1300 = vmatpush.msra.mxu0 %v376
        %1301 = vmatpush.msra.mxu0 %v360
        %1302 = vmatpush.msra.mxu0 %v344
        %1303 = vmatpush.msra.mxu0 %v328
        %1304 = vmatpush.msra.mxu0 %v312
        %1305 = vmatpush.msra.mxu0 %v296
        %1306 = vmatpush.msra.mxu0 %v280
        %1307 = vmatpush.msra.mxu0 %v264
        %1308 = vmatmul.f32.gmra.mxu0 %v228
        %v1309 = vpop.f32.mrf.mxu0
        %v1310 = vadd.f32 0.0, %v1309
        %1311 = vmatmul.f32.gmra.mxu0 %v230
        %v1312 = vpop.f32.mrf.mxu0
        %v1313 = vadd.f32 0.0, %v1312
        %1314 = vmatmul.f32.gmra.mxu0 %v232
        %v1315 = vpop.f32.mrf.mxu0
        %v1316 = vadd.f32 0.0, %v1315
        %1317 = vmatmul.f32.gmra.mxu0 %v234
        %v1318 = vpop.f32.mrf.mxu0
        %v1319 = vadd.f32 0.0, %v1318
        %1320 = vmatmul.f32.gmra.mxu0 %v236
        %v1321 = vpop.f32.mrf.mxu0
        %v1322 = vadd.f32 0.0, %v1321
        %1323 = vmatmul.f32.gmra.mxu0 %v238
        %v1324 = vpop.f32.mrf.mxu0
        %v1325 = vadd.f32 0.0, %v1324
        %1326 = vmatmul.f32.gmra.mxu0 %v240
        %v1327 = vpop.f32.mrf.mxu0
        %v1328 = vadd.f32 0.0, %v1327
        %1329 = vmatmul.f32.gmra.mxu0 %v242
        %v1330 = vpop.f32.mrf.mxu0
        %v1331 = vadd.f32 0.0, %v1330
        %1332 = vmatmul.f32.gmra.mxu0 %v244
        %v1333 = vpop.f32.mrf.mxu0
        %v1334 = vadd.f32 0.0, %v1333
        %1335 = vmatmul.f32.gmra.mxu0 %v246
        %v1336 = vpop.f32.mrf.mxu0
        %v1337 = vadd.f32 0.0, %v1336
        %1338 = vmatmul.f32.gmra.mxu0 %v248
        %v1339 = vpop.f32.mrf.mxu0
        %v1340 = vadd.f32 0.0, %v1339
        %1341 = vmatmul.f32.gmra.mxu0 %v250
        %v1342 = vpop.f32.mrf.mxu0
        %v1343 = vadd.f32 0.0, %v1342
        %1344 = vmatmul.f32.gmra.mxu0 %v252
        %v1345 = vpop.f32.mrf.mxu0
        %v1346 = vadd.f32 0.0, %v1345
        %1347 = vmatmul.f32.gmra.mxu0 %v254
        %v1348 = vpop.f32.mrf.mxu0
        %v1349 = vadd.f32 0.0, %v1348
        %1350 = vmatmul.f32.gmra.mxu0 %v256
        %v1351 = vpop.f32.mrf.mxu0
        %v1352 = vadd.f32 0.0, %v1351
        %1353 = vmatmul.f32.gmra.mxu0 %v258
        %v1354 = vpop.f32.mrf.mxu0
        %v1355 = vadd.f32 0.0, %v1354
        %1356 = vdwg.mxu0
        %1357 = vmatpush.msra.mxu0 %v760
        %1358 = vmatpush.msra.mxu0 %v744
        %1359 = vmatpush.msra.mxu0 %v728
        %1360 = vmatpush.msra.mxu0 %v712
        %1361 = vmatpush.msra.mxu0 %v696
        %1362 = vmatpush.msra.mxu0 %v680
        %1363 = vmatpush.msra.mxu0 %v664
        %1364 = vmatpush.msra.mxu0 %v648
        %1365 = vmatpush.msra.mxu0 %v632
        %1366 = vmatpush.msra.mxu0 %v616
        %1367 = vmatpush.msra.mxu0 %v600
        %1368 = vmatpush.msra.mxu0 %v584
        %1369 = vmatpush.msra.mxu0 %v568
        %1370 = vmatpush.msra.mxu0 %v552
        %1371 = vmatpush.msra.mxu0 %v536
        %1372 = vmatpush.msra.mxu0 %v520
        %1373 = vmatmul.f32.gmra.mxu0 %v229
        %v1374 = vpop.f32.mrf.mxu0
        %v1375 = vadd.f32 %v1310, %v1374
        %1376 = vmatmul.f32.gmra.mxu0 %v231
        %v1377 = vpop.f32.mrf.mxu0
        %v1378 = vadd.f32 %v1313, %v1377
        %1379 = vmatmul.f32.gmra.mxu0 %v233
        %v1380 = vpop.f32.mrf.mxu0
        %v1381 = vadd.f32 %v1316, %v1380
        %1382 = vmatmul.f32.gmra.mxu0 %v235
        %v1383 = vpop.f32.mrf.mxu0
        %v1384 = vadd.f32 %v1319, %v1383
        %1385 = vmatmul.f32.gmra.mxu0 %v237
        %v1386 = vpop.f32.mrf.mxu0
        %v1387 = vadd.f32 %v1322, %v1386
        %1388 = vmatmul.f32.gmra.mxu0 %v239
        %v1389 = vpop.f32.mrf.mxu0
        %v1390 = vadd.f32 %v1325, %v1389
        %1391 = vmatmul.f32.gmra.mxu0 %v241
        %v1392 = vpop.f32.mrf.mxu0
        %v1393 = vadd.f32 %v1328, %v1392
        %1394 = vmatmul.f32.gmra.mxu0 %v243
        %v1395 = vpop.f32.mrf.mxu0
        %v1396 = vadd.f32 %v1331, %v1395
        %1397 = vmatmul.f32.gmra.mxu0 %v245
        %v1398 = vpop.f32.mrf.mxu0
        %v1399 = vadd.f32 %v1334, %v1398
        %1400 = vmatmul.f32.gmra.mxu0 %v247
        %v1401 = vpop.f32.mrf.mxu0
        %v1402 = vadd.f32 %v1337, %v1401
        %1403 = vmatmul.f32.gmra.mxu0 %v249
        %v1404 = vpop.f32.mrf.mxu0
        %v1405 = vadd.f32 %v1340, %v1404
        %1406 = vmatmul.f32.gmra.mxu0 %v251
        %v1407 = vpop.f32.mrf.mxu0
        %v1408 = vadd.f32 %v1343, %v1407
        %1409 = vmatmul.f32.gmra.mxu0 %v253
        %v1410 = vpop.f32.mrf.mxu0
        %v1411 = vadd.f32 %v1346, %v1410
        %1412 = vmatmul.f32.gmra.mxu0 %v255
        %v1413 = vpop.f32.mrf.mxu0
        %v1414 = vadd.f32 %v1349, %v1413
        %1415 = vmatmul.f32.gmra.mxu0 %v257
        %v1416 = vpop.f32.mrf.mxu0
        %v1417 = vadd.f32 %v1352, %v1416
        %1418 = vmatmul.f32.gmra.mxu0 %v259
        %v1419 = vpop.f32.mrf.mxu0
        %v1420 = vadd.f32 %v1355, %v1419
        %1421 = vdwg.mxu0
        %1422 = vmatpush.msra.mxu0 %v505
        %1423 = vmatpush.msra.mxu0 %v489
        %1424 = vmatpush.msra.mxu0 %v473
        %1425 = vmatpush.msra.mxu0 %v457
        %1426 = vmatpush.msra.mxu0 %v441
        %1427 = vmatpush.msra.mxu0 %v425
        %1428 = vmatpush.msra.mxu0 %v409
        %1429 = vmatpush.msra.mxu0 %v393
        %1430 = vmatpush.msra.mxu0 %v377
        %1431 = vmatpush.msra.mxu0 %v361
        %1432 = vmatpush.msra.mxu0 %v345
        %1433 = vmatpush.msra.mxu0 %v329
        %1434 = vmatpush.msra.mxu0 %v313
        %1435 = vmatpush.msra.mxu0 %v297
        %1436 = vmatpush.msra.mxu0 %v281
        %1437 = vmatpush.msra.mxu0 %v265
        %1438 = vmatmul.f32.gmra.mxu0 %v228
        %v1439 = vpop.f32.mrf.mxu0
        %v1440 = vadd.f32 0.0, %v1439
        %1441 = vmatmul.f32.gmra.mxu0 %v230
        %v1442 = vpop.f32.mrf.mxu0
        %v1443 = vadd.f32 0.0, %v1442
        %1444 = vmatmul.f32.gmra.mxu0 %v232
        %v1445 = vpop.f32.mrf.mxu0
        %v1446 = vadd.f32 0.0, %v1445
        %1447 = vmatmul.f32.gmra.mxu0 %v234
        %v1448 = vpop.f32.mrf.mxu0
        %v1449 = vadd.f32 0.0, %v1448
        %1450 = vmatmul.f32.gmra.mxu0 %v236
        %v1451 = vpop.f32.mrf.mxu0
        %v1452 = vadd.f32 0.0, %v1451
        %1453 = vmatmul.f32.gmra.mxu0 %v238
        %v1454 = vpop.f32.mrf.mxu0
        %v1455 = vadd.f32 0.0, %v1454
        %1456 = vmatmul.f32.gmra.mxu0 %v240
        %v1457 = vpop.f32.mrf.mxu0
        %v1458 = vadd.f32 0.0, %v1457
        %1459 = vmatmul.f32.gmra.mxu0 %v242
        %v1460 = vpop.f32.mrf.mxu0
        %v1461 = vadd.f32 0.0, %v1460
        %1462 = vmatmul.f32.gmra.mxu0 %v244
        %v1463 = vpop.f32.mrf.mxu0
        %v1464 = vadd.f32 0.0, %v1463
        %1465 = vmatmul.f32.gmra.mxu0 %v246
        %v1466 = vpop.f32.mrf.mxu0
        %v1467 = vadd.f32 0.0, %v1466
        %1468 = vmatmul.f32.gmra.mxu0 %v248
        %v1469 = vpop.f32.mrf.mxu0
        %v1470 = vadd.f32 0.0, %v1469
        %1471 = vmatmul.f32.gmra.mxu0 %v250
        %v1472 = vpop.f32.mrf.mxu0
        %v1473 = vadd.f32 0.0, %v1472
        %1474 = vmatmul.f32.gmra.mxu0 %v252
        %v1475 = vpop.f32.mrf.mxu0
        %v1476 = vadd.f32 0.0, %v1475
        %1477 = vmatmul.f32.gmra.mxu0 %v254
        %v1478 = vpop.f32.mrf.mxu0
        %v1479 = vadd.f32 0.0, %v1478
        %1480 = vmatmul.f32.gmra.mxu0 %v256
        %v1481 = vpop.f32.mrf.mxu0
        %v1482 = vadd.f32 0.0, %v1481
        %1483 = vmatmul.f32.gmra.mxu0 %v258
        %v1484 = vpop.f32.mrf.mxu0
        %v1485 = vadd.f32 0.0, %v1484
        %1486 = vdwg.mxu0
        %1487 = vmatpush.msra.mxu0 %v761
        %1488 = vmatpush.msra.mxu0 %v745
        %1489 = vmatpush.msra.mxu0 %v729
        %1490 = vmatpush.msra.mxu0 %v713
        %1491 = vmatpush.msra.mxu0 %v697
        %1492 = vmatpush.msra.mxu0 %v681
        %1493 = vmatpush.msra.mxu0 %v665
        %1494 = vmatpush.msra.mxu0 %v649
        %1495 = vmatpush.msra.mxu0 %v633
        %1496 = vmatpush.msra.mxu0 %v617
        %1497 = vmatpush.msra.mxu0 %v601
        %1498 = vmatpush.msra.mxu0 %v585
        %1499 = vmatpush.msra.mxu0 %v569
        %1500 = vmatpush.msra.mxu0 %v553
        %1501 = vmatpush.msra.mxu0 %v537
        %1502 = vmatpush.msra.mxu0 %v521
        %1503 = vmatmul.f32.gmra.mxu0 %v229
        %v1504 = vpop.f32.mrf.mxu0
        %v1505 = vadd.f32 %v1440, %v1504
        %1506 = vmatmul.f32.gmra.mxu0 %v231
        %v1507 = vpop.f32.mrf.mxu0
        %v1508 = vadd.f32 %v1443, %v1507
        %1509 = vmatmul.f32.gmra.mxu0 %v233
        %v1510 = vpop.f32.mrf.mxu0
        %v1511 = vadd.f32 %v1446, %v1510
        %1512 = vmatmul.f32.gmra.mxu0 %v235
        %v1513 = vpop.f32.mrf.mxu0
        %v1514 = vadd.f32 %v1449, %v1513
        %1515 = vmatmul.f32.gmra.mxu0 %v237
        %v1516 = vpop.f32.mrf.mxu0
        %v1517 = vadd.f32 %v1452, %v1516
        %1518 = vmatmul.f32.gmra.mxu0 %v239
        %v1519 = vpop.f32.mrf.mxu0
        %v1520 = vadd.f32 %v1455, %v1519
        %1521 = vmatmul.f32.gmra.mxu0 %v241
        %v1522 = vpop.f32.mrf.mxu0
        %v1523 = vadd.f32 %v1458, %v1522
        %1524 = vmatmul.f32.gmra.mxu0 %v243
        %v1525 = vpop.f32.mrf.mxu0
        %v1526 = vadd.f32 %v1461, %v1525
        %1527 = vmatmul.f32.gmra.mxu0 %v245
        %v1528 = vpop.f32.mrf.mxu0
        %v1529 = vadd.f32 %v1464, %v1528
        %1530 = vmatmul.f32.gmra.mxu0 %v247
        %v1531 = vpop.f32.mrf.mxu0
        %v1532 = vadd.f32 %v1467, %v1531
        %1533 = vmatmul.f32.gmra.mxu0 %v249
        %v1534 = vpop.f32.mrf.mxu0
        %v1535 = vadd.f32 %v1470, %v1534
        %1536 = vmatmul.f32.gmra.mxu0 %v251
        %v1537 = vpop.f32.mrf.mxu0
        %v1538 = vadd.f32 %v1473, %v1537
        %1539 = vmatmul.f32.gmra.mxu0 %v253
        %v1540 = vpop.f32.mrf.mxu0
        %v1541 = vadd.f32 %v1476, %v1540
        %1542 = vmatmul.f32.gmra.mxu0 %v255
        %v1543 = vpop.f32.mrf.mxu0
        %v1544 = vadd.f32 %v1479, %v1543
        %1545 = vmatmul.f32.gmra.mxu0 %v257
        %v1546 = vpop.f32.mrf.mxu0
        %v1547 = vadd.f32 %v1482, %v1546
        %1548 = vmatmul.f32.gmra.mxu0 %v259
        %v1549 = vpop.f32.mrf.mxu0
        %v1550 = vadd.f32 %v1485, %v1549
        %1551 = vdwg.mxu0
        %1552 = vmatpush.msra.mxu0 %v506
        %1553 = vmatpush.msra.mxu0 %v490
        %1554 = vmatpush.msra.mxu0 %v474
        %1555 = vmatpush.msra.mxu0 %v458
        %1556 = vmatpush.msra.mxu0 %v442
        %1557 = vmatpush.msra.mxu0 %v426
        %1558 = vmatpush.msra.mxu0 %v410
        %1559 = vmatpush.msra.mxu0 %v394
        %1560 = vmatpush.msra.mxu0 %v378
        %1561 = vmatpush.msra.mxu0 %v362
        %1562 = vmatpush.msra.mxu0 %v346
        %1563 = vmatpush.msra.mxu0 %v330
        %1564 = vmatpush.msra.mxu0 %v314
        %1565 = vmatpush.msra.mxu0 %v298
        %1566 = vmatpush.msra.mxu0 %v282
        %1567 = vmatpush.msra.mxu0 %v266
        %1568 = vmatmul.f32.gmra.mxu0 %v228
        %v1569 = vpop.f32.mrf.mxu0
        %v1570 = vadd.f32 0.0, %v1569
        %1571 = vmatmul.f32.gmra.mxu0 %v230
        %v1572 = vpop.f32.mrf.mxu0
        %v1573 = vadd.f32 0.0, %v1572
        %1574 = vmatmul.f32.gmra.mxu0 %v232
        %v1575 = vpop.f32.mrf.mxu0
        %v1576 = vadd.f32 0.0, %v1575
        %1577 = vmatmul.f32.gmra.mxu0 %v234
        %v1578 = vpop.f32.mrf.mxu0
        %v1579 = vadd.f32 0.0, %v1578
        %1580 = vmatmul.f32.gmra.mxu0 %v236
        %v1581 = vpop.f32.mrf.mxu0
        %v1582 = vadd.f32 0.0, %v1581
        %1583 = vmatmul.f32.gmra.mxu0 %v238
        %v1584 = vpop.f32.mrf.mxu0
        %v1585 = vadd.f32 0.0, %v1584
        %1586 = vmatmul.f32.gmra.mxu0 %v240
        %v1587 = vpop.f32.mrf.mxu0
        %v1588 = vadd.f32 0.0, %v1587
        %1589 = vmatmul.f32.gmra.mxu0 %v242
        %v1590 = vpop.f32.mrf.mxu0
        %v1591 = vadd.f32 0.0, %v1590
        %1592 = vmatmul.f32.gmra.mxu0 %v244
        %v1593 = vpop.f32.mrf.mxu0
        %v1594 = vadd.f32 0.0, %v1593
        %1595 = vmatmul.f32.gmra.mxu0 %v246
        %v1596 = vpop.f32.mrf.mxu0
        %v1597 = vadd.f32 0.0, %v1596
        %1598 = vmatmul.f32.gmra.mxu0 %v248
        %v1599 = vpop.f32.mrf.mxu0
        %v1600 = vadd.f32 0.0, %v1599
        %1601 = vmatmul.f32.gmra.mxu0 %v250
        %v1602 = vpop.f32.mrf.mxu0
        %v1603 = vadd.f32 0.0, %v1602
        %1604 = vmatmul.f32.gmra.mxu0 %v252
        %v1605 = vpop.f32.mrf.mxu0
        %v1606 = vadd.f32 0.0, %v1605
        %1607 = vmatmul.f32.gmra.mxu0 %v254
        %v1608 = vpop.f32.mrf.mxu0
        %v1609 = vadd.f32 0.0, %v1608
        %1610 = vmatmul.f32.gmra.mxu0 %v256
        %v1611 = vpop.f32.mrf.mxu0
        %v1612 = vadd.f32 0.0, %v1611
        %1613 = vmatmul.f32.gmra.mxu0 %v258
        %v1614 = vpop.f32.mrf.mxu0
        %v1615 = vadd.f32 0.0, %v1614
        %1616 = vdwg.mxu0
        %1617 = vmatpush.msra.mxu0 %v762
        %1618 = vmatpush.msra.mxu0 %v746
        %1619 = vmatpush.msra.mxu0 %v730
        %1620 = vmatpush.msra.mxu0 %v714
        %1621 = vmatpush.msra.mxu0 %v698
        %1622 = vmatpush.msra.mxu0 %v682
        %1623 = vmatpush.msra.mxu0 %v666
        %1624 = vmatpush.msra.mxu0 %v650
        %1625 = vmatpush.msra.mxu0 %v634
        %1626 = vmatpush.msra.mxu0 %v618
        %1627 = vmatpush.msra.mxu0 %v602
        %1628 = vmatpush.msra.mxu0 %v586
        %1629 = vmatpush.msra.mxu0 %v570
        %1630 = vmatpush.msra.mxu0 %v554
        %1631 = vmatpush.msra.mxu0 %v538
        %1632 = vmatpush.msra.mxu0 %v522
        %1633 = vmatmul.f32.gmra.mxu0 %v229
        %v1634 = vpop.f32.mrf.mxu0
        %v1635 = vadd.f32 %v1570, %v1634
        %1636 = vmatmul.f32.gmra.mxu0 %v231
        %v1637 = vpop.f32.mrf.mxu0
        %v1638 = vadd.f32 %v1573, %v1637
        %1639 = vmatmul.f32.gmra.mxu0 %v233
        %v1640 = vpop.f32.mrf.mxu0
        %v1641 = vadd.f32 %v1576, %v1640
        %1642 = vmatmul.f32.gmra.mxu0 %v235
        %v1643 = vpop.f32.mrf.mxu0
        %v1644 = vadd.f32 %v1579, %v1643
        %1645 = vmatmul.f32.gmra.mxu0 %v237
        %v1646 = vpop.f32.mrf.mxu0
        %v1647 = vadd.f32 %v1582, %v1646
        %1648 = vmatmul.f32.gmra.mxu0 %v239
        %v1649 = vpop.f32.mrf.mxu0
        %v1650 = vadd.f32 %v1585, %v1649
        %1651 = vmatmul.f32.gmra.mxu0 %v241
        %v1652 = vpop.f32.mrf.mxu0
        %v1653 = vadd.f32 %v1588, %v1652
        %1654 = vmatmul.f32.gmra.mxu0 %v243
        %v1655 = vpop.f32.mrf.mxu0
        %v1656 = vadd.f32 %v1591, %v1655
        %1657 = vmatmul.f32.gmra.mxu0 %v245
        %v1658 = vpop.f32.mrf.mxu0
        %v1659 = vadd.f32 %v1594, %v1658
        %1660 = vmatmul.f32.gmra.mxu0 %v247
        %v1661 = vpop.f32.mrf.mxu0
        %v1662 = vadd.f32 %v1597, %v1661
        %1663 = vmatmul.f32.gmra.mxu0 %v249
        %v1664 = vpop.f32.mrf.mxu0
        %v1665 = vadd.f32 %v1600, %v1664
        %1666 = vmatmul.f32.gmra.mxu0 %v251
        %v1667 = vpop.f32.mrf.mxu0
        %v1668 = vadd.f32 %v1603, %v1667
        %1669 = vmatmul.f32.gmra.mxu0 %v253
        %v1670 = vpop.f32.mrf.mxu0
        %v1671 = vadd.f32 %v1606, %v1670
        %1672 = vmatmul.f32.gmra.mxu0 %v255
        %v1673 = vpop.f32.mrf.mxu0
        %v1674 = vadd.f32 %v1609, %v1673
        %1675 = vmatmul.f32.gmra.mxu0 %v257
        %v1676 = vpop.f32.mrf.mxu0
        %v1677 = vadd.f32 %v1612, %v1676
        %1678 = vmatmul.f32.gmra.mxu0 %v259
        %v1679 = vpop.f32.mrf.mxu0
        %v1680 = vadd.f32 %v1615, %v1679
        %1681 = vdwg.mxu0
        %1682 = vmatpush.msra.mxu0 %v507
        %1683 = vmatpush.msra.mxu0 %v491
        %1684 = vmatpush.msra.mxu0 %v475
        %1685 = vmatpush.msra.mxu0 %v459
        %1686 = vmatpush.msra.mxu0 %v443
        %1687 = vmatpush.msra.mxu0 %v427
        %1688 = vmatpush.msra.mxu0 %v411
        %1689 = vmatpush.msra.mxu0 %v395
        %1690 = vmatpush.msra.mxu0 %v379
        %1691 = vmatpush.msra.mxu0 %v363
        %1692 = vmatpush.msra.mxu0 %v347
        %1693 = vmatpush.msra.mxu0 %v331
        %1694 = vmatpush.msra.mxu0 %v315
        %1695 = vmatpush.msra.mxu0 %v299
        %1696 = vmatpush.msra.mxu0 %v283
        %1697 = vmatpush.msra.mxu0 %v267
        %1698 = vmatmul.f32.gmra.mxu0 %v228
        %v1699 = vpop.f32.mrf.mxu0
        %v1700 = vadd.f32 0.0, %v1699
        %1701 = vmatmul.f32.gmra.mxu0 %v230
        %v1702 = vpop.f32.mrf.mxu0
        %v1703 = vadd.f32 0.0, %v1702
        %1704 = vmatmul.f32.gmra.mxu0 %v232
        %v1705 = vpop.f32.mrf.mxu0
        %v1706 = vadd.f32 0.0, %v1705
        %1707 = vmatmul.f32.gmra.mxu0 %v234
        %v1708 = vpop.f32.mrf.mxu0
        %v1709 = vadd.f32 0.0, %v1708
        %1710 = vmatmul.f32.gmra.mxu0 %v236
        %v1711 = vpop.f32.mrf.mxu0
        %v1712 = vadd.f32 0.0, %v1711
        %1713 = vmatmul.f32.gmra.mxu0 %v238
        %v1714 = vpop.f32.mrf.mxu0
        %v1715 = vadd.f32 0.0, %v1714
        %1716 = vmatmul.f32.gmra.mxu0 %v240
        %v1717 = vpop.f32.mrf.mxu0
        %v1718 = vadd.f32 0.0, %v1717
        %1719 = vmatmul.f32.gmra.mxu0 %v242
        %v1720 = vpop.f32.mrf.mxu0
        %v1721 = vadd.f32 0.0, %v1720
        %1722 = vmatmul.f32.gmra.mxu0 %v244
        %v1723 = vpop.f32.mrf.mxu0
        %v1724 = vadd.f32 0.0, %v1723
        %1725 = vmatmul.f32.gmra.mxu0 %v246
        %v1726 = vpop.f32.mrf.mxu0
        %v1727 = vadd.f32 0.0, %v1726
        %1728 = vmatmul.f32.gmra.mxu0 %v248
        %v1729 = vpop.f32.mrf.mxu0
        %v1730 = vadd.f32 0.0, %v1729
        %1731 = vmatmul.f32.gmra.mxu0 %v250
        %v1732 = vpop.f32.mrf.mxu0
        %v1733 = vadd.f32 0.0, %v1732
        %1734 = vmatmul.f32.gmra.mxu0 %v252
        %v1735 = vpop.f32.mrf.mxu0
        %v1736 = vadd.f32 0.0, %v1735
        %1737 = vmatmul.f32.gmra.mxu0 %v254
        %v1738 = vpop.f32.mrf.mxu0
        %v1739 = vadd.f32 0.0, %v1738
        %1740 = vmatmul.f32.gmra.mxu0 %v256
        %v1741 = vpop.f32.mrf.mxu0
        %v1742 = vadd.f32 0.0, %v1741
        %1743 = vmatmul.f32.gmra.mxu0 %v258
        %v1744 = vpop.f32.mrf.mxu0
        %v1745 = vadd.f32 0.0, %v1744
        %1746 = vdwg.mxu0
        %1747 = vmatpush.msra.mxu0 %v763
        %1748 = vmatpush.msra.mxu0 %v747
        %1749 = vmatpush.msra.mxu0 %v731
        %1750 = vmatpush.msra.mxu0 %v715
        %1751 = vmatpush.msra.mxu0 %v699
        %1752 = vmatpush.msra.mxu0 %v683
        %1753 = vmatpush.msra.mxu0 %v667
        %1754 = vmatpush.msra.mxu0 %v651
        %1755 = vmatpush.msra.mxu0 %v635
        %1756 = vmatpush.msra.mxu0 %v619
        %1757 = vmatpush.msra.mxu0 %v603
        %1758 = vmatpush.msra.mxu0 %v587
        %1759 = vmatpush.msra.mxu0 %v571
        %1760 = vmatpush.msra.mxu0 %v555
        %1761 = vmatpush.msra.mxu0 %v539
        %1762 = vmatpush.msra.mxu0 %v523
        %1763 = vmatmul.f32.gmra.mxu0 %v229
        %v1764 = vpop.f32.mrf.mxu0
        %v1765 = vadd.f32 %v1700, %v1764
        %1766 = vmatmul.f32.gmra.mxu0 %v231
        %v1767 = vpop.f32.mrf.mxu0
        %v1768 = vadd.f32 %v1703, %v1767
        %1769 = vmatmul.f32.gmra.mxu0 %v233
        %v1770 = vpop.f32.mrf.mxu0
        %v1771 = vadd.f32 %v1706, %v1770
        %1772 = vmatmul.f32.gmra.mxu0 %v235
        %v1773 = vpop.f32.mrf.mxu0
        %v1774 = vadd.f32 %v1709, %v1773
        %1775 = vmatmul.f32.gmra.mxu0 %v237
        %v1776 = vpop.f32.mrf.mxu0
        %v1777 = vadd.f32 %v1712, %v1776
        %1778 = vmatmul.f32.gmra.mxu0 %v239
        %v1779 = vpop.f32.mrf.mxu0
        %v1780 = vadd.f32 %v1715, %v1779
        %1781 = vmatmul.f32.gmra.mxu0 %v241
        %v1782 = vpop.f32.mrf.mxu0
        %v1783 = vadd.f32 %v1718, %v1782
        %1784 = vmatmul.f32.gmra.mxu0 %v243
        %v1785 = vpop.f32.mrf.mxu0
        %v1786 = vadd.f32 %v1721, %v1785
        %1787 = vmatmul.f32.gmra.mxu0 %v245
        %v1788 = vpop.f32.mrf.mxu0
        %v1789 = vadd.f32 %v1724, %v1788
        %1790 = vmatmul.f32.gmra.mxu0 %v247
        %v1791 = vpop.f32.mrf.mxu0
        %v1792 = vadd.f32 %v1727, %v1791
        %1793 = vmatmul.f32.gmra.mxu0 %v249
        %v1794 = vpop.f32.mrf.mxu0
        %v1795 = vadd.f32 %v1730, %v1794
        %1796 = vmatmul.f32.gmra.mxu0 %v251
        %v1797 = vpop.f32.mrf.mxu0
        %v1798 = vadd.f32 %v1733, %v1797
        %1799 = vmatmul.f32.gmra.mxu0 %v253
        %v1800 = vpop.f32.mrf.mxu0
        %v1801 = vadd.f32 %v1736, %v1800
        %1802 = vmatmul.f32.gmra.mxu0 %v255
        %v1803 = vpop.f32.mrf.mxu0
        %v1804 = vadd.f32 %v1739, %v1803
        %1805 = vmatmul.f32.gmra.mxu0 %v257
        %v1806 = vpop.f32.mrf.mxu0
        %v1807 = vadd.f32 %v1742, %v1806
        %1808 = vmatmul.f32.gmra.mxu0 %v259
        %v1809 = vpop.f32.mrf.mxu0
        %v1810 = vadd.f32 %v1745, %v1809
        %1811 = vdwg.mxu0
        %1812 = vmatpush.msra.mxu0 %v508
        %1813 = vmatpush.msra.mxu0 %v492
        %1814 = vmatpush.msra.mxu0 %v476
        %1815 = vmatpush.msra.mxu0 %v460
        %1816 = vmatpush.msra.mxu0 %v444
        %1817 = vmatpush.msra.mxu0 %v428
        %1818 = vmatpush.msra.mxu0 %v412
        %1819 = vmatpush.msra.mxu0 %v396
        %1820 = vmatpush.msra.mxu0 %v380
        %1821 = vmatpush.msra.mxu0 %v364
        %1822 = vmatpush.msra.mxu0 %v348
        %1823 = vmatpush.msra.mxu0 %v332
        %1824 = vmatpush.msra.mxu0 %v316
        %1825 = vmatpush.msra.mxu0 %v300
        %1826 = vmatpush.msra.mxu0 %v284
        %1827 = vmatpush.msra.mxu0 %v268
        %1828 = vmatmul.f32.gmra.mxu0 %v228
        %v1829 = vpop.f32.mrf.mxu0
        %v1830 = vadd.f32 0.0, %v1829
        %1831 = vmatmul.f32.gmra.mxu0 %v230
        %v1832 = vpop.f32.mrf.mxu0
        %v1833 = vadd.f32 0.0, %v1832
        %1834 = vmatmul.f32.gmra.mxu0 %v232
        %v1835 = vpop.f32.mrf.mxu0
        %v1836 = vadd.f32 0.0, %v1835
        %1837 = vmatmul.f32.gmra.mxu0 %v234
        %v1838 = vpop.f32.mrf.mxu0
        %v1839 = vadd.f32 0.0, %v1838
        %1840 = vmatmul.f32.gmra.mxu0 %v236
        %v1841 = vpop.f32.mrf.mxu0
        %v1842 = vadd.f32 0.0, %v1841
        %1843 = vmatmul.f32.gmra.mxu0 %v238
        %v1844 = vpop.f32.mrf.mxu0
        %v1845 = vadd.f32 0.0, %v1844
        %1846 = vmatmul.f32.gmra.mxu0 %v240
        %v1847 = vpop.f32.mrf.mxu0
        %v1848 = vadd.f32 0.0, %v1847
        %1849 = vmatmul.f32.gmra.mxu0 %v242
        %v1850 = vpop.f32.mrf.mxu0
        %v1851 = vadd.f32 0.0, %v1850
        %1852 = vmatmul.f32.gmra.mxu0 %v244
        %v1853 = vpop.f32.mrf.mxu0
        %v1854 = vadd.f32 0.0, %v1853
        %1855 = vmatmul.f32.gmra.mxu0 %v246
        %v1856 = vpop.f32.mrf.mxu0
        %v1857 = vadd.f32 0.0, %v1856
        %1858 = vmatmul.f32.gmra.mxu0 %v248
        %v1859 = vpop.f32.mrf.mxu0
        %v1860 = vadd.f32 0.0, %v1859
        %1861 = vmatmul.f32.gmra.mxu0 %v250
        %v1862 = vpop.f32.mrf.mxu0
        %v1863 = vadd.f32 0.0, %v1862
        %1864 = vmatmul.f32.gmra.mxu0 %v252
        %v1865 = vpop.f32.mrf.mxu0
        %v1866 = vadd.f32 0.0, %v1865
        %1867 = vmatmul.f32.gmra.mxu0 %v254
        %v1868 = vpop.f32.mrf.mxu0
        %v1869 = vadd.f32 0.0, %v1868
        %1870 = vmatmul.f32.gmra.mxu0 %v256
        %v1871 = vpop.f32.mrf.mxu0
        %v1872 = vadd.f32 0.0, %v1871
        %1873 = vmatmul.f32.gmra.mxu0 %v258
        %v1874 = vpop.f32.mrf.mxu0
        %v1875 = vadd.f32 0.0, %v1874
        %1876 = vdwg.mxu0
        %1877 = vmatpush.msra.mxu0 %v764
        %1878 = vmatpush.msra.mxu0 %v748
        %1879 = vmatpush.msra.mxu0 %v732
        %1880 = vmatpush.msra.mxu0 %v716
        %1881 = vmatpush.msra.mxu0 %v700
        %1882 = vmatpush.msra.mxu0 %v684
        %1883 = vmatpush.msra.mxu0 %v668
        %1884 = vmatpush.msra.mxu0 %v652
        %1885 = vmatpush.msra.mxu0 %v636
        %1886 = vmatpush.msra.mxu0 %v620
        %1887 = vmatpush.msra.mxu0 %v604
        %1888 = vmatpush.msra.mxu0 %v588
        %1889 = vmatpush.msra.mxu0 %v572
        %1890 = vmatpush.msra.mxu0 %v556
        %1891 = vmatpush.msra.mxu0 %v540
        %1892 = vmatpush.msra.mxu0 %v524
        %1893 = vmatmul.f32.gmra.mxu0 %v229
        %v1894 = vpop.f32.mrf.mxu0
        %v1895 = vadd.f32 %v1830, %v1894
        %1896 = vmatmul.f32.gmra.mxu0 %v231
        %v1897 = vpop.f32.mrf.mxu0
        %v1898 = vadd.f32 %v1833, %v1897
        %1899 = vmatmul.f32.gmra.mxu0 %v233
        %v1900 = vpop.f32.mrf.mxu0
        %v1901 = vadd.f32 %v1836, %v1900
        %1902 = vmatmul.f32.gmra.mxu0 %v235
        %v1903 = vpop.f32.mrf.mxu0
        %v1904 = vadd.f32 %v1839, %v1903
        %1905 = vmatmul.f32.gmra.mxu0 %v237
        %v1906 = vpop.f32.mrf.mxu0
        %v1907 = vadd.f32 %v1842, %v1906
        %1908 = vmatmul.f32.gmra.mxu0 %v239
        %v1909 = vpop.f32.mrf.mxu0
        %v1910 = vadd.f32 %v1845, %v1909
        %1911 = vmatmul.f32.gmra.mxu0 %v241
        %v1912 = vpop.f32.mrf.mxu0
        %v1913 = vadd.f32 %v1848, %v1912
        %1914 = vmatmul.f32.gmra.mxu0 %v243
        %v1915 = vpop.f32.mrf.mxu0
        %v1916 = vadd.f32 %v1851, %v1915
        %1917 = vmatmul.f32.gmra.mxu0 %v245
        %v1918 = vpop.f32.mrf.mxu0
        %v1919 = vadd.f32 %v1854, %v1918
        %1920 = vmatmul.f32.gmra.mxu0 %v247
        %v1921 = vpop.f32.mrf.mxu0
        %v1922 = vadd.f32 %v1857, %v1921
        %1923 = vmatmul.f32.gmra.mxu0 %v249
        %v1924 = vpop.f32.mrf.mxu0
        %v1925 = vadd.f32 %v1860, %v1924
        %1926 = vmatmul.f32.gmra.mxu0 %v251
        %v1927 = vpop.f32.mrf.mxu0
        %v1928 = vadd.f32 %v1863, %v1927
        %1929 = vmatmul.f32.gmra.mxu0 %v253
        %v1930 = vpop.f32.mrf.mxu0
        %v1931 = vadd.f32 %v1866, %v1930
        %1932 = vmatmul.f32.gmra.mxu0 %v255
        %v1933 = vpop.f32.mrf.mxu0
        %v1934 = vadd.f32 %v1869, %v1933
        %1935 = vmatmul.f32.gmra.mxu0 %v257
        %v1936 = vpop.f32.mrf.mxu0
        %v1937 = vadd.f32 %v1872, %v1936
        %1938 = vmatmul.f32.gmra.mxu0 %v259
        %v1939 = vpop.f32.mrf.mxu0
        %v1940 = vadd.f32 %v1875, %v1939
        %1941 = vdwg.mxu0
        %1942 = vmatpush.msra.mxu0 %v509
        %1943 = vmatpush.msra.mxu0 %v493
        %1944 = vmatpush.msra.mxu0 %v477
        %1945 = vmatpush.msra.mxu0 %v461
        %1946 = vmatpush.msra.mxu0 %v445
        %1947 = vmatpush.msra.mxu0 %v429
        %1948 = vmatpush.msra.mxu0 %v413
        %1949 = vmatpush.msra.mxu0 %v397
        %1950 = vmatpush.msra.mxu0 %v381
        %1951 = vmatpush.msra.mxu0 %v365
        %1952 = vmatpush.msra.mxu0 %v349
        %1953 = vmatpush.msra.mxu0 %v333
        %1954 = vmatpush.msra.mxu0 %v317
        %1955 = vmatpush.msra.mxu0 %v301
        %1956 = vmatpush.msra.mxu0 %v285
        %1957 = vmatpush.msra.mxu0 %v269
        %1958 = vmatmul.f32.gmra.mxu0 %v228
        %v1959 = vpop.f32.mrf.mxu0
        %v1960 = vadd.f32 0.0, %v1959
        %1961 = vmatmul.f32.gmra.mxu0 %v230
        %v1962 = vpop.f32.mrf.mxu0
        %v1963 = vadd.f32 0.0, %v1962
        %1964 = vmatmul.f32.gmra.mxu0 %v232
        %v1965 = vpop.f32.mrf.mxu0
        %v1966 = vadd.f32 0.0, %v1965
        %1967 = vmatmul.f32.gmra.mxu0 %v234
        %v1968 = vpop.f32.mrf.mxu0
        %v1969 = vadd.f32 0.0, %v1968
        %1970 = vmatmul.f32.gmra.mxu0 %v236
        %v1971 = vpop.f32.mrf.mxu0
        %v1972 = vadd.f32 0.0, %v1971
        %1973 = vmatmul.f32.gmra.mxu0 %v238
        %v1974 = vpop.f32.mrf.mxu0
        %v1975 = vadd.f32 0.0, %v1974
        %1976 = vmatmul.f32.gmra.mxu0 %v240
        %v1977 = vpop.f32.mrf.mxu0
        %v1978 = vadd.f32 0.0, %v1977
        %1979 = vmatmul.f32.gmra.mxu0 %v242
        %v1980 = vpop.f32.mrf.mxu0
        %v1981 = vadd.f32 0.0, %v1980
        %1982 = vmatmul.f32.gmra.mxu0 %v244
        %v1983 = vpop.f32.mrf.mxu0
        %v1984 = vadd.f32 0.0, %v1983
        %1985 = vmatmul.f32.gmra.mxu0 %v246
        %v1986 = vpop.f32.mrf.mxu0
        %v1987 = vadd.f32 0.0, %v1986
        %1988 = vmatmul.f32.gmra.mxu0 %v248
        %v1989 = vpop.f32.mrf.mxu0
        %v1990 = vadd.f32 0.0, %v1989
        %1991 = vmatmul.f32.gmra.mxu0 %v250
        %v1992 = vpop.f32.mrf.mxu0
        %v1993 = vadd.f32 0.0, %v1992
        %1994 = vmatmul.f32.gmra.mxu0 %v252
        %v1995 = vpop.f32.mrf.mxu0
        %v1996 = vadd.f32 0.0, %v1995
        %1997 = vmatmul.f32.gmra.mxu0 %v254
        %v1998 = vpop.f32.mrf.mxu0
        %v1999 = vadd.f32 0.0, %v1998
        %2000 = vmatmul.f32.gmra.mxu0 %v256
        %v2001 = vpop.f32.mrf.mxu0
        %v2002 = vadd.f32 0.0, %v2001
        %2003 = vmatmul.f32.gmra.mxu0 %v258
        %v2004 = vpop.f32.mrf.mxu0
        %v2005 = vadd.f32 0.0, %v2004
        %2006 = vdwg.mxu0
        %2007 = vmatpush.msra.mxu0 %v765
        %2008 = vmatpush.msra.mxu0 %v749
        %2009 = vmatpush.msra.mxu0 %v733
        %2010 = vmatpush.msra.mxu0 %v717
        %2011 = vmatpush.msra.mxu0 %v701
        %2012 = vmatpush.msra.mxu0 %v685
        %2013 = vmatpush.msra.mxu0 %v669
        %2014 = vmatpush.msra.mxu0 %v653
        %2015 = vmatpush.msra.mxu0 %v637
        %2016 = vmatpush.msra.mxu0 %v621
        %2017 = vmatpush.msra.mxu0 %v605
        %2018 = vmatpush.msra.mxu0 %v589
        %2019 = vmatpush.msra.mxu0 %v573
        %2020 = vmatpush.msra.mxu0 %v557
        %2021 = vmatpush.msra.mxu0 %v541
        %2022 = vmatpush.msra.mxu0 %v525
        %2023 = vmatmul.f32.gmra.mxu0 %v229
        %v2024 = vpop.f32.mrf.mxu0
        %v2025 = vadd.f32 %v1960, %v2024
        %2026 = vmatmul.f32.gmra.mxu0 %v231
        %v2027 = vpop.f32.mrf.mxu0
        %v2028 = vadd.f32 %v1963, %v2027
        %2029 = vmatmul.f32.gmra.mxu0 %v233
        %v2030 = vpop.f32.mrf.mxu0
        %v2031 = vadd.f32 %v1966, %v2030
        %2032 = vmatmul.f32.gmra.mxu0 %v235
        %v2033 = vpop.f32.mrf.mxu0
        %v2034 = vadd.f32 %v1969, %v2033
        %2035 = vmatmul.f32.gmra.mxu0 %v237
        %v2036 = vpop.f32.mrf.mxu0
        %v2037 = vadd.f32 %v1972, %v2036
        %2038 = vmatmul.f32.gmra.mxu0 %v239
        %v2039 = vpop.f32.mrf.mxu0
        %v2040 = vadd.f32 %v1975, %v2039
        %2041 = vmatmul.f32.gmra.mxu0 %v241
        %v2042 = vpop.f32.mrf.mxu0
        %v2043 = vadd.f32 %v1978, %v2042
        %2044 = vmatmul.f32.gmra.mxu0 %v243
        %v2045 = vpop.f32.mrf.mxu0
        %v2046 = vadd.f32 %v1981, %v2045
        %2047 = vmatmul.f32.gmra.mxu0 %v245
        %v2048 = vpop.f32.mrf.mxu0
        %v2049 = vadd.f32 %v1984, %v2048
        %2050 = vmatmul.f32.gmra.mxu0 %v247
        %v2051 = vpop.f32.mrf.mxu0
        %v2052 = vadd.f32 %v1987, %v2051
        %2053 = vmatmul.f32.gmra.mxu0 %v249
        %v2054 = vpop.f32.mrf.mxu0
        %v2055 = vadd.f32 %v1990, %v2054
        %2056 = vmatmul.f32.gmra.mxu0 %v251
        %v2057 = vpop.f32.mrf.mxu0
        %v2058 = vadd.f32 %v1993, %v2057
        %2059 = vmatmul.f32.gmra.mxu0 %v253
        %v2060 = vpop.f32.mrf.mxu0
        %v2061 = vadd.f32 %v1996, %v2060
        %2062 = vmatmul.f32.gmra.mxu0 %v255
        %v2063 = vpop.f32.mrf.mxu0
        %v2064 = vadd.f32 %v1999, %v2063
        %2065 = vmatmul.f32.gmra.mxu0 %v257
        %v2066 = vpop.f32.mrf.mxu0
        %v2067 = vadd.f32 %v2002, %v2066
        %2068 = vmatmul.f32.gmra.mxu0 %v259
        %v2069 = vpop.f32.mrf.mxu0
        %v2070 = vadd.f32 %v2005, %v2069
        %2071 = vdwg.mxu0
        %2072 = vmatpush.msra.mxu0 %v510
        %2073 = vmatpush.msra.mxu0 %v494
        %2074 = vmatpush.msra.mxu0 %v478
        %2075 = vmatpush.msra.mxu0 %v462
        %2076 = vmatpush.msra.mxu0 %v446
        %2077 = vmatpush.msra.mxu0 %v430
        %2078 = vmatpush.msra.mxu0 %v414
        %2079 = vmatpush.msra.mxu0 %v398
        %2080 = vmatpush.msra.mxu0 %v382
        %2081 = vmatpush.msra.mxu0 %v366
        %2082 = vmatpush.msra.mxu0 %v350
        %2083 = vmatpush.msra.mxu0 %v334
        %2084 = vmatpush.msra.mxu0 %v318
        %2085 = vmatpush.msra.mxu0 %v302
        %2086 = vmatpush.msra.mxu0 %v286
        %2087 = vmatpush.msra.mxu0 %v270
        %2088 = vmatmul.f32.gmra.mxu0 %v228
        %v2089 = vpop.f32.mrf.mxu0
        %v2090 = vadd.f32 0.0, %v2089
        %2091 = vmatmul.f32.gmra.mxu0 %v230
        %v2092 = vpop.f32.mrf.mxu0
        %v2093 = vadd.f32 0.0, %v2092
        %2094 = vmatmul.f32.gmra.mxu0 %v232
        %v2095 = vpop.f32.mrf.mxu0
        %v2096 = vadd.f32 0.0, %v2095
        %2097 = vmatmul.f32.gmra.mxu0 %v234
        %v2098 = vpop.f32.mrf.mxu0
        %v2099 = vadd.f32 0.0, %v2098
        %2100 = vmatmul.f32.gmra.mxu0 %v236
        %v2101 = vpop.f32.mrf.mxu0
        %v2102 = vadd.f32 0.0, %v2101
        %2103 = vmatmul.f32.gmra.mxu0 %v238
        %v2104 = vpop.f32.mrf.mxu0
        %v2105 = vadd.f32 0.0, %v2104
        %2106 = vmatmul.f32.gmra.mxu0 %v240
        %v2107 = vpop.f32.mrf.mxu0
        %v2108 = vadd.f32 0.0, %v2107
        %2109 = vmatmul.f32.gmra.mxu0 %v242
        %v2110 = vpop.f32.mrf.mxu0
        %v2111 = vadd.f32 0.0, %v2110
        %2112 = vmatmul.f32.gmra.mxu0 %v244
        %v2113 = vpop.f32.mrf.mxu0
        %v2114 = vadd.f32 0.0, %v2113
        %2115 = vmatmul.f32.gmra.mxu0 %v246
        %v2116 = vpop.f32.mrf.mxu0
        %v2117 = vadd.f32 0.0, %v2116
        %2118 = vmatmul.f32.gmra.mxu0 %v248
        %v2119 = vpop.f32.mrf.mxu0
        %v2120 = vadd.f32 0.0, %v2119
        %2121 = vmatmul.f32.gmra.mxu0 %v250
        %v2122 = vpop.f32.mrf.mxu0
        %v2123 = vadd.f32 0.0, %v2122
        %2124 = vmatmul.f32.gmra.mxu0 %v252
        %v2125 = vpop.f32.mrf.mxu0
        %v2126 = vadd.f32 0.0, %v2125
        %2127 = vmatmul.f32.gmra.mxu0 %v254
        %v2128 = vpop.f32.mrf.mxu0
        %v2129 = vadd.f32 0.0, %v2128
        %2130 = vmatmul.f32.gmra.mxu0 %v256
        %v2131 = vpop.f32.mrf.mxu0
        %v2132 = vadd.f32 0.0, %v2131
        %2133 = vmatmul.f32.gmra.mxu0 %v258
        %v2134 = vpop.f32.mrf.mxu0
        %v2135 = vadd.f32 0.0, %v2134
        %2136 = vdwg.mxu0
        %2137 = vmatpush.msra.mxu0 %v766
        %2138 = vmatpush.msra.mxu0 %v750
        %2139 = vmatpush.msra.mxu0 %v734
        %2140 = vmatpush.msra.mxu0 %v718
        %2141 = vmatpush.msra.mxu0 %v702
        %2142 = vmatpush.msra.mxu0 %v686
        %2143 = vmatpush.msra.mxu0 %v670
        %2144 = vmatpush.msra.mxu0 %v654
        %2145 = vmatpush.msra.mxu0 %v638
        %2146 = vmatpush.msra.mxu0 %v622
        %2147 = vmatpush.msra.mxu0 %v606
        %2148 = vmatpush.msra.mxu0 %v590
        %2149 = vmatpush.msra.mxu0 %v574
        %2150 = vmatpush.msra.mxu0 %v558
        %2151 = vmatpush.msra.mxu0 %v542
        %2152 = vmatpush.msra.mxu0 %v526
        %2153 = vmatmul.f32.gmra.mxu0 %v229
        %v2154 = vpop.f32.mrf.mxu0
        %v2155 = vadd.f32 %v2090, %v2154
        %2156 = vmatmul.f32.gmra.mxu0 %v231
        %v2157 = vpop.f32.mrf.mxu0
        %v2158 = vadd.f32 %v2093, %v2157
        %2159 = vmatmul.f32.gmra.mxu0 %v233
        %v2160 = vpop.f32.mrf.mxu0
        %v2161 = vadd.f32 %v2096, %v2160
        %2162 = vmatmul.f32.gmra.mxu0 %v235
        %v2163 = vpop.f32.mrf.mxu0
        %v2164 = vadd.f32 %v2099, %v2163
        %2165 = vmatmul.f32.gmra.mxu0 %v237
        %v2166 = vpop.f32.mrf.mxu0
        %v2167 = vadd.f32 %v2102, %v2166
        %2168 = vmatmul.f32.gmra.mxu0 %v239
        %v2169 = vpop.f32.mrf.mxu0
        %v2170 = vadd.f32 %v2105, %v2169
        %2171 = vmatmul.f32.gmra.mxu0 %v241
        %v2172 = vpop.f32.mrf.mxu0
        %v2173 = vadd.f32 %v2108, %v2172
        %2174 = vmatmul.f32.gmra.mxu0 %v243
        %v2175 = vpop.f32.mrf.mxu0
        %v2176 = vadd.f32 %v2111, %v2175
        %2177 = vmatmul.f32.gmra.mxu0 %v245
        %v2178 = vpop.f32.mrf.mxu0
        %v2179 = vadd.f32 %v2114, %v2178
        %2180 = vmatmul.f32.gmra.mxu0 %v247
        %v2181 = vpop.f32.mrf.mxu0
        %v2182 = vadd.f32 %v2117, %v2181
        %2183 = vmatmul.f32.gmra.mxu0 %v249
        %v2184 = vpop.f32.mrf.mxu0
        %v2185 = vadd.f32 %v2120, %v2184
        %2186 = vmatmul.f32.gmra.mxu0 %v251
        %v2187 = vpop.f32.mrf.mxu0
        %v2188 = vadd.f32 %v2123, %v2187
        %2189 = vmatmul.f32.gmra.mxu0 %v253
        %v2190 = vpop.f32.mrf.mxu0
        %v2191 = vadd.f32 %v2126, %v2190
        %2192 = vmatmul.f32.gmra.mxu0 %v255
        %v2193 = vpop.f32.mrf.mxu0
        %v2194 = vadd.f32 %v2129, %v2193
        %2195 = vmatmul.f32.gmra.mxu0 %v257
        %v2196 = vpop.f32.mrf.mxu0
        %v2197 = vadd.f32 %v2132, %v2196
        %2198 = vmatmul.f32.gmra.mxu0 %v259
        %v2199 = vpop.f32.mrf.mxu0
        %v2200 = vadd.f32 %v2135, %v2199
        %2201 = vdwg.mxu0
        %2202 = vmatpush.msra.mxu0 %v511
        %2203 = vmatpush.msra.mxu0 %v495
        %2204 = vmatpush.msra.mxu0 %v479
        %2205 = vmatpush.msra.mxu0 %v463
        %2206 = vmatpush.msra.mxu0 %v447
        %2207 = vmatpush.msra.mxu0 %v431
        %2208 = vmatpush.msra.mxu0 %v415
        %2209 = vmatpush.msra.mxu0 %v399
        %2210 = vmatpush.msra.mxu0 %v383
        %2211 = vmatpush.msra.mxu0 %v367
        %2212 = vmatpush.msra.mxu0 %v351
        %2213 = vmatpush.msra.mxu0 %v335
        %2214 = vmatpush.msra.mxu0 %v319
        %2215 = vmatpush.msra.mxu0 %v303
        %2216 = vmatpush.msra.mxu0 %v287
        %2217 = vmatpush.msra.mxu0 %v271
        %2218 = vmatmul.f32.gmra.mxu0 %v228
        %v2219 = vpop.f32.mrf.mxu0
        %v2220 = vadd.f32 0.0, %v2219
        %2221 = vmatmul.f32.gmra.mxu0 %v230
        %v2222 = vpop.f32.mrf.mxu0
        %v2223 = vadd.f32 0.0, %v2222
        %2224 = vmatmul.f32.gmra.mxu0 %v232
        %v2225 = vpop.f32.mrf.mxu0
        %v2226 = vadd.f32 0.0, %v2225
        %2227 = vmatmul.f32.gmra.mxu0 %v234
        %v2228 = vpop.f32.mrf.mxu0
        %v2229 = vadd.f32 0.0, %v2228
        %2230 = vmatmul.f32.gmra.mxu0 %v236
        %v2231 = vpop.f32.mrf.mxu0
        %v2232 = vadd.f32 0.0, %v2231
        %2233 = vmatmul.f32.gmra.mxu0 %v238
        %v2234 = vpop.f32.mrf.mxu0
        %v2235 = vadd.f32 0.0, %v2234
        %2236 = vmatmul.f32.gmra.mxu0 %v240
        %v2237 = vpop.f32.mrf.mxu0
        %v2238 = vadd.f32 0.0, %v2237
        %2239 = vmatmul.f32.gmra.mxu0 %v242
        %v2240 = vpop.f32.mrf.mxu0
        %v2241 = vadd.f32 0.0, %v2240
        %2242 = vmatmul.f32.gmra.mxu0 %v244
        %v2243 = vpop.f32.mrf.mxu0
        %v2244 = vadd.f32 0.0, %v2243
        %2245 = vmatmul.f32.gmra.mxu0 %v246
        %v2246 = vpop.f32.mrf.mxu0
        %v2247 = vadd.f32 0.0, %v2246
        %2248 = vmatmul.f32.gmra.mxu0 %v248
        %v2249 = vpop.f32.mrf.mxu0
        %v2250 = vadd.f32 0.0, %v2249
        %2251 = vmatmul.f32.gmra.mxu0 %v250
        %v2252 = vpop.f32.mrf.mxu0
        %v2253 = vadd.f32 0.0, %v2252
        %2254 = vmatmul.f32.gmra.mxu0 %v252
        %v2255 = vpop.f32.mrf.mxu0
        %v2256 = vadd.f32 0.0, %v2255
        %2257 = vmatmul.f32.gmra.mxu0 %v254
        %v2258 = vpop.f32.mrf.mxu0
        %v2259 = vadd.f32 0.0, %v2258
        %2260 = vmatmul.f32.gmra.mxu0 %v256
        %v2261 = vpop.f32.mrf.mxu0
        %v2262 = vadd.f32 0.0, %v2261
        %2263 = vmatmul.f32.gmra.mxu0 %v258
        %v2264 = vpop.f32.mrf.mxu0
        %v2265 = vadd.f32 0.0, %v2264
        %2266 = vdwg.mxu0
        %2267 = vmatpush.msra.mxu0 %v767
        %2268 = vmatpush.msra.mxu0 %v751
        %2269 = vmatpush.msra.mxu0 %v735
        %2270 = vmatpush.msra.mxu0 %v719
        %2271 = vmatpush.msra.mxu0 %v703
        %2272 = vmatpush.msra.mxu0 %v687
        %2273 = vmatpush.msra.mxu0 %v671
        %2274 = vmatpush.msra.mxu0 %v655
        %2275 = vmatpush.msra.mxu0 %v639
        %2276 = vmatpush.msra.mxu0 %v623
        %2277 = vmatpush.msra.mxu0 %v607
        %2278 = vmatpush.msra.mxu0 %v591
        %2279 = vmatpush.msra.mxu0 %v575
        %2280 = vmatpush.msra.mxu0 %v559
        %2281 = vmatpush.msra.mxu0 %v543
        %2282 = vmatpush.msra.mxu0 %v527
        %2283 = vmatmul.f32.gmra.mxu0 %v229
        %v2284 = vpop.f32.mrf.mxu0
        %v2285 = vadd.f32 %v2220, %v2284
        %2286 = vmatmul.f32.gmra.mxu0 %v231
        %v2287 = vpop.f32.mrf.mxu0
        %v2288 = vadd.f32 %v2223, %v2287
        %2289 = vmatmul.f32.gmra.mxu0 %v233
        %v2290 = vpop.f32.mrf.mxu0
        %v2291 = vadd.f32 %v2226, %v2290
        %2292 = vmatmul.f32.gmra.mxu0 %v235
        %v2293 = vpop.f32.mrf.mxu0
        %v2294 = vadd.f32 %v2229, %v2293
        %2295 = vmatmul.f32.gmra.mxu0 %v237
        %v2296 = vpop.f32.mrf.mxu0
        %v2297 = vadd.f32 %v2232, %v2296
        %2298 = vmatmul.f32.gmra.mxu0 %v239
        %v2299 = vpop.f32.mrf.mxu0
        %v2300 = vadd.f32 %v2235, %v2299
        %2301 = vmatmul.f32.gmra.mxu0 %v241
        %v2302 = vpop.f32.mrf.mxu0
        %v2303 = vadd.f32 %v2238, %v2302
        %2304 = vmatmul.f32.gmra.mxu0 %v243
        %v2305 = vpop.f32.mrf.mxu0
        %v2306 = vadd.f32 %v2241, %v2305
        %2307 = vmatmul.f32.gmra.mxu0 %v245
        %v2308 = vpop.f32.mrf.mxu0
        %v2309 = vadd.f32 %v2244, %v2308
        %2310 = vmatmul.f32.gmra.mxu0 %v247
        %v2311 = vpop.f32.mrf.mxu0
        %v2312 = vadd.f32 %v2247, %v2311
        %2313 = vmatmul.f32.gmra.mxu0 %v249
        %v2314 = vpop.f32.mrf.mxu0
        %v2315 = vadd.f32 %v2250, %v2314
        %2316 = vmatmul.f32.gmra.mxu0 %v251
        %v2317 = vpop.f32.mrf.mxu0
        %v2318 = vadd.f32 %v2253, %v2317
        %2319 = vmatmul.f32.gmra.mxu0 %v253
        %v2320 = vpop.f32.mrf.mxu0
        %v2321 = vadd.f32 %v2256, %v2320
        %2322 = vmatmul.f32.gmra.mxu0 %v255
        %v2323 = vpop.f32.mrf.mxu0
        %v2324 = vadd.f32 %v2259, %v2323
        %2325 = vmatmul.f32.gmra.mxu0 %v257
        %v2326 = vpop.f32.mrf.mxu0
        %v2327 = vadd.f32 %v2262, %v2326
        %2328 = vmatmul.f32.gmra.mxu0 %v259
        %v2329 = vpop.f32.mrf.mxu0
        %v2330 = vadd.f32 %v2265, %v2329
        %2331 = vdwg.mxu0
        %2332 = vmatpush.msra.mxu0 %v512
        %2333 = vmatpush.msra.mxu0 %v496
        %2334 = vmatpush.msra.mxu0 %v480
        %2335 = vmatpush.msra.mxu0 %v464
        %2336 = vmatpush.msra.mxu0 %v448
        %2337 = vmatpush.msra.mxu0 %v432
        %2338 = vmatpush.msra.mxu0 %v416
        %2339 = vmatpush.msra.mxu0 %v400
        %2340 = vmatpush.msra.mxu0 %v384
        %2341 = vmatpush.msra.mxu0 %v368
        %2342 = vmatpush.msra.mxu0 %v352
        %2343 = vmatpush.msra.mxu0 %v336
        %2344 = vmatpush.msra.mxu0 %v320
        %2345 = vmatpush.msra.mxu0 %v304
        %2346 = vmatpush.msra.mxu0 %v288
        %2347 = vmatpush.msra.mxu0 %v272
        %2348 = vmatmul.f32.gmra.mxu0 %v228
        %v2349 = vpop.f32.mrf.mxu0
        %v2350 = vadd.f32 0.0, %v2349
        %2351 = vmatmul.f32.gmra.mxu0 %v230
        %v2352 = vpop.f32.mrf.mxu0
        %v2353 = vadd.f32 0.0, %v2352
        %2354 = vmatmul.f32.gmra.mxu0 %v232
        %v2355 = vpop.f32.mrf.mxu0
        %v2356 = vadd.f32 0.0, %v2355
        %2357 = vmatmul.f32.gmra.mxu0 %v234
        %v2358 = vpop.f32.mrf.mxu0
        %v2359 = vadd.f32 0.0, %v2358
        %2360 = vmatmul.f32.gmra.mxu0 %v236
        %v2361 = vpop.f32.mrf.mxu0
        %v2362 = vadd.f32 0.0, %v2361
        %2363 = vmatmul.f32.gmra.mxu0 %v238
        %v2364 = vpop.f32.mrf.mxu0
        %v2365 = vadd.f32 0.0, %v2364
        %2366 = vmatmul.f32.gmra.mxu0 %v240
        %v2367 = vpop.f32.mrf.mxu0
        %v2368 = vadd.f32 0.0, %v2367
        %2369 = vmatmul.f32.gmra.mxu0 %v242
        %v2370 = vpop.f32.mrf.mxu0
        %v2371 = vadd.f32 0.0, %v2370
        %2372 = vmatmul.f32.gmra.mxu0 %v244
        %v2373 = vpop.f32.mrf.mxu0
        %v2374 = vadd.f32 0.0, %v2373
        %2375 = vmatmul.f32.gmra.mxu0 %v246
        %v2376 = vpop.f32.mrf.mxu0
        %v2377 = vadd.f32 0.0, %v2376
        %2378 = vmatmul.f32.gmra.mxu0 %v248
        %v2379 = vpop.f32.mrf.mxu0
        %v2380 = vadd.f32 0.0, %v2379
        %2381 = vmatmul.f32.gmra.mxu0 %v250
        %v2382 = vpop.f32.mrf.mxu0
        %v2383 = vadd.f32 0.0, %v2382
        %2384 = vmatmul.f32.gmra.mxu0 %v252
        %v2385 = vpop.f32.mrf.mxu0
        %v2386 = vadd.f32 0.0, %v2385
        %2387 = vmatmul.f32.gmra.mxu0 %v254
        %v2388 = vpop.f32.mrf.mxu0
        %v2389 = vadd.f32 0.0, %v2388
        %2390 = vmatmul.f32.gmra.mxu0 %v256
        %v2391 = vpop.f32.mrf.mxu0
        %v2392 = vadd.f32 0.0, %v2391
        %2393 = vmatmul.f32.gmra.mxu0 %v258
        %v2394 = vpop.f32.mrf.mxu0
        %v2395 = vadd.f32 0.0, %v2394
        %2396 = vdwg.mxu0
        %2397 = vmatpush.msra.mxu0 %v768
        %2398 = vmatpush.msra.mxu0 %v752
        %2399 = vmatpush.msra.mxu0 %v736
        %2400 = vmatpush.msra.mxu0 %v720
        %2401 = vmatpush.msra.mxu0 %v704
        %2402 = vmatpush.msra.mxu0 %v688
        %2403 = vmatpush.msra.mxu0 %v672
        %2404 = vmatpush.msra.mxu0 %v656
        %2405 = vmatpush.msra.mxu0 %v640
        %2406 = vmatpush.msra.mxu0 %v624
        %2407 = vmatpush.msra.mxu0 %v608
        %2408 = vmatpush.msra.mxu0 %v592
        %2409 = vmatpush.msra.mxu0 %v576
        %2410 = vmatpush.msra.mxu0 %v560
        %2411 = vmatpush.msra.mxu0 %v544
        %2412 = vmatpush.msra.mxu0 %v528
        %2413 = vmatmul.f32.gmra.mxu0 %v229
        %v2414 = vpop.f32.mrf.mxu0
        %v2415 = vadd.f32 %v2350, %v2414
        %2416 = vmatmul.f32.gmra.mxu0 %v231
        %v2417 = vpop.f32.mrf.mxu0
        %v2418 = vadd.f32 %v2353, %v2417
        %2419 = vmatmul.f32.gmra.mxu0 %v233
        %v2420 = vpop.f32.mrf.mxu0
        %v2421 = vadd.f32 %v2356, %v2420
        %2422 = vmatmul.f32.gmra.mxu0 %v235
        %v2423 = vpop.f32.mrf.mxu0
        %v2424 = vadd.f32 %v2359, %v2423
        %2425 = vmatmul.f32.gmra.mxu0 %v237
        %v2426 = vpop.f32.mrf.mxu0
        %v2427 = vadd.f32 %v2362, %v2426
        %2428 = vmatmul.f32.gmra.mxu0 %v239
        %v2429 = vpop.f32.mrf.mxu0
        %v2430 = vadd.f32 %v2365, %v2429
        %2431 = vmatmul.f32.gmra.mxu0 %v241
        %v2432 = vpop.f32.mrf.mxu0
        %v2433 = vadd.f32 %v2368, %v2432
        %2434 = vmatmul.f32.gmra.mxu0 %v243
        %v2435 = vpop.f32.mrf.mxu0
        %v2436 = vadd.f32 %v2371, %v2435
        %2437 = vmatmul.f32.gmra.mxu0 %v245
        %v2438 = vpop.f32.mrf.mxu0
        %v2439 = vadd.f32 %v2374, %v2438
        %2440 = vmatmul.f32.gmra.mxu0 %v247
        %v2441 = vpop.f32.mrf.mxu0
        %v2442 = vadd.f32 %v2377, %v2441
        %2443 = vmatmul.f32.gmra.mxu0 %v249
        %v2444 = vpop.f32.mrf.mxu0
        %v2445 = vadd.f32 %v2380, %v2444
        %2446 = vmatmul.f32.gmra.mxu0 %v251
        %v2447 = vpop.f32.mrf.mxu0
        %v2448 = vadd.f32 %v2383, %v2447
        %2449 = vmatmul.f32.gmra.mxu0 %v253
        %v2450 = vpop.f32.mrf.mxu0
        %v2451 = vadd.f32 %v2386, %v2450
        %2452 = vmatmul.f32.gmra.mxu0 %v255
        %v2453 = vpop.f32.mrf.mxu0
        %v2454 = vadd.f32 %v2389, %v2453
        %2455 = vmatmul.f32.gmra.mxu0 %v257
        %v2456 = vpop.f32.mrf.mxu0
        %v2457 = vadd.f32 %v2392, %v2456
        %2458 = vmatmul.f32.gmra.mxu0 %v259
        %v2459 = vpop.f32.mrf.mxu0
        %v2460 = vadd.f32 %v2395, %v2459
        %2461 = vdwg.mxu0
        %2462 = vmatpush.msra.mxu0 %v513
        %2463 = vmatpush.msra.mxu0 %v497
        %2464 = vmatpush.msra.mxu0 %v481
        %2465 = vmatpush.msra.mxu0 %v465
        %2466 = vmatpush.msra.mxu0 %v449
        %2467 = vmatpush.msra.mxu0 %v433
        %2468 = vmatpush.msra.mxu0 %v417
        %2469 = vmatpush.msra.mxu0 %v401
        %2470 = vmatpush.msra.mxu0 %v385
        %2471 = vmatpush.msra.mxu0 %v369
        %2472 = vmatpush.msra.mxu0 %v353
        %2473 = vmatpush.msra.mxu0 %v337
        %2474 = vmatpush.msra.mxu0 %v321
        %2475 = vmatpush.msra.mxu0 %v305
        %2476 = vmatpush.msra.mxu0 %v289
        %2477 = vmatpush.msra.mxu0 %v273
        %2478 = vmatmul.f32.gmra.mxu0 %v228
        %v2479 = vpop.f32.mrf.mxu0
        %v2480 = vadd.f32 0.0, %v2479
        %2481 = vmatmul.f32.gmra.mxu0 %v230
        %v2482 = vpop.f32.mrf.mxu0
        %v2483 = vadd.f32 0.0, %v2482
        %2484 = vmatmul.f32.gmra.mxu0 %v232
        %v2485 = vpop.f32.mrf.mxu0
        %v2486 = vadd.f32 0.0, %v2485
        %2487 = vmatmul.f32.gmra.mxu0 %v234
        %v2488 = vpop.f32.mrf.mxu0
        %v2489 = vadd.f32 0.0, %v2488
        %2490 = vmatmul.f32.gmra.mxu0 %v236
        %v2491 = vpop.f32.mrf.mxu0
        %v2492 = vadd.f32 0.0, %v2491
        %2493 = vmatmul.f32.gmra.mxu0 %v238
        %v2494 = vpop.f32.mrf.mxu0
        %v2495 = vadd.f32 0.0, %v2494
        %2496 = vmatmul.f32.gmra.mxu0 %v240
        %v2497 = vpop.f32.mrf.mxu0
        %v2498 = vadd.f32 0.0, %v2497
        %2499 = vmatmul.f32.gmra.mxu0 %v242
        %v2500 = vpop.f32.mrf.mxu0
        %v2501 = vadd.f32 0.0, %v2500
        %2502 = vmatmul.f32.gmra.mxu0 %v244
        %v2503 = vpop.f32.mrf.mxu0
        %v2504 = vadd.f32 0.0, %v2503
        %2505 = vmatmul.f32.gmra.mxu0 %v246
        %v2506 = vpop.f32.mrf.mxu0
        %v2507 = vadd.f32 0.0, %v2506
        %2508 = vmatmul.f32.gmra.mxu0 %v248
        %v2509 = vpop.f32.mrf.mxu0
        %v2510 = vadd.f32 0.0, %v2509
        %2511 = vmatmul.f32.gmra.mxu0 %v250
        %v2512 = vpop.f32.mrf.mxu0
        %v2513 = vadd.f32 0.0, %v2512
        %2514 = vmatmul.f32.gmra.mxu0 %v252
        %v2515 = vpop.f32.mrf.mxu0
        %v2516 = vadd.f32 0.0, %v2515
        %2517 = vmatmul.f32.gmra.mxu0 %v254
        %v2518 = vpop.f32.mrf.mxu0
        %v2519 = vadd.f32 0.0, %v2518
        %2520 = vmatmul.f32.gmra.mxu0 %v256
        %v2521 = vpop.f32.mrf.mxu0
        %v2522 = vadd.f32 0.0, %v2521
        %2523 = vmatmul.f32.gmra.mxu0 %v258
        %v2524 = vpop.f32.mrf.mxu0
        %v2525 = vadd.f32 0.0, %v2524
        %2526 = vdwg.mxu0
        %2527 = vmatpush.msra.mxu0 %v769
        %2528 = vmatpush.msra.mxu0 %v753
        %2529 = vmatpush.msra.mxu0 %v737
        %2530 = vmatpush.msra.mxu0 %v721
        %2531 = vmatpush.msra.mxu0 %v705
        %2532 = vmatpush.msra.mxu0 %v689
        %2533 = vmatpush.msra.mxu0 %v673
        %2534 = vmatpush.msra.mxu0 %v657
        %2535 = vmatpush.msra.mxu0 %v641
        %2536 = vmatpush.msra.mxu0 %v625
        %2537 = vmatpush.msra.mxu0 %v609
        %2538 = vmatpush.msra.mxu0 %v593
        %2539 = vmatpush.msra.mxu0 %v577
        %2540 = vmatpush.msra.mxu0 %v561
        %2541 = vmatpush.msra.mxu0 %v545
        %2542 = vmatpush.msra.mxu0 %v529
        %2543 = vmatmul.f32.gmra.mxu0 %v229
        %v2544 = vpop.f32.mrf.mxu0
        %v2545 = vadd.f32 %v2480, %v2544
        %2546 = vmatmul.f32.gmra.mxu0 %v231
        %v2547 = vpop.f32.mrf.mxu0
        %v2548 = vadd.f32 %v2483, %v2547
        %2549 = vmatmul.f32.gmra.mxu0 %v233
        %v2550 = vpop.f32.mrf.mxu0
        %v2551 = vadd.f32 %v2486, %v2550
        %2552 = vmatmul.f32.gmra.mxu0 %v235
        %v2553 = vpop.f32.mrf.mxu0
        %v2554 = vadd.f32 %v2489, %v2553
        %2555 = vmatmul.f32.gmra.mxu0 %v237
        %v2556 = vpop.f32.mrf.mxu0
        %v2557 = vadd.f32 %v2492, %v2556
        %2558 = vmatmul.f32.gmra.mxu0 %v239
        %v2559 = vpop.f32.mrf.mxu0
        %v2560 = vadd.f32 %v2495, %v2559
        %2561 = vmatmul.f32.gmra.mxu0 %v241
        %v2562 = vpop.f32.mrf.mxu0
        %v2563 = vadd.f32 %v2498, %v2562
        %2564 = vmatmul.f32.gmra.mxu0 %v243
        %v2565 = vpop.f32.mrf.mxu0
        %v2566 = vadd.f32 %v2501, %v2565
        %2567 = vmatmul.f32.gmra.mxu0 %v245
        %v2568 = vpop.f32.mrf.mxu0
        %v2569 = vadd.f32 %v2504, %v2568
        %2570 = vmatmul.f32.gmra.mxu0 %v247
        %v2571 = vpop.f32.mrf.mxu0
        %v2572 = vadd.f32 %v2507, %v2571
        %2573 = vmatmul.f32.gmra.mxu0 %v249
        %v2574 = vpop.f32.mrf.mxu0
        %v2575 = vadd.f32 %v2510, %v2574
        %2576 = vmatmul.f32.gmra.mxu0 %v251
        %v2577 = vpop.f32.mrf.mxu0
        %v2578 = vadd.f32 %v2513, %v2577
        %2579 = vmatmul.f32.gmra.mxu0 %v253
        %v2580 = vpop.f32.mrf.mxu0
        %v2581 = vadd.f32 %v2516, %v2580
        %2582 = vmatmul.f32.gmra.mxu0 %v255
        %v2583 = vpop.f32.mrf.mxu0
        %v2584 = vadd.f32 %v2519, %v2583
        %2585 = vmatmul.f32.gmra.mxu0 %v257
        %v2586 = vpop.f32.mrf.mxu0
        %v2587 = vadd.f32 %v2522, %v2586
        %2588 = vmatmul.f32.gmra.mxu0 %v259
        %v2589 = vpop.f32.mrf.mxu0
        %v2590 = vadd.f32 %v2525, %v2589
        %2591 = vdwg.mxu0
        %2592 = vmatpush.msra.mxu0 %v514
        %2593 = vmatpush.msra.mxu0 %v498
        %2594 = vmatpush.msra.mxu0 %v482
        %2595 = vmatpush.msra.mxu0 %v466
        %2596 = vmatpush.msra.mxu0 %v450
        %2597 = vmatpush.msra.mxu0 %v434
        %2598 = vmatpush.msra.mxu0 %v418
        %2599 = vmatpush.msra.mxu0 %v402
        %2600 = vmatpush.msra.mxu0 %v386
        %2601 = vmatpush.msra.mxu0 %v370
        %2602 = vmatpush.msra.mxu0 %v354
        %2603 = vmatpush.msra.mxu0 %v338
        %2604 = vmatpush.msra.mxu0 %v322
        %2605 = vmatpush.msra.mxu0 %v306
        %2606 = vmatpush.msra.mxu0 %v290
        %2607 = vmatpush.msra.mxu0 %v274
        %2608 = vmatmul.f32.gmra.mxu0 %v228
        %v2609 = vpop.f32.mrf.mxu0
        %v2610 = vadd.f32 0.0, %v2609
        %2611 = vmatmul.f32.gmra.mxu0 %v230
        %v2612 = vpop.f32.mrf.mxu0
        %v2613 = vadd.f32 0.0, %v2612
        %2614 = vmatmul.f32.gmra.mxu0 %v232
        %v2615 = vpop.f32.mrf.mxu0
        %v2616 = vadd.f32 0.0, %v2615
        %2617 = vmatmul.f32.gmra.mxu0 %v234
        %v2618 = vpop.f32.mrf.mxu0
        %v2619 = vadd.f32 0.0, %v2618
        %2620 = vmatmul.f32.gmra.mxu0 %v236
        %v2621 = vpop.f32.mrf.mxu0
        %v2622 = vadd.f32 0.0, %v2621
        %2623 = vmatmul.f32.gmra.mxu0 %v238
        %v2624 = vpop.f32.mrf.mxu0
        %v2625 = vadd.f32 0.0, %v2624
        %2626 = vmatmul.f32.gmra.mxu0 %v240
        %v2627 = vpop.f32.mrf.mxu0
        %v2628 = vadd.f32 0.0, %v2627
        %2629 = vmatmul.f32.gmra.mxu0 %v242
        %v2630 = vpop.f32.mrf.mxu0
        %v2631 = vadd.f32 0.0, %v2630
        %2632 = vmatmul.f32.gmra.mxu0 %v244
        %v2633 = vpop.f32.mrf.mxu0
        %v2634 = vadd.f32 0.0, %v2633
        %2635 = vmatmul.f32.gmra.mxu0 %v246
        %v2636 = vpop.f32.mrf.mxu0
        %v2637 = vadd.f32 0.0, %v2636
        %2638 = vmatmul.f32.gmra.mxu0 %v248
        %v2639 = vpop.f32.mrf.mxu0
        %v2640 = vadd.f32 0.0, %v2639
        %2641 = vmatmul.f32.gmra.mxu0 %v250
        %v2642 = vpop.f32.mrf.mxu0
        %v2643 = vadd.f32 0.0, %v2642
        %2644 = vmatmul.f32.gmra.mxu0 %v252
        %v2645 = vpop.f32.mrf.mxu0
        %v2646 = vadd.f32 0.0, %v2645
        %2647 = vmatmul.f32.gmra.mxu0 %v254
        %v2648 = vpop.f32.mrf.mxu0
        %v2649 = vadd.f32 0.0, %v2648
        %2650 = vmatmul.f32.gmra.mxu0 %v256
        %v2651 = vpop.f32.mrf.mxu0
        %v2652 = vadd.f32 0.0, %v2651
        %2653 = vmatmul.f32.gmra.mxu0 %v258
        %v2654 = vpop.f32.mrf.mxu0
        %v2655 = vadd.f32 0.0, %v2654
        %2656 = vdwg.mxu0
        %2657 = vmatpush.msra.mxu0 %v770
        %2658 = vmatpush.msra.mxu0 %v754
        %2659 = vmatpush.msra.mxu0 %v738
        %2660 = vmatpush.msra.mxu0 %v722
        %2661 = vmatpush.msra.mxu0 %v706
        %2662 = vmatpush.msra.mxu0 %v690
        %2663 = vmatpush.msra.mxu0 %v674
        %2664 = vmatpush.msra.mxu0 %v658
        %2665 = vmatpush.msra.mxu0 %v642
        %2666 = vmatpush.msra.mxu0 %v626
        %2667 = vmatpush.msra.mxu0 %v610
        %2668 = vmatpush.msra.mxu0 %v594
        %2669 = vmatpush.msra.mxu0 %v578
        %2670 = vmatpush.msra.mxu0 %v562
        %2671 = vmatpush.msra.mxu0 %v546
        %2672 = vmatpush.msra.mxu0 %v530
        %2673 = vmatmul.f32.gmra.mxu0 %v229
        %v2674 = vpop.f32.mrf.mxu0
        %v2675 = vadd.f32 %v2610, %v2674
        %2676 = vmatmul.f32.gmra.mxu0 %v231
        %v2677 = vpop.f32.mrf.mxu0
        %v2678 = vadd.f32 %v2613, %v2677
        %2679 = vmatmul.f32.gmra.mxu0 %v233
        %v2680 = vpop.f32.mrf.mxu0
        %v2681 = vadd.f32 %v2616, %v2680
        %2682 = vmatmul.f32.gmra.mxu0 %v235
        %v2683 = vpop.f32.mrf.mxu0
        %v2684 = vadd.f32 %v2619, %v2683
        %2685 = vmatmul.f32.gmra.mxu0 %v237
        %v2686 = vpop.f32.mrf.mxu0
        %v2687 = vadd.f32 %v2622, %v2686
        %2688 = vmatmul.f32.gmra.mxu0 %v239
        %v2689 = vpop.f32.mrf.mxu0
        %v2690 = vadd.f32 %v2625, %v2689
        %2691 = vmatmul.f32.gmra.mxu0 %v241
        %v2692 = vpop.f32.mrf.mxu0
        %v2693 = vadd.f32 %v2628, %v2692
        %2694 = vmatmul.f32.gmra.mxu0 %v243
        %v2695 = vpop.f32.mrf.mxu0
        %v2696 = vadd.f32 %v2631, %v2695
        %2697 = vmatmul.f32.gmra.mxu0 %v245
        %v2698 = vpop.f32.mrf.mxu0
        %v2699 = vadd.f32 %v2634, %v2698
        %2700 = vmatmul.f32.gmra.mxu0 %v247
        %v2701 = vpop.f32.mrf.mxu0
        %v2702 = vadd.f32 %v2637, %v2701
        %2703 = vmatmul.f32.gmra.mxu0 %v249
        %v2704 = vpop.f32.mrf.mxu0
        %v2705 = vadd.f32 %v2640, %v2704
        %2706 = vmatmul.f32.gmra.mxu0 %v251
        %v2707 = vpop.f32.mrf.mxu0
        %v2708 = vadd.f32 %v2643, %v2707
        %2709 = vmatmul.f32.gmra.mxu0 %v253
        %v2710 = vpop.f32.mrf.mxu0
        %v2711 = vadd.f32 %v2646, %v2710
        %2712 = vmatmul.f32.gmra.mxu0 %v255
        %v2713 = vpop.f32.mrf.mxu0
        %v2714 = vadd.f32 %v2649, %v2713
        %2715 = vmatmul.f32.gmra.mxu0 %v257
        %v2716 = vpop.f32.mrf.mxu0
        %v2717 = vadd.f32 %v2652, %v2716
        %2718 = vmatmul.f32.gmra.mxu0 %v259
        %v2719 = vpop.f32.mrf.mxu0
        %v2720 = vadd.f32 %v2655, %v2719
        %2721 = vdwg.mxu0
        %2722 = vmatpush.msra.mxu0 %v515
        %2723 = vmatpush.msra.mxu0 %v499
        %2724 = vmatpush.msra.mxu0 %v483
        %2725 = vmatpush.msra.mxu0 %v467
        %2726 = vmatpush.msra.mxu0 %v451
        %2727 = vmatpush.msra.mxu0 %v435
        %2728 = vmatpush.msra.mxu0 %v419
        %2729 = vmatpush.msra.mxu0 %v403
        %2730 = vmatpush.msra.mxu0 %v387
        %2731 = vmatpush.msra.mxu0 %v371
        %2732 = vmatpush.msra.mxu0 %v355
        %2733 = vmatpush.msra.mxu0 %v339
        %2734 = vmatpush.msra.mxu0 %v323
        %2735 = vmatpush.msra.mxu0 %v307
        %2736 = vmatpush.msra.mxu0 %v291
        %2737 = vmatpush.msra.mxu0 %v275
        %2738 = vmatmul.f32.gmra.mxu0 %v228
        %v2739 = vpop.f32.mrf.mxu0
        %v2740 = vadd.f32 0.0, %v2739
        %2741 = vmatmul.f32.gmra.mxu0 %v230
        %v2742 = vpop.f32.mrf.mxu0
        %v2743 = vadd.f32 0.0, %v2742
        %2744 = vmatmul.f32.gmra.mxu0 %v232
        %v2745 = vpop.f32.mrf.mxu0
        %v2746 = vadd.f32 0.0, %v2745
        %2747 = vmatmul.f32.gmra.mxu0 %v234
        %v2748 = vpop.f32.mrf.mxu0
        %v2749 = vadd.f32 0.0, %v2748
        %2750 = vmatmul.f32.gmra.mxu0 %v236
        %v2751 = vpop.f32.mrf.mxu0
        %v2752 = vadd.f32 0.0, %v2751
        %2753 = vmatmul.f32.gmra.mxu0 %v238
        %v2754 = vpop.f32.mrf.mxu0
        %v2755 = vadd.f32 0.0, %v2754
        %2756 = vmatmul.f32.gmra.mxu0 %v240
        %v2757 = vpop.f32.mrf.mxu0
        %v2758 = vadd.f32 0.0, %v2757
        %2759 = vmatmul.f32.gmra.mxu0 %v242
        %v2760 = vpop.f32.mrf.mxu0
        %v2761 = vadd.f32 0.0, %v2760
        %2762 = vmatmul.f32.gmra.mxu0 %v244
        %v2763 = vpop.f32.mrf.mxu0
        %v2764 = vadd.f32 0.0, %v2763
        %2765 = vmatmul.f32.gmra.mxu0 %v246
        %v2766 = vpop.f32.mrf.mxu0
        %v2767 = vadd.f32 0.0, %v2766
        %2768 = vmatmul.f32.gmra.mxu0 %v248
        %v2769 = vpop.f32.mrf.mxu0
        %v2770 = vadd.f32 0.0, %v2769
        %2771 = vmatmul.f32.gmra.mxu0 %v250
        %v2772 = vpop.f32.mrf.mxu0
        %v2773 = vadd.f32 0.0, %v2772
        %2774 = vmatmul.f32.gmra.mxu0 %v252
        %v2775 = vpop.f32.mrf.mxu0
        %v2776 = vadd.f32 0.0, %v2775
        %2777 = vmatmul.f32.gmra.mxu0 %v254
        %v2778 = vpop.f32.mrf.mxu0
        %v2779 = vadd.f32 0.0, %v2778
        %2780 = vmatmul.f32.gmra.mxu0 %v256
        %v2781 = vpop.f32.mrf.mxu0
        %v2782 = vadd.f32 0.0, %v2781
        %2783 = vmatmul.f32.gmra.mxu0 %v258
        %v2784 = vpop.f32.mrf.mxu0
        %v2785 = vadd.f32 0.0, %v2784
        %2786 = vdwg.mxu0
        %2787 = vmatpush.msra.mxu0 %v771
        %2788 = vmatpush.msra.mxu0 %v755
        %2789 = vmatpush.msra.mxu0 %v739
        %2790 = vmatpush.msra.mxu0 %v723
        %2791 = vmatpush.msra.mxu0 %v707
        %2792 = vmatpush.msra.mxu0 %v691
        %2793 = vmatpush.msra.mxu0 %v675
        %2794 = vmatpush.msra.mxu0 %v659
        %2795 = vmatpush.msra.mxu0 %v643
        %2796 = vmatpush.msra.mxu0 %v627
        %2797 = vmatpush.msra.mxu0 %v611
        %2798 = vmatpush.msra.mxu0 %v595
        %2799 = vmatpush.msra.mxu0 %v579
        %2800 = vmatpush.msra.mxu0 %v563
        %2801 = vmatpush.msra.mxu0 %v547
        %2802 = vmatpush.msra.mxu0 %v531
        %2803 = vmatmul.f32.gmra.mxu0 %v229
        %v2804 = vpop.f32.mrf.mxu0
        %v2805 = vadd.f32 %v2740, %v2804
        %2806 = vmatmul.f32.gmra.mxu0 %v231
        %v2807 = vpop.f32.mrf.mxu0
        %v2808 = vadd.f32 %v2743, %v2807
        %2809 = vmatmul.f32.gmra.mxu0 %v233
        %v2810 = vpop.f32.mrf.mxu0
        %v2811 = vadd.f32 %v2746, %v2810
        %2812 = vmatmul.f32.gmra.mxu0 %v235
        %v2813 = vpop.f32.mrf.mxu0
        %v2814 = vadd.f32 %v2749, %v2813
        %2815 = vmatmul.f32.gmra.mxu0 %v237
        %v2816 = vpop.f32.mrf.mxu0
        %v2817 = vadd.f32 %v2752, %v2816
        %2818 = vmatmul.f32.gmra.mxu0 %v239
        %v2819 = vpop.f32.mrf.mxu0
        %v2820 = vadd.f32 %v2755, %v2819
        %2821 = vmatmul.f32.gmra.mxu0 %v241
        %v2822 = vpop.f32.mrf.mxu0
        %v2823 = vadd.f32 %v2758, %v2822
        %2824 = vmatmul.f32.gmra.mxu0 %v243
        %v2825 = vpop.f32.mrf.mxu0
        %v2826 = vadd.f32 %v2761, %v2825
        %2827 = vmatmul.f32.gmra.mxu0 %v245
        %v2828 = vpop.f32.mrf.mxu0
        %v2829 = vadd.f32 %v2764, %v2828
        %2830 = vmatmul.f32.gmra.mxu0 %v247
        %v2831 = vpop.f32.mrf.mxu0
        %v2832 = vadd.f32 %v2767, %v2831
        %2833 = vmatmul.f32.gmra.mxu0 %v249
        %v2834 = vpop.f32.mrf.mxu0
        %v2835 = vadd.f32 %v2770, %v2834
        %2836 = vmatmul.f32.gmra.mxu0 %v251
        %v2837 = vpop.f32.mrf.mxu0
        %v2838 = vadd.f32 %v2773, %v2837
        %2839 = vmatmul.f32.gmra.mxu0 %v253
        %v2840 = vpop.f32.mrf.mxu0
        %v2841 = vadd.f32 %v2776, %v2840
        %2842 = vmatmul.f32.gmra.mxu0 %v255
        %v2843 = vpop.f32.mrf.mxu0
        %v2844 = vadd.f32 %v2779, %v2843
        %2845 = vmatmul.f32.gmra.mxu0 %v257
        %v2846 = vpop.f32.mrf.mxu0
        %v2847 = vadd.f32 %v2782, %v2846
        %2848 = vmatmul.f32.gmra.mxu0 %v259
        %v2849 = vpop.f32.mrf.mxu0
        %v2850 = vadd.f32 %v2785, %v2849
        %2851 = vdwg.mxu0
        %v2852 = vld [vmem:[%s2] sm:$0xff]
        %v2853 = vld [vmem:[%s2 + $0x8] sm:$0xff]
        %v2854 = vld [vmem:[%s2 + $0x10] sm:$0xff]
        %v2855 = vld [vmem:[%s2 + $0x18] sm:$0xff]
        %v2856 = vld [vmem:[%s2 + $0x20] sm:$0xff]
        %v2857 = vld [vmem:[%s2 + $0x28] sm:$0xff]
        %v2858 = vld [vmem:[%s2 + $0x30] sm:$0xff]
        %v2859 = vld [vmem:[%s2 + $0x38] sm:$0xff]
        %v2860 = vld [vmem:[%s2 + $0x40] sm:$0xff]
        %v2861 = vld [vmem:[%s2 + $0x48] sm:$0xff]
        %v2862 = vld [vmem:[%s2 + $0x50] sm:$0xff]
        %v2863 = vld [vmem:[%s2 + $0x58] sm:$0xff]
        %v2864 = vld [vmem:[%s2 + $0x60] sm:$0xff]
        %v2865 = vld [vmem:[%s2 + $0x68] sm:$0xff]
        %v2866 = vld [vmem:[%s2 + $0x70] sm:$0xff]
        %v2867 = vld [vmem:[%s2 + $0x78] sm:$0xff]
        %2869 = vset.pattern.permute.xlu0 0
        %2870 = vperm.xlu0 %2869, %v2852
        %v2871 = vpop.permute.xlu0 %2870
        %2874 = vset.pattern.permute.xlu0 0
        %2875 = vperm.xlu0 %2874, %v2853
        %v2876 = vpop.permute.xlu0 %2875
        %2879 = vset.pattern.permute.xlu0 0
        %2880 = vperm.xlu0 %2879, %v2854
        %v2881 = vpop.permute.xlu0 %2880
        %2884 = vset.pattern.permute.xlu0 0
        %2885 = vperm.xlu0 %2884, %v2855
        %v2886 = vpop.permute.xlu0 %2885
        %2889 = vset.pattern.permute.xlu0 0
        %2890 = vperm.xlu0 %2889, %v2856
        %v2891 = vpop.permute.xlu0 %2890
        %2894 = vset.pattern.permute.xlu0 0
        %2895 = vperm.xlu0 %2894, %v2857
        %v2896 = vpop.permute.xlu0 %2895
        %2899 = vset.pattern.permute.xlu0 0
        %2900 = vperm.xlu0 %2899, %v2858
        %v2901 = vpop.permute.xlu0 %2900
        %2904 = vset.pattern.permute.xlu0 0
        %2905 = vperm.xlu0 %2904, %v2859
        %v2906 = vpop.permute.xlu0 %2905
        %2909 = vset.pattern.permute.xlu0 0
        %2910 = vperm.xlu0 %2909, %v2860
        %v2911 = vpop.permute.xlu0 %2910
        %2914 = vset.pattern.permute.xlu0 0
        %2915 = vperm.xlu0 %2914, %v2861
        %v2916 = vpop.permute.xlu0 %2915
        %2919 = vset.pattern.permute.xlu0 0
        %2920 = vperm.xlu0 %2919, %v2862
        %v2921 = vpop.permute.xlu0 %2920
        %2924 = vset.pattern.permute.xlu0 0
        %2925 = vperm.xlu0 %2924, %v2863
        %v2926 = vpop.permute.xlu0 %2925
        %2929 = vset.pattern.permute.xlu0 0
        %2930 = vperm.xlu0 %2929, %v2864
        %v2931 = vpop.permute.xlu0 %2930
        %2934 = vset.pattern.permute.xlu0 0
        %2935 = vperm.xlu0 %2934, %v2865
        %v2936 = vpop.permute.xlu0 %2935
        %2939 = vset.pattern.permute.xlu0 0
        %2940 = vperm.xlu0 %2939, %v2866
        %v2941 = vpop.permute.xlu0 %2940
        %2944 = vset.pattern.permute.xlu0 0
        %2945 = vperm.xlu0 %2944, %v2867
        %v2946 = vpop.permute.xlu0 %2945
        %v2948 = vmul.f32 %v855, %v2871
        %v2949 = vmul.f32 %v985, %v2871
        %v2950 = vmul.f32 %v1115, %v2871
        %v2951 = vmul.f32 %v1245, %v2871
        %v2952 = vmul.f32 %v1375, %v2871
        %v2953 = vmul.f32 %v1505, %v2871
        %v2954 = vmul.f32 %v1635, %v2871
        %v2955 = vmul.f32 %v1765, %v2871
        %v2956 = vmul.f32 %v1895, %v2871
        %v2957 = vmul.f32 %v2025, %v2871
        %v2958 = vmul.f32 %v2155, %v2871
        %v2959 = vmul.f32 %v2285, %v2871
        %v2960 = vmul.f32 %v2415, %v2871
        %v2961 = vmul.f32 %v2545, %v2871
        %v2962 = vmul.f32 %v2675, %v2871
        %v2963 = vmul.f32 %v2805, %v2871
        %v2964 = vmul.f32 %v858, %v2876
        %v2965 = vmul.f32 %v988, %v2876
        %v2966 = vmul.f32 %v1118, %v2876
        %v2967 = vmul.f32 %v1248, %v2876
        %v2968 = vmul.f32 %v1378, %v2876
        %v2969 = vmul.f32 %v1508, %v2876
        %v2970 = vmul.f32 %v1638, %v2876
        %v2971 = vmul.f32 %v1768, %v2876
        %v2972 = vmul.f32 %v1898, %v2876
        %v2973 = vmul.f32 %v2028, %v2876
        %v2974 = vmul.f32 %v2158, %v2876
        %v2975 = vmul.f32 %v2288, %v2876
        %v2976 = vmul.f32 %v2418, %v2876
        %v2977 = vmul.f32 %v2548, %v2876
        %v2978 = vmul.f32 %v2678, %v2876
        %v2979 = vmul.f32 %v2808, %v2876
        %v2980 = vmul.f32 %v861, %v2881
        %v2981 = vmul.f32 %v991, %v2881
        %v2982 = vmul.f32 %v1121, %v2881
        %v2983 = vmul.f32 %v1251, %v2881
        %v2984 = vmul.f32 %v1381, %v2881
        %v2985 = vmul.f32 %v1511, %v2881
        %v2986 = vmul.f32 %v1641, %v2881
        %v2987 = vmul.f32 %v1771, %v2881
        %v2988 = vmul.f32 %v1901, %v2881
        %v2989 = vmul.f32 %v2031, %v2881
        %v2990 = vmul.f32 %v2161, %v2881
        %v2991 = vmul.f32 %v2291, %v2881
        %v2992 = vmul.f32 %v2421, %v2881
        %v2993 = vmul.f32 %v2551, %v2881
        %v2994 = vmul.f32 %v2681, %v2881
        %v2995 = vmul.f32 %v2811, %v2881
        %v2996 = vmul.f32 %v864, %v2886
        %v2997 = vmul.f32 %v994, %v2886
        %v2998 = vmul.f32 %v1124, %v2886
        %v2999 = vmul.f32 %v1254, %v2886
        %v3000 = vmul.f32 %v1384, %v2886
        %v3001 = vmul.f32 %v1514, %v2886
        %v3002 = vmul.f32 %v1644, %v2886
        %v3003 = vmul.f32 %v1774, %v2886
        %v3004 = vmul.f32 %v1904, %v2886
        %v3005 = vmul.f32 %v2034, %v2886
        %v3006 = vmul.f32 %v2164, %v2886
        %v3007 = vmul.f32 %v2294, %v2886
        %v3008 = vmul.f32 %v2424, %v2886
        %v3009 = vmul.f32 %v2554, %v2886
        %v3010 = vmul.f32 %v2684, %v2886
        %v3011 = vmul.f32 %v2814, %v2886
        %v3012 = vmul.f32 %v867, %v2891
        %v3013 = vmul.f32 %v997, %v2891
        %v3014 = vmul.f32 %v1127, %v2891
        %v3015 = vmul.f32 %v1257, %v2891
        %v3016 = vmul.f32 %v1387, %v2891
        %v3017 = vmul.f32 %v1517, %v2891
        %v3018 = vmul.f32 %v1647, %v2891
        %v3019 = vmul.f32 %v1777, %v2891
        %v3020 = vmul.f32 %v1907, %v2891
        %v3021 = vmul.f32 %v2037, %v2891
        %v3022 = vmul.f32 %v2167, %v2891
        %v3023 = vmul.f32 %v2297, %v2891
        %v3024 = vmul.f32 %v2427, %v2891
        %v3025 = vmul.f32 %v2557, %v2891
        %v3026 = vmul.f32 %v2687, %v2891
        %v3027 = vmul.f32 %v2817, %v2891
        %v3028 = vmul.f32 %v870, %v2896
        %v3029 = vmul.f32 %v1000, %v2896
        %v3030 = vmul.f32 %v1130, %v2896
        %v3031 = vmul.f32 %v1260, %v2896
        %v3032 = vmul.f32 %v1390, %v2896
        %v3033 = vmul.f32 %v1520, %v2896
        %v3034 = vmul.f32 %v1650, %v2896
        %v3035 = vmul.f32 %v1780, %v2896
        %v3036 = vmul.f32 %v1910, %v2896
        %v3037 = vmul.f32 %v2040, %v2896
        %v3038 = vmul.f32 %v2170, %v2896
        %v3039 = vmul.f32 %v2300, %v2896
        %v3040 = vmul.f32 %v2430, %v2896
        %v3041 = vmul.f32 %v2560, %v2896
        %v3042 = vmul.f32 %v2690, %v2896
        %v3043 = vmul.f32 %v2820, %v2896
        %v3044 = vmul.f32 %v873, %v2901
        %v3045 = vmul.f32 %v1003, %v2901
        %v3046 = vmul.f32 %v1133, %v2901
        %v3047 = vmul.f32 %v1263, %v2901
        %v3048 = vmul.f32 %v1393, %v2901
        %v3049 = vmul.f32 %v1523, %v2901
        %v3050 = vmul.f32 %v1653, %v2901
        %v3051 = vmul.f32 %v1783, %v2901
        %v3052 = vmul.f32 %v1913, %v2901
        %v3053 = vmul.f32 %v2043, %v2901
        %v3054 = vmul.f32 %v2173, %v2901
        %v3055 = vmul.f32 %v2303, %v2901
        %v3056 = vmul.f32 %v2433, %v2901
        %v3057 = vmul.f32 %v2563, %v2901
        %v3058 = vmul.f32 %v2693, %v2901
        %v3059 = vmul.f32 %v2823, %v2901
        %v3060 = vmul.f32 %v876, %v2906
        %v3061 = vmul.f32 %v1006, %v2906
        %v3062 = vmul.f32 %v1136, %v2906
        %v3063 = vmul.f32 %v1266, %v2906
        %v3064 = vmul.f32 %v1396, %v2906
        %v3065 = vmul.f32 %v1526, %v2906
        %v3066 = vmul.f32 %v1656, %v2906
        %v3067 = vmul.f32 %v1786, %v2906
        %v3068 = vmul.f32 %v1916, %v2906
        %v3069 = vmul.f32 %v2046, %v2906
        %v3070 = vmul.f32 %v2176, %v2906
        %v3071 = vmul.f32 %v2306, %v2906
        %v3072 = vmul.f32 %v2436, %v2906
        %v3073 = vmul.f32 %v2566, %v2906
        %v3074 = vmul.f32 %v2696, %v2906
        %v3075 = vmul.f32 %v2826, %v2906
        %v3076 = vmul.f32 %v879, %v2911
        %v3077 = vmul.f32 %v1009, %v2911
        %v3078 = vmul.f32 %v1139, %v2911
        %v3079 = vmul.f32 %v1269, %v2911
        %v3080 = vmul.f32 %v1399, %v2911
        %v3081 = vmul.f32 %v1529, %v2911
        %v3082 = vmul.f32 %v1659, %v2911
        %v3083 = vmul.f32 %v1789, %v2911
        %v3084 = vmul.f32 %v1919, %v2911
        %v3085 = vmul.f32 %v2049, %v2911
        %v3086 = vmul.f32 %v2179, %v2911
        %v3087 = vmul.f32 %v2309, %v2911
        %v3088 = vmul.f32 %v2439, %v2911
        %v3089 = vmul.f32 %v2569, %v2911
        %v3090 = vmul.f32 %v2699, %v2911
        %v3091 = vmul.f32 %v2829, %v2911
        %v3092 = vmul.f32 %v882, %v2916
        %v3093 = vmul.f32 %v1012, %v2916
        %v3094 = vmul.f32 %v1142, %v2916
        %v3095 = vmul.f32 %v1272, %v2916
        %v3096 = vmul.f32 %v1402, %v2916
        %v3097 = vmul.f32 %v1532, %v2916
        %v3098 = vmul.f32 %v1662, %v2916
        %v3099 = vmul.f32 %v1792, %v2916
        %v3100 = vmul.f32 %v1922, %v2916
        %v3101 = vmul.f32 %v2052, %v2916
        %v3102 = vmul.f32 %v2182, %v2916
        %v3103 = vmul.f32 %v2312, %v2916
        %v3104 = vmul.f32 %v2442, %v2916
        %v3105 = vmul.f32 %v2572, %v2916
        %v3106 = vmul.f32 %v2702, %v2916
        %v3107 = vmul.f32 %v2832, %v2916
        %v3108 = vmul.f32 %v885, %v2921
        %v3109 = vmul.f32 %v1015, %v2921
        %v3110 = vmul.f32 %v1145, %v2921
        %v3111 = vmul.f32 %v1275, %v2921
        %v3112 = vmul.f32 %v1405, %v2921
        %v3113 = vmul.f32 %v1535, %v2921
        %v3114 = vmul.f32 %v1665, %v2921
        %v3115 = vmul.f32 %v1795, %v2921
        %v3116 = vmul.f32 %v1925, %v2921
        %v3117 = vmul.f32 %v2055, %v2921
        %v3118 = vmul.f32 %v2185, %v2921
        %v3119 = vmul.f32 %v2315, %v2921
        %v3120 = vmul.f32 %v2445, %v2921
        %v3121 = vmul.f32 %v2575, %v2921
        %v3122 = vmul.f32 %v2705, %v2921
        %v3123 = vmul.f32 %v2835, %v2921
        %v3124 = vmul.f32 %v888, %v2926
        %v3125 = vmul.f32 %v1018, %v2926
        %v3126 = vmul.f32 %v1148, %v2926
        %v3127 = vmul.f32 %v1278, %v2926
        %v3128 = vmul.f32 %v1408, %v2926
        %v3129 = vmul.f32 %v1538, %v2926
        %v3130 = vmul.f32 %v1668, %v2926
        %v3131 = vmul.f32 %v1798, %v2926
        %v3132 = vmul.f32 %v1928, %v2926
        %v3133 = vmul.f32 %v2058, %v2926
        %v3134 = vmul.f32 %v2188, %v2926
        %v3135 = vmul.f32 %v2318, %v2926
        %v3136 = vmul.f32 %v2448, %v2926
        %v3137 = vmul.f32 %v2578, %v2926
        %v3138 = vmul.f32 %v2708, %v2926
        %v3139 = vmul.f32 %v2838, %v2926
        %v3140 = vmul.f32 %v891, %v2931
        %v3141 = vmul.f32 %v1021, %v2931
        %v3142 = vmul.f32 %v1151, %v2931
        %v3143 = vmul.f32 %v1281, %v2931
        %v3144 = vmul.f32 %v1411, %v2931
        %v3145 = vmul.f32 %v1541, %v2931
        %v3146 = vmul.f32 %v1671, %v2931
        %v3147 = vmul.f32 %v1801, %v2931
        %v3148 = vmul.f32 %v1931, %v2931
        %v3149 = vmul.f32 %v2061, %v2931
        %v3150 = vmul.f32 %v2191, %v2931
        %v3151 = vmul.f32 %v2321, %v2931
        %v3152 = vmul.f32 %v2451, %v2931
        %v3153 = vmul.f32 %v2581, %v2931
        %v3154 = vmul.f32 %v2711, %v2931
        %v3155 = vmul.f32 %v2841, %v2931
        %v3156 = vmul.f32 %v894, %v2936
        %v3157 = vmul.f32 %v1024, %v2936
        %v3158 = vmul.f32 %v1154, %v2936
        %v3159 = vmul.f32 %v1284, %v2936
        %v3160 = vmul.f32 %v1414, %v2936
        %v3161 = vmul.f32 %v1544, %v2936
        %v3162 = vmul.f32 %v1674, %v2936
        %v3163 = vmul.f32 %v1804, %v2936
        %v3164 = vmul.f32 %v1934, %v2936
        %v3165 = vmul.f32 %v2064, %v2936
        %v3166 = vmul.f32 %v2194, %v2936
        %v3167 = vmul.f32 %v2324, %v2936
        %v3168 = vmul.f32 %v2454, %v2936
        %v3169 = vmul.f32 %v2584, %v2936
        %v3170 = vmul.f32 %v2714, %v2936
        %v3171 = vmul.f32 %v2844, %v2936
        %v3172 = vmul.f32 %v897, %v2941
        %v3173 = vmul.f32 %v1027, %v2941
        %v3174 = vmul.f32 %v1157, %v2941
        %v3175 = vmul.f32 %v1287, %v2941
        %v3176 = vmul.f32 %v1417, %v2941
        %v3177 = vmul.f32 %v1547, %v2941
        %v3178 = vmul.f32 %v1677, %v2941
        %v3179 = vmul.f32 %v1807, %v2941
        %v3180 = vmul.f32 %v1937, %v2941
        %v3181 = vmul.f32 %v2067, %v2941
        %v3182 = vmul.f32 %v2197, %v2941
        %v3183 = vmul.f32 %v2327, %v2941
        %v3184 = vmul.f32 %v2457, %v2941
        %v3185 = vmul.f32 %v2587, %v2941
        %v3186 = vmul.f32 %v2717, %v2941
        %v3187 = vmul.f32 %v2847, %v2941
        %v3188 = vmul.f32 %v900, %v2946
        %v3189 = vmul.f32 %v1030, %v2946
        %v3190 = vmul.f32 %v1160, %v2946
        %v3191 = vmul.f32 %v1290, %v2946
        %v3192 = vmul.f32 %v1420, %v2946
        %v3193 = vmul.f32 %v1550, %v2946
        %v3194 = vmul.f32 %v1680, %v2946
        %v3195 = vmul.f32 %v1810, %v2946
        %v3196 = vmul.f32 %v1940, %v2946
        %v3197 = vmul.f32 %v2070, %v2946
        %v3198 = vmul.f32 %v2200, %v2946
        %v3199 = vmul.f32 %v2330, %v2946
        %v3200 = vmul.f32 %v2460, %v2946
        %v3201 = vmul.f32 %v2590, %v2946
        %v3202 = vmul.f32 %v2720, %v2946
        %v3203 = vmul.f32 %v2850, %v2946
        %s3204 = scalar_lea.vmem %s2, 128
        %v3205 = vld [vmem:[%s3204] sm:$0xff]
        %v3206 = vld [vmem:[%s3204 + $0x8] sm:$0xff]
        %v3207 = vld [vmem:[%s3204 + $0x10] sm:$0xff]
        %v3208 = vld [vmem:[%s3204 + $0x18] sm:$0xff]
        %v3209 = vld [vmem:[%s3204 + $0x20] sm:$0xff]
        %v3210 = vld [vmem:[%s3204 + $0x28] sm:$0xff]
        %v3211 = vld [vmem:[%s3204 + $0x30] sm:$0xff]
        %v3212 = vld [vmem:[%s3204 + $0x38] sm:$0xff]
        %v3213 = vld [vmem:[%s3204 + $0x40] sm:$0xff]
        %v3214 = vld [vmem:[%s3204 + $0x48] sm:$0xff]
        %v3215 = vld [vmem:[%s3204 + $0x50] sm:$0xff]
        %v3216 = vld [vmem:[%s3204 + $0x58] sm:$0xff]
        %v3217 = vld [vmem:[%s3204 + $0x60] sm:$0xff]
        %v3218 = vld [vmem:[%s3204 + $0x68] sm:$0xff]
        %v3219 = vld [vmem:[%s3204 + $0x70] sm:$0xff]
        %v3220 = vld [vmem:[%s3204 + $0x78] sm:$0xff]
        %3222 = vset.pattern.permute.xlu0 0
        %3223 = vperm.xlu0 %3222, %v3205
        %v3224 = vpop.permute.xlu0 %3223
        %3227 = vset.pattern.permute.xlu0 0
        %3228 = vperm.xlu0 %3227, %v3206
        %v3229 = vpop.permute.xlu0 %3228
        %3232 = vset.pattern.permute.xlu0 0
        %3233 = vperm.xlu0 %3232, %v3207
        %v3234 = vpop.permute.xlu0 %3233
        %3237 = vset.pattern.permute.xlu0 0
        %3238 = vperm.xlu0 %3237, %v3208
        %v3239 = vpop.permute.xlu0 %3238
        %3242 = vset.pattern.permute.xlu0 0
        %3243 = vperm.xlu0 %3242, %v3209
        %v3244 = vpop.permute.xlu0 %3243
        %3247 = vset.pattern.permute.xlu0 0
        %3248 = vperm.xlu0 %3247, %v3210
        %v3249 = vpop.permute.xlu0 %3248
        %3252 = vset.pattern.permute.xlu0 0
        %3253 = vperm.xlu0 %3252, %v3211
        %v3254 = vpop.permute.xlu0 %3253
        %3257 = vset.pattern.permute.xlu0 0
        %3258 = vperm.xlu0 %3257, %v3212
        %v3259 = vpop.permute.xlu0 %3258
        %3262 = vset.pattern.permute.xlu0 0
        %3263 = vperm.xlu0 %3262, %v3213
        %v3264 = vpop.permute.xlu0 %3263
        %3267 = vset.pattern.permute.xlu0 0
        %3268 = vperm.xlu0 %3267, %v3214
        %v3269 = vpop.permute.xlu0 %3268
        %3272 = vset.pattern.permute.xlu0 0
        %3273 = vperm.xlu0 %3272, %v3215
        %v3274 = vpop.permute.xlu0 %3273
        %3277 = vset.pattern.permute.xlu0 0
        %3278 = vperm.xlu0 %3277, %v3216
        %v3279 = vpop.permute.xlu0 %3278
        %3282 = vset.pattern.permute.xlu0 0
        %3283 = vperm.xlu0 %3282, %v3217
        %v3284 = vpop.permute.xlu0 %3283
        %3287 = vset.pattern.permute.xlu0 0
        %3288 = vperm.xlu0 %3287, %v3218
        %v3289 = vpop.permute.xlu0 %3288
        %3292 = vset.pattern.permute.xlu0 0
        %3293 = vperm.xlu0 %3292, %v3219
        %v3294 = vpop.permute.xlu0 %3293
        %3297 = vset.pattern.permute.xlu0 0
        %3298 = vperm.xlu0 %3297, %v3220
        %v3299 = vpop.permute.xlu0 %3298
        %v3301 = vadd.f32 %v2948, %v3224
        %v3302 = vadd.f32 %v2949, %v3224
        %v3303 = vadd.f32 %v2950, %v3224
        %v3304 = vadd.f32 %v2951, %v3224
        %v3305 = vadd.f32 %v2952, %v3224
        %v3306 = vadd.f32 %v2953, %v3224
        %v3307 = vadd.f32 %v2954, %v3224
        %v3308 = vadd.f32 %v2955, %v3224
        %v3309 = vadd.f32 %v2956, %v3224
        %v3310 = vadd.f32 %v2957, %v3224
        %v3311 = vadd.f32 %v2958, %v3224
        %v3312 = vadd.f32 %v2959, %v3224
        %v3313 = vadd.f32 %v2960, %v3224
        %v3314 = vadd.f32 %v2961, %v3224
        %v3315 = vadd.f32 %v2962, %v3224
        %v3316 = vadd.f32 %v2963, %v3224
        %v3317 = vadd.f32 %v2964, %v3229
        %v3318 = vadd.f32 %v2965, %v3229
        %v3319 = vadd.f32 %v2966, %v3229
        %v3320 = vadd.f32 %v2967, %v3229
        %v3321 = vadd.f32 %v2968, %v3229
        %v3322 = vadd.f32 %v2969, %v3229
        %v3323 = vadd.f32 %v2970, %v3229
        %v3324 = vadd.f32 %v2971, %v3229
        %v3325 = vadd.f32 %v2972, %v3229
        %v3326 = vadd.f32 %v2973, %v3229
        %v3327 = vadd.f32 %v2974, %v3229
        %v3328 = vadd.f32 %v2975, %v3229
        %v3329 = vadd.f32 %v2976, %v3229
        %v3330 = vadd.f32 %v2977, %v3229
        %v3331 = vadd.f32 %v2978, %v3229
        %v3332 = vadd.f32 %v2979, %v3229
        %v3333 = vadd.f32 %v2980, %v3234
        %v3334 = vadd.f32 %v2981, %v3234
        %v3335 = vadd.f32 %v2982, %v3234
        %v3336 = vadd.f32 %v2983, %v3234
        %v3337 = vadd.f32 %v2984, %v3234
        %v3338 = vadd.f32 %v2985, %v3234
        %v3339 = vadd.f32 %v2986, %v3234
        %v3340 = vadd.f32 %v2987, %v3234
        %v3341 = vadd.f32 %v2988, %v3234
        %v3342 = vadd.f32 %v2989, %v3234
        %v3343 = vadd.f32 %v2990, %v3234
        %v3344 = vadd.f32 %v2991, %v3234
        %v3345 = vadd.f32 %v2992, %v3234
        %v3346 = vadd.f32 %v2993, %v3234
        %v3347 = vadd.f32 %v2994, %v3234
        %v3348 = vadd.f32 %v2995, %v3234
        %v3349 = vadd.f32 %v2996, %v3239
        %v3350 = vadd.f32 %v2997, %v3239
        %v3351 = vadd.f32 %v2998, %v3239
        %v3352 = vadd.f32 %v2999, %v3239
        %v3353 = vadd.f32 %v3000, %v3239
        %v3354 = vadd.f32 %v3001, %v3239
        %v3355 = vadd.f32 %v3002, %v3239
        %v3356 = vadd.f32 %v3003, %v3239
        %v3357 = vadd.f32 %v3004, %v3239
        %v3358 = vadd.f32 %v3005, %v3239
        %v3359 = vadd.f32 %v3006, %v3239
        %v3360 = vadd.f32 %v3007, %v3239
        %v3361 = vadd.f32 %v3008, %v3239
        %v3362 = vadd.f32 %v3009, %v3239
        %v3363 = vadd.f32 %v3010, %v3239
        %v3364 = vadd.f32 %v3011, %v3239
        %v3365 = vadd.f32 %v3012, %v3244
        %v3366 = vadd.f32 %v3013, %v3244
        %v3367 = vadd.f32 %v3014, %v3244
        %v3368 = vadd.f32 %v3015, %v3244
        %v3369 = vadd.f32 %v3016, %v3244
        %v3370 = vadd.f32 %v3017, %v3244
        %v3371 = vadd.f32 %v3018, %v3244
        %v3372 = vadd.f32 %v3019, %v3244
        %v3373 = vadd.f32 %v3020, %v3244
        %v3374 = vadd.f32 %v3021, %v3244
        %v3375 = vadd.f32 %v3022, %v3244
        %v3376 = vadd.f32 %v3023, %v3244
        %v3377 = vadd.f32 %v3024, %v3244
        %v3378 = vadd.f32 %v3025, %v3244
        %v3379 = vadd.f32 %v3026, %v3244
        %v3380 = vadd.f32 %v3027, %v3244
        %v3381 = vadd.f32 %v3028, %v3249
        %v3382 = vadd.f32 %v3029, %v3249
        %v3383 = vadd.f32 %v3030, %v3249
        %v3384 = vadd.f32 %v3031, %v3249
        %v3385 = vadd.f32 %v3032, %v3249
        %v3386 = vadd.f32 %v3033, %v3249
        %v3387 = vadd.f32 %v3034, %v3249
        %v3388 = vadd.f32 %v3035, %v3249
        %v3389 = vadd.f32 %v3036, %v3249
        %v3390 = vadd.f32 %v3037, %v3249
        %v3391 = vadd.f32 %v3038, %v3249
        %v3392 = vadd.f32 %v3039, %v3249
        %v3393 = vadd.f32 %v3040, %v3249
        %v3394 = vadd.f32 %v3041, %v3249
        %v3395 = vadd.f32 %v3042, %v3249
        %v3396 = vadd.f32 %v3043, %v3249
        %v3397 = vadd.f32 %v3044, %v3254
        %v3398 = vadd.f32 %v3045, %v3254
        %v3399 = vadd.f32 %v3046, %v3254
        %v3400 = vadd.f32 %v3047, %v3254
        %v3401 = vadd.f32 %v3048, %v3254
        %v3402 = vadd.f32 %v3049, %v3254
        %v3403 = vadd.f32 %v3050, %v3254
        %v3404 = vadd.f32 %v3051, %v3254
        %v3405 = vadd.f32 %v3052, %v3254
        %v3406 = vadd.f32 %v3053, %v3254
        %v3407 = vadd.f32 %v3054, %v3254
        %v3408 = vadd.f32 %v3055, %v3254
        %v3409 = vadd.f32 %v3056, %v3254
        %v3410 = vadd.f32 %v3057, %v3254
        %v3411 = vadd.f32 %v3058, %v3254
        %v3412 = vadd.f32 %v3059, %v3254
        %v3413 = vadd.f32 %v3060, %v3259
        %v3414 = vadd.f32 %v3061, %v3259
        %v3415 = vadd.f32 %v3062, %v3259
        %v3416 = vadd.f32 %v3063, %v3259
        %v3417 = vadd.f32 %v3064, %v3259
        %v3418 = vadd.f32 %v3065, %v3259
        %v3419 = vadd.f32 %v3066, %v3259
        %v3420 = vadd.f32 %v3067, %v3259
        %v3421 = vadd.f32 %v3068, %v3259
        %v3422 = vadd.f32 %v3069, %v3259
        %v3423 = vadd.f32 %v3070, %v3259
        %v3424 = vadd.f32 %v3071, %v3259
        %v3425 = vadd.f32 %v3072, %v3259
        %v3426 = vadd.f32 %v3073, %v3259
        %v3427 = vadd.f32 %v3074, %v3259
        %v3428 = vadd.f32 %v3075, %v3259
        %v3429 = vadd.f32 %v3076, %v3264
        %v3430 = vadd.f32 %v3077, %v3264
        %v3431 = vadd.f32 %v3078, %v3264
        %v3432 = vadd.f32 %v3079, %v3264
        %v3433 = vadd.f32 %v3080, %v3264
        %v3434 = vadd.f32 %v3081, %v3264
        %v3435 = vadd.f32 %v3082, %v3264
        %v3436 = vadd.f32 %v3083, %v3264
        %v3437 = vadd.f32 %v3084, %v3264
        %v3438 = vadd.f32 %v3085, %v3264
        %v3439 = vadd.f32 %v3086, %v3264
        %v3440 = vadd.f32 %v3087, %v3264
        %v3441 = vadd.f32 %v3088, %v3264
        %v3442 = vadd.f32 %v3089, %v3264
        %v3443 = vadd.f32 %v3090, %v3264
        %v3444 = vadd.f32 %v3091, %v3264
        %v3445 = vadd.f32 %v3092, %v3269
        %v3446 = vadd.f32 %v3093, %v3269
        %v3447 = vadd.f32 %v3094, %v3269
        %v3448 = vadd.f32 %v3095, %v3269
        %v3449 = vadd.f32 %v3096, %v3269
        %v3450 = vadd.f32 %v3097, %v3269
        %v3451 = vadd.f32 %v3098, %v3269
        %v3452 = vadd.f32 %v3099, %v3269
        %v3453 = vadd.f32 %v3100, %v3269
        %v3454 = vadd.f32 %v3101, %v3269
        %v3455 = vadd.f32 %v3102, %v3269
        %v3456 = vadd.f32 %v3103, %v3269
        %v3457 = vadd.f32 %v3104, %v3269
        %v3458 = vadd.f32 %v3105, %v3269
        %v3459 = vadd.f32 %v3106, %v3269
        %v3460 = vadd.f32 %v3107, %v3269
        %v3461 = vadd.f32 %v3108, %v3274
        %v3462 = vadd.f32 %v3109, %v3274
        %v3463 = vadd.f32 %v3110, %v3274
        %v3464 = vadd.f32 %v3111, %v3274
        %v3465 = vadd.f32 %v3112, %v3274
        %v3466 = vadd.f32 %v3113, %v3274
        %v3467 = vadd.f32 %v3114, %v3274
        %v3468 = vadd.f32 %v3115, %v3274
        %v3469 = vadd.f32 %v3116, %v3274
        %v3470 = vadd.f32 %v3117, %v3274
        %v3471 = vadd.f32 %v3118, %v3274
        %v3472 = vadd.f32 %v3119, %v3274
        %v3473 = vadd.f32 %v3120, %v3274
        %v3474 = vadd.f32 %v3121, %v3274
        %v3475 = vadd.f32 %v3122, %v3274
        %v3476 = vadd.f32 %v3123, %v3274
        %v3477 = vadd.f32 %v3124, %v3279
        %v3478 = vadd.f32 %v3125, %v3279
        %v3479 = vadd.f32 %v3126, %v3279
        %v3480 = vadd.f32 %v3127, %v3279
        %v3481 = vadd.f32 %v3128, %v3279
        %v3482 = vadd.f32 %v3129, %v3279
        %v3483 = vadd.f32 %v3130, %v3279
        %v3484 = vadd.f32 %v3131, %v3279
        %v3485 = vadd.f32 %v3132, %v3279
        %v3486 = vadd.f32 %v3133, %v3279
        %v3487 = vadd.f32 %v3134, %v3279
        %v3488 = vadd.f32 %v3135, %v3279
        %v3489 = vadd.f32 %v3136, %v3279
        %v3490 = vadd.f32 %v3137, %v3279
        %v3491 = vadd.f32 %v3138, %v3279
        %v3492 = vadd.f32 %v3139, %v3279
        %v3493 = vadd.f32 %v3140, %v3284
        %v3494 = vadd.f32 %v3141, %v3284
        %v3495 = vadd.f32 %v3142, %v3284
        %v3496 = vadd.f32 %v3143, %v3284
        %v3497 = vadd.f32 %v3144, %v3284
        %v3498 = vadd.f32 %v3145, %v3284
        %v3499 = vadd.f32 %v3146, %v3284
        %v3500 = vadd.f32 %v3147, %v3284
        %v3501 = vadd.f32 %v3148, %v3284
        %v3502 = vadd.f32 %v3149, %v3284
        %v3503 = vadd.f32 %v3150, %v3284
        %v3504 = vadd.f32 %v3151, %v3284
        %v3505 = vadd.f32 %v3152, %v3284
        %v3506 = vadd.f32 %v3153, %v3284
        %v3507 = vadd.f32 %v3154, %v3284
        %v3508 = vadd.f32 %v3155, %v3284
        %v3509 = vadd.f32 %v3156, %v3289
        %v3510 = vadd.f32 %v3157, %v3289
        %v3511 = vadd.f32 %v3158, %v3289
        %v3512 = vadd.f32 %v3159, %v3289
        %v3513 = vadd.f32 %v3160, %v3289
        %v3514 = vadd.f32 %v3161, %v3289
        %v3515 = vadd.f32 %v3162, %v3289
        %v3516 = vadd.f32 %v3163, %v3289
        %v3517 = vadd.f32 %v3164, %v3289
        %v3518 = vadd.f32 %v3165, %v3289
        %v3519 = vadd.f32 %v3166, %v3289
        %v3520 = vadd.f32 %v3167, %v3289
        %v3521 = vadd.f32 %v3168, %v3289
        %v3522 = vadd.f32 %v3169, %v3289
        %v3523 = vadd.f32 %v3170, %v3289
        %v3524 = vadd.f32 %v3171, %v3289
        %v3525 = vadd.f32 %v3172, %v3294
        %v3526 = vadd.f32 %v3173, %v3294
        %v3527 = vadd.f32 %v3174, %v3294
        %v3528 = vadd.f32 %v3175, %v3294
        %v3529 = vadd.f32 %v3176, %v3294
        %v3530 = vadd.f32 %v3177, %v3294
        %v3531 = vadd.f32 %v3178, %v3294
        %v3532 = vadd.f32 %v3179, %v3294
        %v3533 = vadd.f32 %v3180, %v3294
        %v3534 = vadd.f32 %v3181, %v3294
        %v3535 = vadd.f32 %v3182, %v3294
        %v3536 = vadd.f32 %v3183, %v3294
        %v3537 = vadd.f32 %v3184, %v3294
        %v3538 = vadd.f32 %v3185, %v3294
        %v3539 = vadd.f32 %v3186, %v3294
        %v3540 = vadd.f32 %v3187, %v3294
        %v3541 = vadd.f32 %v3188, %v3299
        %v3542 = vadd.f32 %v3189, %v3299
        %v3543 = vadd.f32 %v3190, %v3299
        %v3544 = vadd.f32 %v3191, %v3299
        %v3545 = vadd.f32 %v3192, %v3299
        %v3546 = vadd.f32 %v3193, %v3299
        %v3547 = vadd.f32 %v3194, %v3299
        %v3548 = vadd.f32 %v3195, %v3299
        %v3549 = vadd.f32 %v3196, %v3299
        %v3550 = vadd.f32 %v3197, %v3299
        %v3551 = vadd.f32 %v3198, %v3299
        %v3552 = vadd.f32 %v3199, %v3299
        %v3553 = vadd.f32 %v3200, %v3299
        %v3554 = vadd.f32 %v3201, %v3299
        %v3555 = vadd.f32 %v3202, %v3299
        %v3556 = vadd.f32 %v3203, %v3299
        %vm3557 = vcmp.ge.f32.partialorder %v3301, 0.0
        %vm3558 = vcmp.ge.f32.partialorder %v3302, 0.0
        %vm3559 = vcmp.ge.f32.partialorder %v3303, 0.0
        %vm3560 = vcmp.ge.f32.partialorder %v3304, 0.0
        %vm3561 = vcmp.ge.f32.partialorder %v3305, 0.0
        %vm3562 = vcmp.ge.f32.partialorder %v3306, 0.0
        %vm3563 = vcmp.ge.f32.partialorder %v3307, 0.0
        %vm3564 = vcmp.ge.f32.partialorder %v3308, 0.0
        %vm3565 = vcmp.ge.f32.partialorder %v3309, 0.0
        %vm3566 = vcmp.ge.f32.partialorder %v3310, 0.0
        %vm3567 = vcmp.ge.f32.partialorder %v3311, 0.0
        %vm3568 = vcmp.ge.f32.partialorder %v3312, 0.0
        %vm3569 = vcmp.ge.f32.partialorder %v3313, 0.0
        %vm3570 = vcmp.ge.f32.partialorder %v3314, 0.0
        %vm3571 = vcmp.ge.f32.partialorder %v3315, 0.0
        %vm3572 = vcmp.ge.f32.partialorder %v3316, 0.0
        %vm3573 = vcmp.ge.f32.partialorder %v3317, 0.0
        %vm3574 = vcmp.ge.f32.partialorder %v3318, 0.0
        %vm3575 = vcmp.ge.f32.partialorder %v3319, 0.0
        %vm3576 = vcmp.ge.f32.partialorder %v3320, 0.0
        %vm3577 = vcmp.ge.f32.partialorder %v3321, 0.0
        %vm3578 = vcmp.ge.f32.partialorder %v3322, 0.0
        %vm3579 = vcmp.ge.f32.partialorder %v3323, 0.0
        %vm3580 = vcmp.ge.f32.partialorder %v3324, 0.0
        %vm3581 = vcmp.ge.f32.partialorder %v3325, 0.0
        %vm3582 = vcmp.ge.f32.partialorder %v3326, 0.0
        %vm3583 = vcmp.ge.f32.partialorder %v3327, 0.0
        %vm3584 = vcmp.ge.f32.partialorder %v3328, 0.0
        %vm3585 = vcmp.ge.f32.partialorder %v3329, 0.0
        %vm3586 = vcmp.ge.f32.partialorder %v3330, 0.0
        %vm3587 = vcmp.ge.f32.partialorder %v3331, 0.0
        %vm3588 = vcmp.ge.f32.partialorder %v3332, 0.0
        %vm3589 = vcmp.ge.f32.partialorder %v3333, 0.0
        %vm3590 = vcmp.ge.f32.partialorder %v3334, 0.0
        %vm3591 = vcmp.ge.f32.partialorder %v3335, 0.0
        %vm3592 = vcmp.ge.f32.partialorder %v3336, 0.0
        %vm3593 = vcmp.ge.f32.partialorder %v3337, 0.0
        %vm3594 = vcmp.ge.f32.partialorder %v3338, 0.0
        %vm3595 = vcmp.ge.f32.partialorder %v3339, 0.0
        %vm3596 = vcmp.ge.f32.partialorder %v3340, 0.0
        %vm3597 = vcmp.ge.f32.partialorder %v3341, 0.0
        %vm3598 = vcmp.ge.f32.partialorder %v3342, 0.0
        %vm3599 = vcmp.ge.f32.partialorder %v3343, 0.0
        %vm3600 = vcmp.ge.f32.partialorder %v3344, 0.0
        %vm3601 = vcmp.ge.f32.partialorder %v3345, 0.0
        %vm3602 = vcmp.ge.f32.partialorder %v3346, 0.0
        %vm3603 = vcmp.ge.f32.partialorder %v3347, 0.0
        %vm3604 = vcmp.ge.f32.partialorder %v3348, 0.0
        %vm3605 = vcmp.ge.f32.partialorder %v3349, 0.0
        %vm3606 = vcmp.ge.f32.partialorder %v3350, 0.0
        %vm3607 = vcmp.ge.f32.partialorder %v3351, 0.0
        %vm3608 = vcmp.ge.f32.partialorder %v3352, 0.0
        %vm3609 = vcmp.ge.f32.partialorder %v3353, 0.0
        %vm3610 = vcmp.ge.f32.partialorder %v3354, 0.0
        %vm3611 = vcmp.ge.f32.partialorder %v3355, 0.0
        %vm3612 = vcmp.ge.f32.partialorder %v3356, 0.0
        %vm3613 = vcmp.ge.f32.partialorder %v3357, 0.0
        %vm3614 = vcmp.ge.f32.partialorder %v3358, 0.0
        %vm3615 = vcmp.ge.f32.partialorder %v3359, 0.0
        %vm3616 = vcmp.ge.f32.partialorder %v3360, 0.0
        %vm3617 = vcmp.ge.f32.partialorder %v3361, 0.0
        %vm3618 = vcmp.ge.f32.partialorder %v3362, 0.0
        %vm3619 = vcmp.ge.f32.partialorder %v3363, 0.0
        %vm3620 = vcmp.ge.f32.partialorder %v3364, 0.0
        %vm3621 = vcmp.ge.f32.partialorder %v3365, 0.0
        %vm3622 = vcmp.ge.f32.partialorder %v3366, 0.0
        %vm3623 = vcmp.ge.f32.partialorder %v3367, 0.0
        %vm3624 = vcmp.ge.f32.partialorder %v3368, 0.0
        %vm3625 = vcmp.ge.f32.partialorder %v3369, 0.0
        %vm3626 = vcmp.ge.f32.partialorder %v3370, 0.0
        %vm3627 = vcmp.ge.f32.partialorder %v3371, 0.0
        %vm3628 = vcmp.ge.f32.partialorder %v3372, 0.0
        %vm3629 = vcmp.ge.f32.partialorder %v3373, 0.0
        %vm3630 = vcmp.ge.f32.partialorder %v3374, 0.0
        %vm3631 = vcmp.ge.f32.partialorder %v3375, 0.0
        %vm3632 = vcmp.ge.f32.partialorder %v3376, 0.0
        %vm3633 = vcmp.ge.f32.partialorder %v3377, 0.0
        %vm3634 = vcmp.ge.f32.partialorder %v3378, 0.0
        %vm3635 = vcmp.ge.f32.partialorder %v3379, 0.0
        %vm3636 = vcmp.ge.f32.partialorder %v3380, 0.0
        %vm3637 = vcmp.ge.f32.partialorder %v3381, 0.0
        %vm3638 = vcmp.ge.f32.partialorder %v3382, 0.0
        %vm3639 = vcmp.ge.f32.partialorder %v3383, 0.0
        %vm3640 = vcmp.ge.f32.partialorder %v3384, 0.0
        %vm3641 = vcmp.ge.f32.partialorder %v3385, 0.0
        %vm3642 = vcmp.ge.f32.partialorder %v3386, 0.0
        %vm3643 = vcmp.ge.f32.partialorder %v3387, 0.0
        %vm3644 = vcmp.ge.f32.partialorder %v3388, 0.0
        %vm3645 = vcmp.ge.f32.partialorder %v3389, 0.0
        %vm3646 = vcmp.ge.f32.partialorder %v3390, 0.0
        %vm3647 = vcmp.ge.f32.partialorder %v3391, 0.0
        %vm3648 = vcmp.ge.f32.partialorder %v3392, 0.0
        %vm3649 = vcmp.ge.f32.partialorder %v3393, 0.0
        %vm3650 = vcmp.ge.f32.partialorder %v3394, 0.0
        %vm3651 = vcmp.ge.f32.partialorder %v3395, 0.0
        %vm3652 = vcmp.ge.f32.partialorder %v3396, 0.0
        %vm3653 = vcmp.ge.f32.partialorder %v3397, 0.0
        %vm3654 = vcmp.ge.f32.partialorder %v3398, 0.0
        %vm3655 = vcmp.ge.f32.partialorder %v3399, 0.0
        %vm3656 = vcmp.ge.f32.partialorder %v3400, 0.0
        %vm3657 = vcmp.ge.f32.partialorder %v3401, 0.0
        %vm3658 = vcmp.ge.f32.partialorder %v3402, 0.0
        %vm3659 = vcmp.ge.f32.partialorder %v3403, 0.0
        %vm3660 = vcmp.ge.f32.partialorder %v3404, 0.0
        %vm3661 = vcmp.ge.f32.partialorder %v3405, 0.0
        %vm3662 = vcmp.ge.f32.partialorder %v3406, 0.0
        %vm3663 = vcmp.ge.f32.partialorder %v3407, 0.0
        %vm3664 = vcmp.ge.f32.partialorder %v3408, 0.0
        %vm3665 = vcmp.ge.f32.partialorder %v3409, 0.0
        %vm3666 = vcmp.ge.f32.partialorder %v3410, 0.0
        %vm3667 = vcmp.ge.f32.partialorder %v3411, 0.0
        %vm3668 = vcmp.ge.f32.partialorder %v3412, 0.0
        %vm3669 = vcmp.ge.f32.partialorder %v3413, 0.0
        %vm3670 = vcmp.ge.f32.partialorder %v3414, 0.0
        %vm3671 = vcmp.ge.f32.partialorder %v3415, 0.0
        %vm3672 = vcmp.ge.f32.partialorder %v3416, 0.0
        %vm3673 = vcmp.ge.f32.partialorder %v3417, 0.0
        %vm3674 = vcmp.ge.f32.partialorder %v3418, 0.0
        %vm3675 = vcmp.ge.f32.partialorder %v3419, 0.0
        %vm3676 = vcmp.ge.f32.partialorder %v3420, 0.0
        %vm3677 = vcmp.ge.f32.partialorder %v3421, 0.0
        %vm3678 = vcmp.ge.f32.partialorder %v3422, 0.0
        %vm3679 = vcmp.ge.f32.partialorder %v3423, 0.0
        %vm3680 = vcmp.ge.f32.partialorder %v3424, 0.0
        %vm3681 = vcmp.ge.f32.partialorder %v3425, 0.0
        %vm3682 = vcmp.ge.f32.partialorder %v3426, 0.0
        %vm3683 = vcmp.ge.f32.partialorder %v3427, 0.0
        %vm3684 = vcmp.ge.f32.partialorder %v3428, 0.0
        %vm3685 = vcmp.ge.f32.partialorder %v3429, 0.0
        %vm3686 = vcmp.ge.f32.partialorder %v3430, 0.0
        %vm3687 = vcmp.ge.f32.partialorder %v3431, 0.0
        %vm3688 = vcmp.ge.f32.partialorder %v3432, 0.0
        %vm3689 = vcmp.ge.f32.partialorder %v3433, 0.0
        %vm3690 = vcmp.ge.f32.partialorder %v3434, 0.0
        %vm3691 = vcmp.ge.f32.partialorder %v3435, 0.0
        %vm3692 = vcmp.ge.f32.partialorder %v3436, 0.0
        %vm3693 = vcmp.ge.f32.partialorder %v3437, 0.0
        %vm3694 = vcmp.ge.f32.partialorder %v3438, 0.0
        %vm3695 = vcmp.ge.f32.partialorder %v3439, 0.0
        %vm3696 = vcmp.ge.f32.partialorder %v3440, 0.0
        %vm3697 = vcmp.ge.f32.partialorder %v3441, 0.0
        %vm3698 = vcmp.ge.f32.partialorder %v3442, 0.0
        %vm3699 = vcmp.ge.f32.partialorder %v3443, 0.0
        %vm3700 = vcmp.ge.f32.partialorder %v3444, 0.0
        %vm3701 = vcmp.ge.f32.partialorder %v3445, 0.0
        %vm3702 = vcmp.ge.f32.partialorder %v3446, 0.0
        %vm3703 = vcmp.ge.f32.partialorder %v3447, 0.0
        %vm3704 = vcmp.ge.f32.partialorder %v3448, 0.0
        %vm3705 = vcmp.ge.f32.partialorder %v3449, 0.0
        %vm3706 = vcmp.ge.f32.partialorder %v3450, 0.0
        %vm3707 = vcmp.ge.f32.partialorder %v3451, 0.0
        %vm3708 = vcmp.ge.f32.partialorder %v3452, 0.0
        %vm3709 = vcmp.ge.f32.partialorder %v3453, 0.0
        %vm3710 = vcmp.ge.f32.partialorder %v3454, 0.0
        %vm3711 = vcmp.ge.f32.partialorder %v3455, 0.0
        %vm3712 = vcmp.ge.f32.partialorder %v3456, 0.0
        %vm3713 = vcmp.ge.f32.partialorder %v3457, 0.0
        %vm3714 = vcmp.ge.f32.partialorder %v3458, 0.0
        %vm3715 = vcmp.ge.f32.partialorder %v3459, 0.0
        %vm3716 = vcmp.ge.f32.partialorder %v3460, 0.0
        %vm3717 = vcmp.ge.f32.partialorder %v3461, 0.0
        %vm3718 = vcmp.ge.f32.partialorder %v3462, 0.0
        %vm3719 = vcmp.ge.f32.partialorder %v3463, 0.0
        %vm3720 = vcmp.ge.f32.partialorder %v3464, 0.0
        %vm3721 = vcmp.ge.f32.partialorder %v3465, 0.0
        %vm3722 = vcmp.ge.f32.partialorder %v3466, 0.0
        %vm3723 = vcmp.ge.f32.partialorder %v3467, 0.0
        %vm3724 = vcmp.ge.f32.partialorder %v3468, 0.0
        %vm3725 = vcmp.ge.f32.partialorder %v3469, 0.0
        %vm3726 = vcmp.ge.f32.partialorder %v3470, 0.0
        %vm3727 = vcmp.ge.f32.partialorder %v3471, 0.0
        %vm3728 = vcmp.ge.f32.partialorder %v3472, 0.0
        %vm3729 = vcmp.ge.f32.partialorder %v3473, 0.0
        %vm3730 = vcmp.ge.f32.partialorder %v3474, 0.0
        %vm3731 = vcmp.ge.f32.partialorder %v3475, 0.0
        %vm3732 = vcmp.ge.f32.partialorder %v3476, 0.0
        %vm3733 = vcmp.ge.f32.partialorder %v3477, 0.0
        %vm3734 = vcmp.ge.f32.partialorder %v3478, 0.0
        %vm3735 = vcmp.ge.f32.partialorder %v3479, 0.0
        %vm3736 = vcmp.ge.f32.partialorder %v3480, 0.0
        %vm3737 = vcmp.ge.f32.partialorder %v3481, 0.0
        %vm3738 = vcmp.ge.f32.partialorder %v3482, 0.0
        %vm3739 = vcmp.ge.f32.partialorder %v3483, 0.0
        %vm3740 = vcmp.ge.f32.partialorder %v3484, 0.0
        %vm3741 = vcmp.ge.f32.partialorder %v3485, 0.0
        %vm3742 = vcmp.ge.f32.partialorder %v3486, 0.0
        %vm3743 = vcmp.ge.f32.partialorder %v3487, 0.0
        %vm3744 = vcmp.ge.f32.partialorder %v3488, 0.0
        %vm3745 = vcmp.ge.f32.partialorder %v3489, 0.0
        %vm3746 = vcmp.ge.f32.partialorder %v3490, 0.0
        %vm3747 = vcmp.ge.f32.partialorder %v3491, 0.0
        %vm3748 = vcmp.ge.f32.partialorder %v3492, 0.0
        %vm3749 = vcmp.ge.f32.partialorder %v3493, 0.0
        %vm3750 = vcmp.ge.f32.partialorder %v3494, 0.0
        %vm3751 = vcmp.ge.f32.partialorder %v3495, 0.0
        %vm3752 = vcmp.ge.f32.partialorder %v3496, 0.0
        %vm3753 = vcmp.ge.f32.partialorder %v3497, 0.0
        %vm3754 = vcmp.ge.f32.partialorder %v3498, 0.0
        %vm3755 = vcmp.ge.f32.partialorder %v3499, 0.0
        %vm3756 = vcmp.ge.f32.partialorder %v3500, 0.0
        %vm3757 = vcmp.ge.f32.partialorder %v3501, 0.0
        %vm3758 = vcmp.ge.f32.partialorder %v3502, 0.0
        %vm3759 = vcmp.ge.f32.partialorder %v3503, 0.0
        %vm3760 = vcmp.ge.f32.partialorder %v3504, 0.0
        %vm3761 = vcmp.ge.f32.partialorder %v3505, 0.0
        %vm3762 = vcmp.ge.f32.partialorder %v3506, 0.0
        %vm3763 = vcmp.ge.f32.partialorder %v3507, 0.0
        %vm3764 = vcmp.ge.f32.partialorder %v3508, 0.0
        %vm3765 = vcmp.ge.f32.partialorder %v3509, 0.0
        %vm3766 = vcmp.ge.f32.partialorder %v3510, 0.0
        %vm3767 = vcmp.ge.f32.partialorder %v3511, 0.0
        %vm3768 = vcmp.ge.f32.partialorder %v3512, 0.0
        %vm3769 = vcmp.ge.f32.partialorder %v3513, 0.0
        %vm3770 = vcmp.ge.f32.partialorder %v3514, 0.0
        %vm3771 = vcmp.ge.f32.partialorder %v3515, 0.0
        %vm3772 = vcmp.ge.f32.partialorder %v3516, 0.0
        %vm3773 = vcmp.ge.f32.partialorder %v3517, 0.0
        %vm3774 = vcmp.ge.f32.partialorder %v3518, 0.0
        %vm3775 = vcmp.ge.f32.partialorder %v3519, 0.0
        %vm3776 = vcmp.ge.f32.partialorder %v3520, 0.0
        %vm3777 = vcmp.ge.f32.partialorder %v3521, 0.0
        %vm3778 = vcmp.ge.f32.partialorder %v3522, 0.0
        %vm3779 = vcmp.ge.f32.partialorder %v3523, 0.0
        %vm3780 = vcmp.ge.f32.partialorder %v3524, 0.0
        %vm3781 = vcmp.ge.f32.partialorder %v3525, 0.0
        %vm3782 = vcmp.ge.f32.partialorder %v3526, 0.0
        %vm3783 = vcmp.ge.f32.partialorder %v3527, 0.0
        %vm3784 = vcmp.ge.f32.partialorder %v3528, 0.0
        %vm3785 = vcmp.ge.f32.partialorder %v3529, 0.0
        %vm3786 = vcmp.ge.f32.partialorder %v3530, 0.0
        %vm3787 = vcmp.ge.f32.partialorder %v3531, 0.0
        %vm3788 = vcmp.ge.f32.partialorder %v3532, 0.0
        %vm3789 = vcmp.ge.f32.partialorder %v3533, 0.0
        %vm3790 = vcmp.ge.f32.partialorder %v3534, 0.0
        %vm3791 = vcmp.ge.f32.partialorder %v3535, 0.0
        %vm3792 = vcmp.ge.f32.partialorder %v3536, 0.0
        %vm3793 = vcmp.ge.f32.partialorder %v3537, 0.0
        %vm3794 = vcmp.ge.f32.partialorder %v3538, 0.0
        %vm3795 = vcmp.ge.f32.partialorder %v3539, 0.0
        %vm3796 = vcmp.ge.f32.partialorder %v3540, 0.0
        %vm3797 = vcmp.ge.f32.partialorder %v3541, 0.0
        %vm3798 = vcmp.ge.f32.partialorder %v3542, 0.0
        %vm3799 = vcmp.ge.f32.partialorder %v3543, 0.0
        %vm3800 = vcmp.ge.f32.partialorder %v3544, 0.0
        %vm3801 = vcmp.ge.f32.partialorder %v3545, 0.0
        %vm3802 = vcmp.ge.f32.partialorder %v3546, 0.0
        %vm3803 = vcmp.ge.f32.partialorder %v3547, 0.0
        %vm3804 = vcmp.ge.f32.partialorder %v3548, 0.0
        %vm3805 = vcmp.ge.f32.partialorder %v3549, 0.0
        %vm3806 = vcmp.ge.f32.partialorder %v3550, 0.0
        %vm3807 = vcmp.ge.f32.partialorder %v3551, 0.0
        %vm3808 = vcmp.ge.f32.partialorder %v3552, 0.0
        %vm3809 = vcmp.ge.f32.partialorder %v3553, 0.0
        %vm3810 = vcmp.ge.f32.partialorder %v3554, 0.0
        %vm3811 = vcmp.ge.f32.partialorder %v3555, 0.0
        %vm3812 = vcmp.ge.f32.partialorder %v3556, 0.0
        %v3813 = vmul.f32 %v3301, 0.01
        %v3814 = vmul.f32 %v3302, 0.01
        %v3815 = vmul.f32 %v3303, 0.01
        %v3816 = vmul.f32 %v3304, 0.01
        %v3817 = vmul.f32 %v3305, 0.01
        %v3818 = vmul.f32 %v3306, 0.01
        %v3819 = vmul.f32 %v3307, 0.01
        %v3820 = vmul.f32 %v3308, 0.01
        %v3821 = vmul.f32 %v3309, 0.01
        %v3822 = vmul.f32 %v3310, 0.01
        %v3823 = vmul.f32 %v3311, 0.01
        %v3824 = vmul.f32 %v3312, 0.01
        %v3825 = vmul.f32 %v3313, 0.01
        %v3826 = vmul.f32 %v3314, 0.01
        %v3827 = vmul.f32 %v3315, 0.01
        %v3828 = vmul.f32 %v3316, 0.01
        %v3829 = vmul.f32 %v3317, 0.01
        %v3830 = vmul.f32 %v3318, 0.01
        %v3831 = vmul.f32 %v3319, 0.01
        %v3832 = vmul.f32 %v3320, 0.01
        %v3833 = vmul.f32 %v3321, 0.01
        %v3834 = vmul.f32 %v3322, 0.01
        %v3835 = vmul.f32 %v3323, 0.01
        %v3836 = vmul.f32 %v3324, 0.01
        %v3837 = vmul.f32 %v3325, 0.01
        %v3838 = vmul.f32 %v3326, 0.01
        %v3839 = vmul.f32 %v3327, 0.01
        %v3840 = vmul.f32 %v3328, 0.01
        %v3841 = vmul.f32 %v3329, 0.01
        %v3842 = vmul.f32 %v3330, 0.01
        %v3843 = vmul.f32 %v3331, 0.01
        %v3844 = vmul.f32 %v3332, 0.01
        %v3845 = vmul.f32 %v3333, 0.01
        %v3846 = vmul.f32 %v3334, 0.01
        %v3847 = vmul.f32 %v3335, 0.01
        %v3848 = vmul.f32 %v3336, 0.01
        %v3849 = vmul.f32 %v3337, 0.01
        %v3850 = vmul.f32 %v3338, 0.01
        %v3851 = vmul.f32 %v3339, 0.01
        %v3852 = vmul.f32 %v3340, 0.01
        %v3853 = vmul.f32 %v3341, 0.01
        %v3854 = vmul.f32 %v3342, 0.01
        %v3855 = vmul.f32 %v3343, 0.01
        %v3856 = vmul.f32 %v3344, 0.01
        %v3857 = vmul.f32 %v3345, 0.01
        %v3858 = vmul.f32 %v3346, 0.01
        %v3859 = vmul.f32 %v3347, 0.01
        %v3860 = vmul.f32 %v3348, 0.01
        %v3861 = vmul.f32 %v3349, 0.01
        %v3862 = vmul.f32 %v3350, 0.01
        %v3863 = vmul.f32 %v3351, 0.01
        %v3864 = vmul.f32 %v3352, 0.01
        %v3865 = vmul.f32 %v3353, 0.01
        %v3866 = vmul.f32 %v3354, 0.01
        %v3867 = vmul.f32 %v3355, 0.01
        %v3868 = vmul.f32 %v3356, 0.01
        %v3869 = vmul.f32 %v3357, 0.01
        %v3870 = vmul.f32 %v3358, 0.01
        %v3871 = vmul.f32 %v3359, 0.01
        %v3872 = vmul.f32 %v3360, 0.01
        %v3873 = vmul.f32 %v3361, 0.01
        %v3874 = vmul.f32 %v3362, 0.01
        %v3875 = vmul.f32 %v3363, 0.01
        %v3876 = vmul.f32 %v3364, 0.01
        %v3877 = vmul.f32 %v3365, 0.01
        %v3878 = vmul.f32 %v3366, 0.01
        %v3879 = vmul.f32 %v3367, 0.01
        %v3880 = vmul.f32 %v3368, 0.01
        %v3881 = vmul.f32 %v3369, 0.01
        %v3882 = vmul.f32 %v3370, 0.01
        %v3883 = vmul.f32 %v3371, 0.01
        %v3884 = vmul.f32 %v3372, 0.01
        %v3885 = vmul.f32 %v3373, 0.01
        %v3886 = vmul.f32 %v3374, 0.01
        %v3887 = vmul.f32 %v3375, 0.01
        %v3888 = vmul.f32 %v3376, 0.01
        %v3889 = vmul.f32 %v3377, 0.01
        %v3890 = vmul.f32 %v3378, 0.01
        %v3891 = vmul.f32 %v3379, 0.01
        %v3892 = vmul.f32 %v3380, 0.01
        %v3893 = vmul.f32 %v3381, 0.01
        %v3894 = vmul.f32 %v3382, 0.01
        %v3895 = vmul.f32 %v3383, 0.01
        %v3896 = vmul.f32 %v3384, 0.01
        %v3897 = vmul.f32 %v3385, 0.01
        %v3898 = vmul.f32 %v3386, 0.01
        %v3899 = vmul.f32 %v3387, 0.01
        %v3900 = vmul.f32 %v3388, 0.01
        %v3901 = vmul.f32 %v3389, 0.01
        %v3902 = vmul.f32 %v3390, 0.01
        %v3903 = vmul.f32 %v3391, 0.01
        %v3904 = vmul.f32 %v3392, 0.01
        %v3905 = vmul.f32 %v3393, 0.01
        %v3906 = vmul.f32 %v3394, 0.01
        %v3907 = vmul.f32 %v3395, 0.01
        %v3908 = vmul.f32 %v3396, 0.01
        %v3909 = vmul.f32 %v3397, 0.01
        %v3910 = vmul.f32 %v3398, 0.01
        %v3911 = vmul.f32 %v3399, 0.01
        %v3912 = vmul.f32 %v3400, 0.01
        %v3913 = vmul.f32 %v3401, 0.01
        %v3914 = vmul.f32 %v3402, 0.01
        %v3915 = vmul.f32 %v3403, 0.01
        %v3916 = vmul.f32 %v3404, 0.01
        %v3917 = vmul.f32 %v3405, 0.01
        %v3918 = vmul.f32 %v3406, 0.01
        %v3919 = vmul.f32 %v3407, 0.01
        %v3920 = vmul.f32 %v3408, 0.01
        %v3921 = vmul.f32 %v3409, 0.01
        %v3922 = vmul.f32 %v3410, 0.01
        %v3923 = vmul.f32 %v3411, 0.01
        %v3924 = vmul.f32 %v3412, 0.01
        %v3925 = vmul.f32 %v3413, 0.01
        %v3926 = vmul.f32 %v3414, 0.01
        %v3927 = vmul.f32 %v3415, 0.01
        %v3928 = vmul.f32 %v3416, 0.01
        %v3929 = vmul.f32 %v3417, 0.01
        %v3930 = vmul.f32 %v3418, 0.01
        %v3931 = vmul.f32 %v3419, 0.01
        %v3932 = vmul.f32 %v3420, 0.01
        %v3933 = vmul.f32 %v3421, 0.01
        %v3934 = vmul.f32 %v3422, 0.01
        %v3935 = vmul.f32 %v3423, 0.01
        %v3936 = vmul.f32 %v3424, 0.01
        %v3937 = vmul.f32 %v3425, 0.01
        %v3938 = vmul.f32 %v3426, 0.01
        %v3939 = vmul.f32 %v3427, 0.01
        %v3940 = vmul.f32 %v3428, 0.01
        %v3941 = vmul.f32 %v3429, 0.01
        %v3942 = vmul.f32 %v3430, 0.01
        %v3943 = vmul.f32 %v3431, 0.01
        %v3944 = vmul.f32 %v3432, 0.01
        %v3945 = vmul.f32 %v3433, 0.01
        %v3946 = vmul.f32 %v3434, 0.01
        %v3947 = vmul.f32 %v3435, 0.01
        %v3948 = vmul.f32 %v3436, 0.01
        %v3949 = vmul.f32 %v3437, 0.01
        %v3950 = vmul.f32 %v3438, 0.01
        %v3951 = vmul.f32 %v3439, 0.01
        %v3952 = vmul.f32 %v3440, 0.01
        %v3953 = vmul.f32 %v3441, 0.01
        %v3954 = vmul.f32 %v3442, 0.01
        %v3955 = vmul.f32 %v3443, 0.01
        %v3956 = vmul.f32 %v3444, 0.01
        %v3957 = vmul.f32 %v3445, 0.01
        %v3958 = vmul.f32 %v3446, 0.01
        %v3959 = vmul.f32 %v3447, 0.01
        %v3960 = vmul.f32 %v3448, 0.01
        %v3961 = vmul.f32 %v3449, 0.01
        %v3962 = vmul.f32 %v3450, 0.01
        %v3963 = vmul.f32 %v3451, 0.01
        %v3964 = vmul.f32 %v3452, 0.01
        %v3965 = vmul.f32 %v3453, 0.01
        %v3966 = vmul.f32 %v3454, 0.01
        %v3967 = vmul.f32 %v3455, 0.01
        %v3968 = vmul.f32 %v3456, 0.01
        %v3969 = vmul.f32 %v3457, 0.01
        %v3970 = vmul.f32 %v3458, 0.01
        %v3971 = vmul.f32 %v3459, 0.01
        %v3972 = vmul.f32 %v3460, 0.01
        %v3973 = vmul.f32 %v3461, 0.01
        %v3974 = vmul.f32 %v3462, 0.01
        %v3975 = vmul.f32 %v3463, 0.01
        %v3976 = vmul.f32 %v3464, 0.01
        %v3977 = vmul.f32 %v3465, 0.01
        %v3978 = vmul.f32 %v3466, 0.01
        %v3979 = vmul.f32 %v3467, 0.01
        %v3980 = vmul.f32 %v3468, 0.01
        %v3981 = vmul.f32 %v3469, 0.01
        %v3982 = vmul.f32 %v3470, 0.01
        %v3983 = vmul.f32 %v3471, 0.01
        %v3984 = vmul.f32 %v3472, 0.01
        %v3985 = vmul.f32 %v3473, 0.01
        %v3986 = vmul.f32 %v3474, 0.01
        %v3987 = vmul.f32 %v3475, 0.01
        %v3988 = vmul.f32 %v3476, 0.01
        %v3989 = vmul.f32 %v3477, 0.01
        %v3990 = vmul.f32 %v3478, 0.01
        %v3991 = vmul.f32 %v3479, 0.01
        %v3992 = vmul.f32 %v3480, 0.01
        %v3993 = vmul.f32 %v3481, 0.01
        %v3994 = vmul.f32 %v3482, 0.01
        %v3995 = vmul.f32 %v3483, 0.01
        %v3996 = vmul.f32 %v3484, 0.01
        %v3997 = vmul.f32 %v3485, 0.01
        %v3998 = vmul.f32 %v3486, 0.01
        %v3999 = vmul.f32 %v3487, 0.01
        %v4000 = vmul.f32 %v3488, 0.01
        %v4001 = vmul.f32 %v3489, 0.01
        %v4002 = vmul.f32 %v3490, 0.01
        %v4003 = vmul.f32 %v3491, 0.01
        %v4004 = vmul.f32 %v3492, 0.01
        %v4005 = vmul.f32 %v3493, 0.01
        %v4006 = vmul.f32 %v3494, 0.01
        %v4007 = vmul.f32 %v3495, 0.01
        %v4008 = vmul.f32 %v3496, 0.01
        %v4009 = vmul.f32 %v3497, 0.01
        %v4010 = vmul.f32 %v3498, 0.01
        %v4011 = vmul.f32 %v3499, 0.01
        %v4012 = vmul.f32 %v3500, 0.01
        %v4013 = vmul.f32 %v3501, 0.01
        %v4014 = vmul.f32 %v3502, 0.01
        %v4015 = vmul.f32 %v3503, 0.01
        %v4016 = vmul.f32 %v3504, 0.01
        %v4017 = vmul.f32 %v3505, 0.01
        %v4018 = vmul.f32 %v3506, 0.01
        %v4019 = vmul.f32 %v3507, 0.01
        %v4020 = vmul.f32 %v3508, 0.01
        %v4021 = vmul.f32 %v3509, 0.01
        %v4022 = vmul.f32 %v3510, 0.01
        %v4023 = vmul.f32 %v3511, 0.01
        %v4024 = vmul.f32 %v3512, 0.01
        %v4025 = vmul.f32 %v3513, 0.01
        %v4026 = vmul.f32 %v3514, 0.01
        %v4027 = vmul.f32 %v3515, 0.01
        %v4028 = vmul.f32 %v3516, 0.01
        %v4029 = vmul.f32 %v3517, 0.01
        %v4030 = vmul.f32 %v3518, 0.01
        %v4031 = vmul.f32 %v3519, 0.01
        %v4032 = vmul.f32 %v3520, 0.01
        %v4033 = vmul.f32 %v3521, 0.01
        %v4034 = vmul.f32 %v3522, 0.01
        %v4035 = vmul.f32 %v3523, 0.01
        %v4036 = vmul.f32 %v3524, 0.01
        %v4037 = vmul.f32 %v3525, 0.01
        %v4038 = vmul.f32 %v3526, 0.01
        %v4039 = vmul.f32 %v3527, 0.01
        %v4040 = vmul.f32 %v3528, 0.01
        %v4041 = vmul.f32 %v3529, 0.01
        %v4042 = vmul.f32 %v3530, 0.01
        %v4043 = vmul.f32 %v3531, 0.01
        %v4044 = vmul.f32 %v3532, 0.01
        %v4045 = vmul.f32 %v3533, 0.01
        %v4046 = vmul.f32 %v3534, 0.01
        %v4047 = vmul.f32 %v3535, 0.01
        %v4048 = vmul.f32 %v3536, 0.01
        %v4049 = vmul.f32 %v3537, 0.01
        %v4050 = vmul.f32 %v3538, 0.01
        %v4051 = vmul.f32 %v3539, 0.01
        %v4052 = vmul.f32 %v3540, 0.01
        %v4053 = vmul.f32 %v3541, 0.01
        %v4054 = vmul.f32 %v3542, 0.01
        %v4055 = vmul.f32 %v3543, 0.01
        %v4056 = vmul.f32 %v3544, 0.01
        %v4057 = vmul.f32 %v3545, 0.01
        %v4058 = vmul.f32 %v3546, 0.01
        %v4059 = vmul.f32 %v3547, 0.01
        %v4060 = vmul.f32 %v3548, 0.01
        %v4061 = vmul.f32 %v3549, 0.01
        %v4062 = vmul.f32 %v3550, 0.01
        %v4063 = vmul.f32 %v3551, 0.01
        %v4064 = vmul.f32 %v3552, 0.01
        %v4065 = vmul.f32 %v3553, 0.01
        %v4066 = vmul.f32 %v3554, 0.01
        %v4067 = vmul.f32 %v3555, 0.01
        %v4068 = vmul.f32 %v3556, 0.01
        %v4069 = vsel %vm3557, %v3301, %v3813
        %v4070 = vsel %vm3558, %v3302, %v3814
        %v4071 = vsel %vm3559, %v3303, %v3815
        %v4072 = vsel %vm3560, %v3304, %v3816
        %v4073 = vsel %vm3561, %v3305, %v3817
        %v4074 = vsel %vm3562, %v3306, %v3818
        %v4075 = vsel %vm3563, %v3307, %v3819
        %v4076 = vsel %vm3564, %v3308, %v3820
        %v4077 = vsel %vm3565, %v3309, %v3821
        %v4078 = vsel %vm3566, %v3310, %v3822
        %v4079 = vsel %vm3567, %v3311, %v3823
        %v4080 = vsel %vm3568, %v3312, %v3824
        %v4081 = vsel %vm3569, %v3313, %v3825
        %v4082 = vsel %vm3570, %v3314, %v3826
        %v4083 = vsel %vm3571, %v3315, %v3827
        %v4084 = vsel %vm3572, %v3316, %v3828
        %v4085 = vsel %vm3573, %v3317, %v3829
        %v4086 = vsel %vm3574, %v3318, %v3830
        %v4087 = vsel %vm3575, %v3319, %v3831
        %v4088 = vsel %vm3576, %v3320, %v3832
        %v4089 = vsel %vm3577, %v3321, %v3833
        %v4090 = vsel %vm3578, %v3322, %v3834
        %v4091 = vsel %vm3579, %v3323, %v3835
        %v4092 = vsel %vm3580, %v3324, %v3836
        %v4093 = vsel %vm3581, %v3325, %v3837
        %v4094 = vsel %vm3582, %v3326, %v3838
        %v4095 = vsel %vm3583, %v3327, %v3839
        %v4096 = vsel %vm3584, %v3328, %v3840
        %v4097 = vsel %vm3585, %v3329, %v3841
        %v4098 = vsel %vm3586, %v3330, %v3842
        %v4099 = vsel %vm3587, %v3331, %v3843
        %v4100 = vsel %vm3588, %v3332, %v3844
        %v4101 = vsel %vm3589, %v3333, %v3845
        %v4102 = vsel %vm3590, %v3334, %v3846
        %v4103 = vsel %vm3591, %v3335, %v3847
        %v4104 = vsel %vm3592, %v3336, %v3848
        %v4105 = vsel %vm3593, %v3337, %v3849
        %v4106 = vsel %vm3594, %v3338, %v3850
        %v4107 = vsel %vm3595, %v3339, %v3851
        %v4108 = vsel %vm3596, %v3340, %v3852
        %v4109 = vsel %vm3597, %v3341, %v3853
        %v4110 = vsel %vm3598, %v3342, %v3854
        %v4111 = vsel %vm3599, %v3343, %v3855
        %v4112 = vsel %vm3600, %v3344, %v3856
        %v4113 = vsel %vm3601, %v3345, %v3857
        %v4114 = vsel %vm3602, %v3346, %v3858
        %v4115 = vsel %vm3603, %v3347, %v3859
        %v4116 = vsel %vm3604, %v3348, %v3860
        %v4117 = vsel %vm3605, %v3349, %v3861
        %v4118 = vsel %vm3606, %v3350, %v3862
        %v4119 = vsel %vm3607, %v3351, %v3863
        %v4120 = vsel %vm3608, %v3352, %v3864
        %v4121 = vsel %vm3609, %v3353, %v3865
        %v4122 = vsel %vm3610, %v3354, %v3866
        %v4123 = vsel %vm3611, %v3355, %v3867
        %v4124 = vsel %vm3612, %v3356, %v3868
        %v4125 = vsel %vm3613, %v3357, %v3869
        %v4126 = vsel %vm3614, %v3358, %v3870
        %v4127 = vsel %vm3615, %v3359, %v3871
        %v4128 = vsel %vm3616, %v3360, %v3872
        %v4129 = vsel %vm3617, %v3361, %v3873
        %v4130 = vsel %vm3618, %v3362, %v3874
        %v4131 = vsel %vm3619, %v3363, %v3875
        %v4132 = vsel %vm3620, %v3364, %v3876
        %v4133 = vsel %vm3621, %v3365, %v3877
        %v4134 = vsel %vm3622, %v3366, %v3878
        %v4135 = vsel %vm3623, %v3367, %v3879
        %v4136 = vsel %vm3624, %v3368, %v3880
        %v4137 = vsel %vm3625, %v3369, %v3881
        %v4138 = vsel %vm3626, %v3370, %v3882
        %v4139 = vsel %vm3627, %v3371, %v3883
        %v4140 = vsel %vm3628, %v3372, %v3884
        %v4141 = vsel %vm3629, %v3373, %v3885
        %v4142 = vsel %vm3630, %v3374, %v3886
        %v4143 = vsel %vm3631, %v3375, %v3887
        %v4144 = vsel %vm3632, %v3376, %v3888
        %v4145 = vsel %vm3633, %v3377, %v3889
        %v4146 = vsel %vm3634, %v3378, %v3890
        %v4147 = vsel %vm3635, %v3379, %v3891
        %v4148 = vsel %vm3636, %v3380, %v3892
        %v4149 = vsel %vm3637, %v3381, %v3893
        %v4150 = vsel %vm3638, %v3382, %v3894
        %v4151 = vsel %vm3639, %v3383, %v3895
        %v4152 = vsel %vm3640, %v3384, %v3896
        %v4153 = vsel %vm3641, %v3385, %v3897
        %v4154 = vsel %vm3642, %v3386, %v3898
        %v4155 = vsel %vm3643, %v3387, %v3899
        %v4156 = vsel %vm3644, %v3388, %v3900
        %v4157 = vsel %vm3645, %v3389, %v3901
        %v4158 = vsel %vm3646, %v3390, %v3902
        %v4159 = vsel %vm3647, %v3391, %v3903
        %v4160 = vsel %vm3648, %v3392, %v3904
        %v4161 = vsel %vm3649, %v3393, %v3905
        %v4162 = vsel %vm3650, %v3394, %v3906
        %v4163 = vsel %vm3651, %v3395, %v3907
        %v4164 = vsel %vm3652, %v3396, %v3908
        %v4165 = vsel %vm3653, %v3397, %v3909
        %v4166 = vsel %vm3654, %v3398, %v3910
        %v4167 = vsel %vm3655, %v3399, %v3911
        %v4168 = vsel %vm3656, %v3400, %v3912
        %v4169 = vsel %vm3657, %v3401, %v3913
        %v4170 = vsel %vm3658, %v3402, %v3914
        %v4171 = vsel %vm3659, %v3403, %v3915
        %v4172 = vsel %vm3660, %v3404, %v3916
        %v4173 = vsel %vm3661, %v3405, %v3917
        %v4174 = vsel %vm3662, %v3406, %v3918
        %v4175 = vsel %vm3663, %v3407, %v3919
        %v4176 = vsel %vm3664, %v3408, %v3920
        %v4177 = vsel %vm3665, %v3409, %v3921
        %v4178 = vsel %vm3666, %v3410, %v3922
        %v4179 = vsel %vm3667, %v3411, %v3923
        %v4180 = vsel %vm3668, %v3412, %v3924
        %v4181 = vsel %vm3669, %v3413, %v3925
        %v4182 = vsel %vm3670, %v3414, %v3926
        %v4183 = vsel %vm3671, %v3415, %v3927
        %v4184 = vsel %vm3672, %v3416, %v3928
        %v4185 = vsel %vm3673, %v3417, %v3929
        %v4186 = vsel %vm3674, %v3418, %v3930
        %v4187 = vsel %vm3675, %v3419, %v3931
        %v4188 = vsel %vm3676, %v3420, %v3932
        %v4189 = vsel %vm3677, %v3421, %v3933
        %v4190 = vsel %vm3678, %v3422, %v3934
        %v4191 = vsel %vm3679, %v3423, %v3935
        %v4192 = vsel %vm3680, %v3424, %v3936
        %v4193 = vsel %vm3681, %v3425, %v3937
        %v4194 = vsel %vm3682, %v3426, %v3938
        %v4195 = vsel %vm3683, %v3427, %v3939
        %v4196 = vsel %vm3684, %v3428, %v3940
        %v4197 = vsel %vm3685, %v3429, %v3941
        %v4198 = vsel %vm3686, %v3430, %v3942
        %v4199 = vsel %vm3687, %v3431, %v3943
        %v4200 = vsel %vm3688, %v3432, %v3944
        %v4201 = vsel %vm3689, %v3433, %v3945
        %v4202 = vsel %vm3690, %v3434, %v3946
        %v4203 = vsel %vm3691, %v3435, %v3947
        %v4204 = vsel %vm3692, %v3436, %v3948
        %v4205 = vsel %vm3693, %v3437, %v3949
        %v4206 = vsel %vm3694, %v3438, %v3950
        %v4207 = vsel %vm3695, %v3439, %v3951
        %v4208 = vsel %vm3696, %v3440, %v3952
        %v4209 = vsel %vm3697, %v3441, %v3953
        %v4210 = vsel %vm3698, %v3442, %v3954
        %v4211 = vsel %vm3699, %v3443, %v3955
        %v4212 = vsel %vm3700, %v3444, %v3956
        %v4213 = vsel %vm3701, %v3445, %v3957
        %v4214 = vsel %vm3702, %v3446, %v3958
        %v4215 = vsel %vm3703, %v3447, %v3959
        %v4216 = vsel %vm3704, %v3448, %v3960
        %v4217 = vsel %vm3705, %v3449, %v3961
        %v4218 = vsel %vm3706, %v3450, %v3962
        %v4219 = vsel %vm3707, %v3451, %v3963
        %v4220 = vsel %vm3708, %v3452, %v3964
        %v4221 = vsel %vm3709, %v3453, %v3965
        %v4222 = vsel %vm3710, %v3454, %v3966
        %v4223 = vsel %vm3711, %v3455, %v3967
        %v4224 = vsel %vm3712, %v3456, %v3968
        %v4225 = vsel %vm3713, %v3457, %v3969
        %v4226 = vsel %vm3714, %v3458, %v3970
        %v4227 = vsel %vm3715, %v3459, %v3971
        %v4228 = vsel %vm3716, %v3460, %v3972
        %v4229 = vsel %vm3717, %v3461, %v3973
        %v4230 = vsel %vm3718, %v3462, %v3974
        %v4231 = vsel %vm3719, %v3463, %v3975
        %v4232 = vsel %vm3720, %v3464, %v3976
        %v4233 = vsel %vm3721, %v3465, %v3977
        %v4234 = vsel %vm3722, %v3466, %v3978
        %v4235 = vsel %vm3723, %v3467, %v3979
        %v4236 = vsel %vm3724, %v3468, %v3980
        %v4237 = vsel %vm3725, %v3469, %v3981
        %v4238 = vsel %vm3726, %v3470, %v3982
        %v4239 = vsel %vm3727, %v3471, %v3983
        %v4240 = vsel %vm3728, %v3472, %v3984
        %v4241 = vsel %vm3729, %v3473, %v3985
        %v4242 = vsel %vm3730, %v3474, %v3986
        %v4243 = vsel %vm3731, %v3475, %v3987
        %v4244 = vsel %vm3732, %v3476, %v3988
        %v4245 = vsel %vm3733, %v3477, %v3989
        %v4246 = vsel %vm3734, %v3478, %v3990
        %v4247 = vsel %vm3735, %v3479, %v3991
        %v4248 = vsel %vm3736, %v3480, %v3992
        %v4249 = vsel %vm3737, %v3481, %v3993
        %v4250 = vsel %vm3738, %v3482, %v3994
        %v4251 = vsel %vm3739, %v3483, %v3995
        %v4252 = vsel %vm3740, %v3484, %v3996
        %v4253 = vsel %vm3741, %v3485, %v3997
        %v4254 = vsel %vm3742, %v3486, %v3998
        %v4255 = vsel %vm3743, %v3487, %v3999
        %v4256 = vsel %vm3744, %v3488, %v4000
        %v4257 = vsel %vm3745, %v3489, %v4001
        %v4258 = vsel %vm3746, %v3490, %v4002
        %v4259 = vsel %vm3747, %v3491, %v4003
        %v4260 = vsel %vm3748, %v3492, %v4004
        %v4261 = vsel %vm3749, %v3493, %v4005
        %v4262 = vsel %vm3750, %v3494, %v4006
        %v4263 = vsel %vm3751, %v3495, %v4007
        %v4264 = vsel %vm3752, %v3496, %v4008
        %v4265 = vsel %vm3753, %v3497, %v4009
        %v4266 = vsel %vm3754, %v3498, %v4010
        %v4267 = vsel %vm3755, %v3499, %v4011
        %v4268 = vsel %vm3756, %v3500, %v4012
        %v4269 = vsel %vm3757, %v3501, %v4013
        %v4270 = vsel %vm3758, %v3502, %v4014
        %v4271 = vsel %vm3759, %v3503, %v4015
        %v4272 = vsel %vm3760, %v3504, %v4016
        %v4273 = vsel %vm3761, %v3505, %v4017
        %v4274 = vsel %vm3762, %v3506, %v4018
        %v4275 = vsel %vm3763, %v3507, %v4019
        %v4276 = vsel %vm3764, %v3508, %v4020
        %v4277 = vsel %vm3765, %v3509, %v4021
        %v4278 = vsel %vm3766, %v3510, %v4022
        %v4279 = vsel %vm3767, %v3511, %v4023
        %v4280 = vsel %vm3768, %v3512, %v4024
        %v4281 = vsel %vm3769, %v3513, %v4025
        %v4282 = vsel %vm3770, %v3514, %v4026
        %v4283 = vsel %vm3771, %v3515, %v4027
        %v4284 = vsel %vm3772, %v3516, %v4028
        %v4285 = vsel %vm3773, %v3517, %v4029
        %v4286 = vsel %vm3774, %v3518, %v4030
        %v4287 = vsel %vm3775, %v3519, %v4031
        %v4288 = vsel %vm3776, %v3520, %v4032
        %v4289 = vsel %vm3777, %v3521, %v4033
        %v4290 = vsel %vm3778, %v3522, %v4034
        %v4291 = vsel %vm3779, %v3523, %v4035
        %v4292 = vsel %vm3780, %v3524, %v4036
        %v4293 = vsel %vm3781, %v3525, %v4037
        %v4294 = vsel %vm3782, %v3526, %v4038
        %v4295 = vsel %vm3783, %v3527, %v4039
        %v4296 = vsel %vm3784, %v3528, %v4040
        %v4297 = vsel %vm3785, %v3529, %v4041
        %v4298 = vsel %vm3786, %v3530, %v4042
        %v4299 = vsel %vm3787, %v3531, %v4043
        %v4300 = vsel %vm3788, %v3532, %v4044
        %v4301 = vsel %vm3789, %v3533, %v4045
        %v4302 = vsel %vm3790, %v3534, %v4046
        %v4303 = vsel %vm3791, %v3535, %v4047
        %v4304 = vsel %vm3792, %v3536, %v4048
        %v4305 = vsel %vm3793, %v3537, %v4049
        %v4306 = vsel %vm3794, %v3538, %v4050
        %v4307 = vsel %vm3795, %v3539, %v4051
        %v4308 = vsel %vm3796, %v3540, %v4052
        %v4309 = vsel %vm3797, %v3541, %v4053
        %v4310 = vsel %vm3798, %v3542, %v4054
        %v4311 = vsel %vm3799, %v3543, %v4055
        %v4312 = vsel %vm3800, %v3544, %v4056
        %v4313 = vsel %vm3801, %v3545, %v4057
        %v4314 = vsel %vm3802, %v3546, %v4058
        %v4315 = vsel %vm3803, %v3547, %v4059
        %v4316 = vsel %vm3804, %v3548, %v4060
        %v4317 = vsel %vm3805, %v3549, %v4061
        %v4318 = vsel %vm3806, %v3550, %v4062
        %v4319 = vsel %vm3807, %v3551, %v4063
        %v4320 = vsel %vm3808, %v3552, %v4064
        %v4321 = vsel %vm3809, %v3553, %v4065
        %v4322 = vsel %vm3810, %v3554, %v4066
        %v4323 = vsel %vm3811, %v3555, %v4067
        %v4324 = vsel %vm3812, %v3556, %v4068
        %4325 = vst [vmem:[%s225] sm:$0xff] %v4069
        %4326 = vst [vmem:[%s225 + $0x8] sm:$0xff] %v4070
        %4327 = vst [vmem:[%s225 + $0x10] sm:$0xff] %v4071
        %4328 = vst [vmem:[%s225 + $0x18] sm:$0xff] %v4072
        %4329 = vst [vmem:[%s225 + $0x20] sm:$0xff] %v4073
        %4330 = vst [vmem:[%s225 + $0x28] sm:$0xff] %v4074
        %4331 = vst [vmem:[%s225 + $0x30] sm:$0xff] %v4075
        %4332 = vst [vmem:[%s225 + $0x38] sm:$0xff] %v4076
        %4333 = vst [vmem:[%s225 + $0x40] sm:$0xff] %v4077
        %4334 = vst [vmem:[%s225 + $0x48] sm:$0xff] %v4078
        %4335 = vst [vmem:[%s225 + $0x50] sm:$0xff] %v4079
        %4336 = vst [vmem:[%s225 + $0x58] sm:$0xff] %v4080
        %4337 = vst [vmem:[%s225 + $0x60] sm:$0xff] %v4081
        %4338 = vst [vmem:[%s225 + $0x68] sm:$0xff] %v4082
        %4339 = vst [vmem:[%s225 + $0x70] sm:$0xff] %v4083
        %4340 = vst [vmem:[%s225 + $0x78] sm:$0xff] %v4084
        %4341 = vst [vmem:[%s225 + $0x80] sm:$0xff] %v4085
        %4342 = vst [vmem:[%s225 + $0x88] sm:$0xff] %v4086
        %4343 = vst [vmem:[%s225 + $0x90] sm:$0xff] %v4087
        %4344 = vst [vmem:[%s225 + $0x98] sm:$0xff] %v4088
        %4345 = vst [vmem:[%s225 + $0xa0] sm:$0xff] %v4089
        %4346 = vst [vmem:[%s225 + $0xa8] sm:$0xff] %v4090
        %4347 = vst [vmem:[%s225 + $0xb0] sm:$0xff] %v4091
        %4348 = vst [vmem:[%s225 + $0xb8] sm:$0xff] %v4092
        %4349 = vst [vmem:[%s225 + $0xc0] sm:$0xff] %v4093
        %4350 = vst [vmem:[%s225 + $0xc8] sm:$0xff] %v4094
        %4351 = vst [vmem:[%s225 + $0xd0] sm:$0xff] %v4095
        %4352 = vst [vmem:[%s225 + $0xd8] sm:$0xff] %v4096
        %4353 = vst [vmem:[%s225 + $0xe0] sm:$0xff] %v4097
        %4354 = vst [vmem:[%s225 + $0xe8] sm:$0xff] %v4098
        %4355 = vst [vmem:[%s225 + $0xf0] sm:$0xff] %v4099
        %4356 = vst [vmem:[%s225 + $0xf8] sm:$0xff] %v4100
        %4357 = vst [vmem:[%s225 + $0x100] sm:$0xff] %v4101
        %4358 = vst [vmem:[%s225 + $0x108] sm:$0xff] %v4102
        %4359 = vst [vmem:[%s225 + $0x110] sm:$0xff] %v4103
        %4360 = vst [vmem:[%s225 + $0x118] sm:$0xff] %v4104
        %4361 = vst [vmem:[%s225 + $0x120] sm:$0xff] %v4105
        %4362 = vst [vmem:[%s225 + $0x128] sm:$0xff] %v4106
        %4363 = vst [vmem:[%s225 + $0x130] sm:$0xff] %v4107
        %4364 = vst [vmem:[%s225 + $0x138] sm:$0xff] %v4108
        %4365 = vst [vmem:[%s225 + $0x140] sm:$0xff] %v4109
        %4366 = vst [vmem:[%s225 + $0x148] sm:$0xff] %v4110
        %4367 = vst [vmem:[%s225 + $0x150] sm:$0xff] %v4111
        %4368 = vst [vmem:[%s225 + $0x158] sm:$0xff] %v4112
        %4369 = vst [vmem:[%s225 + $0x160] sm:$0xff] %v4113
        %4370 = vst [vmem:[%s225 + $0x168] sm:$0xff] %v4114
        %4371 = vst [vmem:[%s225 + $0x170] sm:$0xff] %v4115
        %4372 = vst [vmem:[%s225 + $0x178] sm:$0xff] %v4116
        %4373 = vst [vmem:[%s225 + $0x180] sm:$0xff] %v4117
        %4374 = vst [vmem:[%s225 + $0x188] sm:$0xff] %v4118
        %4375 = vst [vmem:[%s225 + $0x190] sm:$0xff] %v4119
        %4376 = vst [vmem:[%s225 + $0x198] sm:$0xff] %v4120
        %4377 = vst [vmem:[%s225 + $0x1a0] sm:$0xff] %v4121
        %4378 = vst [vmem:[%s225 + $0x1a8] sm:$0xff] %v4122
        %4379 = vst [vmem:[%s225 + $0x1b0] sm:$0xff] %v4123
        %4380 = vst [vmem:[%s225 + $0x1b8] sm:$0xff] %v4124
        %4381 = vst [vmem:[%s225 + $0x1c0] sm:$0xff] %v4125
        %4382 = vst [vmem:[%s225 + $0x1c8] sm:$0xff] %v4126
        %4383 = vst [vmem:[%s225 + $0x1d0] sm:$0xff] %v4127
        %4384 = vst [vmem:[%s225 + $0x1d8] sm:$0xff] %v4128
        %4385 = vst [vmem:[%s225 + $0x1e0] sm:$0xff] %v4129
        %4386 = vst [vmem:[%s225 + $0x1e8] sm:$0xff] %v4130
        %4387 = vst [vmem:[%s225 + $0x1f0] sm:$0xff] %v4131
        %4388 = vst [vmem:[%s225 + $0x1f8] sm:$0xff] %v4132
        %4389 = vst [vmem:[%s225 + $0x200] sm:$0xff] %v4133
        %4390 = vst [vmem:[%s225 + $0x208] sm:$0xff] %v4134
        %4391 = vst [vmem:[%s225 + $0x210] sm:$0xff] %v4135
        %4392 = vst [vmem:[%s225 + $0x218] sm:$0xff] %v4136
        %4393 = vst [vmem:[%s225 + $0x220] sm:$0xff] %v4137
        %4394 = vst [vmem:[%s225 + $0x228] sm:$0xff] %v4138
        %4395 = vst [vmem:[%s225 + $0x230] sm:$0xff] %v4139
        %4396 = vst [vmem:[%s225 + $0x238] sm:$0xff] %v4140
        %4397 = vst [vmem:[%s225 + $0x240] sm:$0xff] %v4141
        %4398 = vst [vmem:[%s225 + $0x248] sm:$0xff] %v4142
        %4399 = vst [vmem:[%s225 + $0x250] sm:$0xff] %v4143
        %4400 = vst [vmem:[%s225 + $0x258] sm:$0xff] %v4144
        %4401 = vst [vmem:[%s225 + $0x260] sm:$0xff] %v4145
        %4402 = vst [vmem:[%s225 + $0x268] sm:$0xff] %v4146
        %4403 = vst [vmem:[%s225 + $0x270] sm:$0xff] %v4147
        %4404 = vst [vmem:[%s225 + $0x278] sm:$0xff] %v4148
        %4405 = vst [vmem:[%s225 + $0x280] sm:$0xff] %v4149
        %4406 = vst [vmem:[%s225 + $0x288] sm:$0xff] %v4150
        %4407 = vst [vmem:[%s225 + $0x290] sm:$0xff] %v4151
        %4408 = vst [vmem:[%s225 + $0x298] sm:$0xff] %v4152
        %4409 = vst [vmem:[%s225 + $0x2a0] sm:$0xff] %v4153
        %4410 = vst [vmem:[%s225 + $0x2a8] sm:$0xff] %v4154
        %4411 = vst [vmem:[%s225 + $0x2b0] sm:$0xff] %v4155
        %4412 = vst [vmem:[%s225 + $0x2b8] sm:$0xff] %v4156
        %4413 = vst [vmem:[%s225 + $0x2c0] sm:$0xff] %v4157
        %4414 = vst [vmem:[%s225 + $0x2c8] sm:$0xff] %v4158
        %4415 = vst [vmem:[%s225 + $0x2d0] sm:$0xff] %v4159
        %4416 = vst [vmem:[%s225 + $0x2d8] sm:$0xff] %v4160
        %4417 = vst [vmem:[%s225 + $0x2e0] sm:$0xff] %v4161
        %4418 = vst [vmem:[%s225 + $0x2e8] sm:$0xff] %v4162
        %4419 = vst [vmem:[%s225 + $0x2f0] sm:$0xff] %v4163
        %4420 = vst [vmem:[%s225 + $0x2f8] sm:$0xff] %v4164
        %4421 = vst [vmem:[%s225 + $0x300] sm:$0xff] %v4165
        %4422 = vst [vmem:[%s225 + $0x308] sm:$0xff] %v4166
        %4423 = vst [vmem:[%s225 + $0x310] sm:$0xff] %v4167
        %4424 = vst [vmem:[%s225 + $0x318] sm:$0xff] %v4168
        %4425 = vst [vmem:[%s225 + $0x320] sm:$0xff] %v4169
        %4426 = vst [vmem:[%s225 + $0x328] sm:$0xff] %v4170
        %4427 = vst [vmem:[%s225 + $0x330] sm:$0xff] %v4171
        %4428 = vst [vmem:[%s225 + $0x338] sm:$0xff] %v4172
        %4429 = vst [vmem:[%s225 + $0x340] sm:$0xff] %v4173
        %4430 = vst [vmem:[%s225 + $0x348] sm:$0xff] %v4174
        %4431 = vst [vmem:[%s225 + $0x350] sm:$0xff] %v4175
        %4432 = vst [vmem:[%s225 + $0x358] sm:$0xff] %v4176
        %4433 = vst [vmem:[%s225 + $0x360] sm:$0xff] %v4177
        %4434 = vst [vmem:[%s225 + $0x368] sm:$0xff] %v4178
        %4435 = vst [vmem:[%s225 + $0x370] sm:$0xff] %v4179
        %4436 = vst [vmem:[%s225 + $0x378] sm:$0xff] %v4180
        %4437 = vst [vmem:[%s225 + $0x380] sm:$0xff] %v4181
        %4438 = vst [vmem:[%s225 + $0x388] sm:$0xff] %v4182
        %4439 = vst [vmem:[%s225 + $0x390] sm:$0xff] %v4183
        %4440 = vst [vmem:[%s225 + $0x398] sm:$0xff] %v4184
        %4441 = vst [vmem:[%s225 + $0x3a0] sm:$0xff] %v4185
        %4442 = vst [vmem:[%s225 + $0x3a8] sm:$0xff] %v4186
        %4443 = vst [vmem:[%s225 + $0x3b0] sm:$0xff] %v4187
        %4444 = vst [vmem:[%s225 + $0x3b8] sm:$0xff] %v4188
        %4445 = vst [vmem:[%s225 + $0x3c0] sm:$0xff] %v4189
        %4446 = vst [vmem:[%s225 + $0x3c8] sm:$0xff] %v4190
        %4447 = vst [vmem:[%s225 + $0x3d0] sm:$0xff] %v4191
        %4448 = vst [vmem:[%s225 + $0x3d8] sm:$0xff] %v4192
        %4449 = vst [vmem:[%s225 + $0x3e0] sm:$0xff] %v4193
        %4450 = vst [vmem:[%s225 + $0x3e8] sm:$0xff] %v4194
        %4451 = vst [vmem:[%s225 + $0x3f0] sm:$0xff] %v4195
        %4452 = vst [vmem:[%s225 + $0x3f8] sm:$0xff] %v4196
        %4453 = vst [vmem:[%s225 + $0x400] sm:$0xff] %v4197
        %4454 = vst [vmem:[%s225 + $0x408] sm:$0xff] %v4198
        %4455 = vst [vmem:[%s225 + $0x410] sm:$0xff] %v4199
        %4456 = vst [vmem:[%s225 + $0x418] sm:$0xff] %v4200
        %4457 = vst [vmem:[%s225 + $0x420] sm:$0xff] %v4201
        %4458 = vst [vmem:[%s225 + $0x428] sm:$0xff] %v4202
        %4459 = vst [vmem:[%s225 + $0x430] sm:$0xff] %v4203
        %4460 = vst [vmem:[%s225 + $0x438] sm:$0xff] %v4204
        %4461 = vst [vmem:[%s225 + $0x440] sm:$0xff] %v4205
        %4462 = vst [vmem:[%s225 + $0x448] sm:$0xff] %v4206
        %4463 = vst [vmem:[%s225 + $0x450] sm:$0xff] %v4207
        %4464 = vst [vmem:[%s225 + $0x458] sm:$0xff] %v4208
        %4465 = vst [vmem:[%s225 + $0x460] sm:$0xff] %v4209
        %4466 = vst [vmem:[%s225 + $0x468] sm:$0xff] %v4210
        %4467 = vst [vmem:[%s225 + $0x470] sm:$0xff] %v4211
        %4468 = vst [vmem:[%s225 + $0x478] sm:$0xff] %v4212
        %4469 = vst [vmem:[%s225 + $0x480] sm:$0xff] %v4213
        %4470 = vst [vmem:[%s225 + $0x488] sm:$0xff] %v4214
        %4471 = vst [vmem:[%s225 + $0x490] sm:$0xff] %v4215
        %4472 = vst [vmem:[%s225 + $0x498] sm:$0xff] %v4216
        %4473 = vst [vmem:[%s225 + $0x4a0] sm:$0xff] %v4217
        %4474 = vst [vmem:[%s225 + $0x4a8] sm:$0xff] %v4218
        %4475 = vst [vmem:[%s225 + $0x4b0] sm:$0xff] %v4219
        %4476 = vst [vmem:[%s225 + $0x4b8] sm:$0xff] %v4220
        %4477 = vst [vmem:[%s225 + $0x4c0] sm:$0xff] %v4221
        %4478 = vst [vmem:[%s225 + $0x4c8] sm:$0xff] %v4222
        %4479 = vst [vmem:[%s225 + $0x4d0] sm:$0xff] %v4223
        %4480 = vst [vmem:[%s225 + $0x4d8] sm:$0xff] %v4224
        %4481 = vst [vmem:[%s225 + $0x4e0] sm:$0xff] %v4225
        %4482 = vst [vmem:[%s225 + $0x4e8] sm:$0xff] %v4226
        %4483 = vst [vmem:[%s225 + $0x4f0] sm:$0xff] %v4227
        %4484 = vst [vmem:[%s225 + $0x4f8] sm:$0xff] %v4228
        %4485 = vst [vmem:[%s225 + $0x500] sm:$0xff] %v4229
        %4486 = vst [vmem:[%s225 + $0x508] sm:$0xff] %v4230
        %4487 = vst [vmem:[%s225 + $0x510] sm:$0xff] %v4231
        %4488 = vst [vmem:[%s225 + $0x518] sm:$0xff] %v4232
        %4489 = vst [vmem:[%s225 + $0x520] sm:$0xff] %v4233
        %4490 = vst [vmem:[%s225 + $0x528] sm:$0xff] %v4234
        %4491 = vst [vmem:[%s225 + $0x530] sm:$0xff] %v4235
        %4492 = vst [vmem:[%s225 + $0x538] sm:$0xff] %v4236
        %4493 = vst [vmem:[%s225 + $0x540] sm:$0xff] %v4237
        %4494 = vst [vmem:[%s225 + $0x548] sm:$0xff] %v4238
        %4495 = vst [vmem:[%s225 + $0x550] sm:$0xff] %v4239
        %4496 = vst [vmem:[%s225 + $0x558] sm:$0xff] %v4240
        %4497 = vst [vmem:[%s225 + $0x560] sm:$0xff] %v4241
        %4498 = vst [vmem:[%s225 + $0x568] sm:$0xff] %v4242
        %4499 = vst [vmem:[%s225 + $0x570] sm:$0xff] %v4243
        %4500 = vst [vmem:[%s225 + $0x578] sm:$0xff] %v4244
        %4501 = vst [vmem:[%s225 + $0x580] sm:$0xff] %v4245
        %4502 = vst [vmem:[%s225 + $0x588] sm:$0xff] %v4246
        %4503 = vst [vmem:[%s225 + $0x590] sm:$0xff] %v4247
        %4504 = vst [vmem:[%s225 + $0x598] sm:$0xff] %v4248
        %4505 = vst [vmem:[%s225 + $0x5a0] sm:$0xff] %v4249
        %4506 = vst [vmem:[%s225 + $0x5a8] sm:$0xff] %v4250
        %4507 = vst [vmem:[%s225 + $0x5b0] sm:$0xff] %v4251
        %4508 = vst [vmem:[%s225 + $0x5b8] sm:$0xff] %v4252
        %4509 = vst [vmem:[%s225 + $0x5c0] sm:$0xff] %v4253
        %4510 = vst [vmem:[%s225 + $0x5c8] sm:$0xff] %v4254
        %4511 = vst [vmem:[%s225 + $0x5d0] sm:$0xff] %v4255
        %4512 = vst [vmem:[%s225 + $0x5d8] sm:$0xff] %v4256
        %4513 = vst [vmem:[%s225 + $0x5e0] sm:$0xff] %v4257
        %4514 = vst [vmem:[%s225 + $0x5e8] sm:$0xff] %v4258
        %4515 = vst [vmem:[%s225 + $0x5f0] sm:$0xff] %v4259
        %4516 = vst [vmem:[%s225 + $0x5f8] sm:$0xff] %v4260
        %4517 = vst [vmem:[%s225 + $0x600] sm:$0xff] %v4261
        %4518 = vst [vmem:[%s225 + $0x608] sm:$0xff] %v4262
        %4519 = vst [vmem:[%s225 + $0x610] sm:$0xff] %v4263
        %4520 = vst [vmem:[%s225 + $0x618] sm:$0xff] %v4264
        %4521 = vst [vmem:[%s225 + $0x620] sm:$0xff] %v4265
        %4522 = vst [vmem:[%s225 + $0x628] sm:$0xff] %v4266
        %4523 = vst [vmem:[%s225 + $0x630] sm:$0xff] %v4267
        %4524 = vst [vmem:[%s225 + $0x638] sm:$0xff] %v4268
        %4525 = vst [vmem:[%s225 + $0x640] sm:$0xff] %v4269
        %4526 = vst [vmem:[%s225 + $0x648] sm:$0xff] %v4270
        %4527 = vst [vmem:[%s225 + $0x650] sm:$0xff] %v4271
        %4528 = vst [vmem:[%s225 + $0x658] sm:$0xff] %v4272
        %4529 = vst [vmem:[%s225 + $0x660] sm:$0xff] %v4273
        %4530 = vst [vmem:[%s225 + $0x668] sm:$0xff] %v4274
        %4531 = vst [vmem:[%s225 + $0x670] sm:$0xff] %v4275
        %4532 = vst [vmem:[%s225 + $0x678] sm:$0xff] %v4276
        %4533 = vst [vmem:[%s225 + $0x680] sm:$0xff] %v4277
        %4534 = vst [vmem:[%s225 + $0x688] sm:$0xff] %v4278
        %4535 = vst [vmem:[%s225 + $0x690] sm:$0xff] %v4279
        %4536 = vst [vmem:[%s225 + $0x698] sm:$0xff] %v4280
        %4537 = vst [vmem:[%s225 + $0x6a0] sm:$0xff] %v4281
        %4538 = vst [vmem:[%s225 + $0x6a8] sm:$0xff] %v4282
        %4539 = vst [vmem:[%s225 + $0x6b0] sm:$0xff] %v4283
        %4540 = vst [vmem:[%s225 + $0x6b8] sm:$0xff] %v4284
        %4541 = vst [vmem:[%s225 + $0x6c0] sm:$0xff] %v4285
        %4542 = vst [vmem:[%s225 + $0x6c8] sm:$0xff] %v4286
        %4543 = vst [vmem:[%s225 + $0x6d0] sm:$0xff] %v4287
        %4544 = vst [vmem:[%s225 + $0x6d8] sm:$0xff] %v4288
        %4545 = vst [vmem:[%s225 + $0x6e0] sm:$0xff] %v4289
        %4546 = vst [vmem:[%s225 + $0x6e8] sm:$0xff] %v4290
        %4547 = vst [vmem:[%s225 + $0x6f0] sm:$0xff] %v4291
        %4548 = vst [vmem:[%s225 + $0x6f8] sm:$0xff] %v4292
        %4549 = vst [vmem:[%s225 + $0x700] sm:$0xff] %v4293
        %4550 = vst [vmem:[%s225 + $0x708] sm:$0xff] %v4294
        %4551 = vst [vmem:[%s225 + $0x710] sm:$0xff] %v4295
        %4552 = vst [vmem:[%s225 + $0x718] sm:$0xff] %v4296
        %4553 = vst [vmem:[%s225 + $0x720] sm:$0xff] %v4297
        %4554 = vst [vmem:[%s225 + $0x728] sm:$0xff] %v4298
        %4555 = vst [vmem:[%s225 + $0x730] sm:$0xff] %v4299
        %4556 = vst [vmem:[%s225 + $0x738] sm:$0xff] %v4300
        %4557 = vst [vmem:[%s225 + $0x740] sm:$0xff] %v4301
        %4558 = vst [vmem:[%s225 + $0x748] sm:$0xff] %v4302
        %4559 = vst [vmem:[%s225 + $0x750] sm:$0xff] %v4303
        %4560 = vst [vmem:[%s225 + $0x758] sm:$0xff] %v4304
        %4561 = vst [vmem:[%s225 + $0x760] sm:$0xff] %v4305
        %4562 = vst [vmem:[%s225 + $0x768] sm:$0xff] %v4306
        %4563 = vst [vmem:[%s225 + $0x770] sm:$0xff] %v4307
        %4564 = vst [vmem:[%s225 + $0x778] sm:$0xff] %v4308
        %4565 = vst [vmem:[%s225 + $0x780] sm:$0xff] %v4309
        %4566 = vst [vmem:[%s225 + $0x788] sm:$0xff] %v4310
        %4567 = vst [vmem:[%s225 + $0x790] sm:$0xff] %v4311
        %4568 = vst [vmem:[%s225 + $0x798] sm:$0xff] %v4312
        %4569 = vst [vmem:[%s225 + $0x7a0] sm:$0xff] %v4313
        %4570 = vst [vmem:[%s225 + $0x7a8] sm:$0xff] %v4314
        %4571 = vst [vmem:[%s225 + $0x7b0] sm:$0xff] %v4315
        %4572 = vst [vmem:[%s225 + $0x7b8] sm:$0xff] %v4316
        %4573 = vst [vmem:[%s225 + $0x7c0] sm:$0xff] %v4317
        %4574 = vst [vmem:[%s225 + $0x7c8] sm:$0xff] %v4318
        %4575 = vst [vmem:[%s225 + $0x7d0] sm:$0xff] %v4319
        %4576 = vst [vmem:[%s225 + $0x7d8] sm:$0xff] %v4320
        %4577 = vst [vmem:[%s225 + $0x7e0] sm:$0xff] %v4321
        %4578 = vst [vmem:[%s225 + $0x7e8] sm:$0xff] %v4322
        %4579 = vst [vmem:[%s225 + $0x7f0] sm:$0xff] %v4323
        %4580 = vst [vmem:[%s225 + $0x7f8] sm:$0xff] %v4324
        %s4581 = sand.u32 %s113, 1
        %s4582 = scalar_lea.sflag [#allocation4], %s4581
        %s4583 = sand.u32 %s113, 1
        %s4584 = smul.addr %s4583, 2048
        %s4585 = scalar_lea.vmem [#allocation7], %s4584
        // Predicated region
        $region41: #{tpu_custom_call.1} parent=31 // pred_check
          %p4586 = pneg %p123
        $region42: #{tpu_custom_call.1} parent=31 // pred_check_branch
          %4588 = sbr.rel (%p4586) target = $region44
        $region43: #{tpu_custom_call.1} parent=31 // pred_region
          %s4589 = smul.u32 16, %s26
          %4591 = vsyncadd %s4582, 0
          %s4592 = smul.addr %s25, 256
          %s4593 = sadd.s32 %s4589, %s4592
          %s4594 = smul.addr %s4593, 8
          %s4595 = scalar_lea.hbm %s3, %s4594
          %s4596 = sshll.u32 %s4585, 4
          %s4597 = int_to_ptr.vmem [resolvable:$true] %s4596
          %s4598 = sshll.u32 %s4595, 4
          %s4599 = int_to_ptr.hbm [resolvable:$true] %s4598
          %4604 = dma.vmem_to_hbm [thread:$0]  %s4597, 32768, %s4599, %s4582, 2048, 2048, 128
        $region44: #{tpu_custom_call.1} parent=31 // pred_fallthru
          _
      $region32: #{tpu_custom_call.1} parent=5 // pred_fallthru
        _
      %p4605 = scmp.le.s32.totalorder 2, %s16
      // Predicated region
      $region45: #{tpu_custom_call.1} parent=5 // pred_check
        %p4606 = pneg %p4605
      $region46: #{tpu_custom_call.1} parent=5 // pred_check_branch
        %4608 = sbr.rel (%p4606) target = $region48
      $region47: #{tpu_custom_call.1} parent=5 // pred_region
        %s4609 = ssub.s32 %s16, 2
        // Predicated region
        $region49: #{tpu_custom_call.1} parent=47 // pred_check
          %p4610 = pneg %p129
        $region50: #{tpu_custom_call.1} parent=47 // pred_check_branch
          %4612 = sbr.rel (%p4610) target = $region52
        $region51: #{tpu_custom_call.1} parent=47 // pred_region
          %s4613 = sand.u32 %s114, 1
          %s4614 = scalar_lea.sflag [#allocation4], %s4613
          %s4615 = sand.u32 %s114, 1
          %s4616 = smul.addr %s4615, 2048
          %s4617 = scalar_lea.vmem [#allocation7], %s4616
          %4619 = dma.done %s4614, 32768
        $region52: #{tpu_custom_call.1} parent=47 // pred_fallthru
          _
      $region48: #{tpu_custom_call.1} parent=5 // pred_fallthru
        _
    $region6: #{tpu_custom_call.1} parent=1 // loop_footer
      %s20 = sadd.s32 1, %s16
    $region7: #{tpu_custom_call.1} parent=1 // loop_footer_branch
      %15 = sbr.rel target = $region3
    $region8: #{tpu_custom_call.1} parent=1 // loop_exit
      _
    %4620 = vsyncpa [#allocation3], 1
    %s4621 = scalar_lea.sflag [#allocation3], 1
    %4622 = vsyncpa %s4621, 1
    %4623 = vsyncpa [#allocation6], 1
    %4624 = vsyncpa [#allocation4], 1
    %s4625 = scalar_lea.sflag [#allocation4], 1
    %4626 = vsyncpa %s4625, 1

</llo_original>
